<compile_context>
chip_gen: v5e
topology: v5e:2x2
jax: 0.10.0
libtpu: 0.0.40
codegen_flags: <defaults>
</compile_context>

<pallas_src>
import functools
import math

import jax
import jax.numpy as jnp
from jax import lax
from jax.experimental import pallas as pl
from jax.experimental.pallas import tpu as pltpu


# ---------------------------------------------------------------------------
# helpers
# ---------------------------------------------------------------------------
def _round_up(n, m):
    return ((n + m - 1) // m) * m


def _pad_rows(x2, rows):
    if x2.shape[0] == rows:
        return x2
    return jnp.pad(x2, ((0, rows - x2.shape[0]), (0, 0)))


_VMEM_LIMIT_CACHE = []


def _vmem_limit_bytes():
    """VMEM budget with headroom: ~51 MiB on v7x (64 MiB), 100 MiB on 128-MiB chips."""
    if not _VMEM_LIMIT_CACHE:
        cap = 128 * 1024 * 1024
        try:
            info = pltpu.get_tpu_info()
            cap = int(getattr(info, "vmem_capacity_bytes", cap))
        except Exception:
            pass
        _VMEM_LIMIT_CACHE.append(min(100 * 1024 * 1024, int(cap * 0.8)))
    return _VMEM_LIMIT_CACHE[0]


def _compiler_params(dimension_semantics):
    return pltpu.CompilerParams(
        dimension_semantics=dimension_semantics,
        vmem_limit_bytes=_vmem_limit_bytes(),
    )


def _const_spec(block_shape):
    """Weight/bias block identical at every grid step (never re-DMA'd)."""
    nd = len(block_shape)
    return pl.BlockSpec(block_shape, lambda *_args: (0,) * nd)


def _pick_row_tile(M, target=512):
    # Sublane-aligned row tile; keep >=2 grid steps when M allows so the
    # "parallel" row axis can shard across both TensorCores on v7x.
    return max(8, min(target, _round_up(pl.cdiv(M, 2), 8)))


def _pick_dff_tile(d_ff, max_tile=2048):
    # Split d_ff so W1/W2 slabs + the (tm, tf) hidden stay within VMEM budget.
    if d_ff <= max_tile:
        return d_ff
    for tf in range(max_tile, 0, -128):
        if d_ff % tf == 0:
            return tf
    return d_ff


def _layernorm_f32(x_f32, g_f32, b_f32, eps, inv_nm1):
    """Matches the PyTorch LayerNorm in the spec: unbiased std, eps added to std."""
    mean = jnp.mean(x_f32, axis=-1, keepdims=True)
    xc = x_f32 - mean
    std = jnp.sqrt(jnp.sum(xc * xc, axis=-1, keepdims=True) * inv_nm1)
    return g_f32 * xc / (std + eps) + b_f32


# ---------------------------------------------------------------------------
# kernels
# ---------------------------------------------------------------------------
def attn_block_kernel(x_ref, g_ref, b_ref, wqkv_ref, bqkv_ref, wo_ref, bo_ref,
                      o_ref, *, n_heads, eps, inv_nm1, scale):
    """One batch element per grid step: x + Wo( MHA( LN(x) ) )."""
    x = x_ref[0].astype(jnp.float32)                               # (S, D)
    S, D = x.shape
    dk = D // n_heads

    # fused pre-LayerNorm
    h = _layernorm_f32(x, g_ref[...].astype(jnp.float32),
                       b_ref[...].astype(jnp.float32), eps, inv_nm1)

    # fused QKV projection (f32 MXU accumulation)
    w_qkv = wqkv_ref[...]
    qkv = jnp.dot(h.astype(w_qkv.dtype), w_qkv,
                  preferred_element_type=jnp.float32)
    qkv = qkv + bqkv_ref[...].astype(jnp.float32)                  # (S, 3D)

    q = qkv[:, :D] * scale          # scale q (S*dk) instead of the SxS scores
    k = qkv[:, D:2 * D]
    v = qkv[:, 2 * D:]

    # per-head attention via static lane slices (no transposes, no relayout)
    # TODO(synk): flash-style online softmax over a KV grid axis for long S.
    outs = []
    for hd in range(n_heads):
        sl = slice(hd * dk, (hd + 1) * dk)
        qh, kh, vh = q[:, sl], k[:, sl], v[:, sl]
        s = lax.dot_general(qh, kh, (((1,), (1,)), ((), ())),
                            preferred_element_type=jnp.float32)    # (S, S)
        s = s - jnp.max(s, axis=-1, keepdims=True)
        p = jnp.exp(s)
        p = p * pl.reciprocal(jnp.sum(p, axis=-1, keepdims=True), approx=True)
        outs.append(jnp.dot(p, vh, preferred_element_type=jnp.float32))
    attn = jnp.concatenate(outs, axis=-1)                          # (S, D) lane-dense

    # fused output projection + residual add
    w_o = wo_ref[...]
    out = jnp.dot(attn.astype(w_o.dtype), w_o,
                  preferred_element_type=jnp.float32)
    out = out + bo_ref[...].astype(jnp.float32) + x
    o_ref[0] = out.astype(o_ref.dtype)
    # TODO(synk): additive padding-mask input (Encoder demo passes mask=None).
    # TODO(synk): training-mode dropout via pltpu.prng_seed + stateful_bernoulli.


def ffn_block_kernel(x_ref, g_ref, b_ref, w1_ref, b1_ref, w2_ref, b2_ref,
                     o_ref, h_scratch, acc_scratch, *, eps, inv_nm1):
    """Row tile x d_ff tile: x + W2( relu( W1( LN(x) ) ) ) with f32 accumulator."""
    kf = pl.program_id(1)
    nf = pl.num_programs(1)

    @pl.when(kf == 0)
    def _():
        x = x_ref[...].astype(jnp.float32)
        h = _layernorm_f32(x, g_ref[...].astype(jnp.float32),
                           b_ref[...].astype(jnp.float32), eps, inv_nm1)
        h_scratch[...] = h.astype(h_scratch.dtype)   # LN computed once per row tile
        acc_scratch[...] = jnp.zeros_like(acc_scratch)

    w1 = w1_ref[...]
    hid = jnp.dot(h_scratch[...], w1, preferred_element_type=jnp.float32)
    hid = jnp.maximum(hid + b1_ref[...].astype(jnp.float32), 0.0)
    w2 = w2_ref[...]
    acc_scratch[...] += jnp.dot(hid.astype(w2.dtype), w2,
                                preferred_element_type=jnp.float32)

    @pl.when(kf == nf - 1)
    def _():
        out = (acc_scratch[...] + b2_ref[...].astype(jnp.float32)
               + x_ref[...].astype(jnp.float32))                   # fused residual
        o_ref[...] = out.astype(o_ref.dtype)


def layernorm_kernel(x_ref, g_ref, b_ref, o_ref, *, eps, inv_nm1):
    x = x_ref[...].astype(jnp.float32)
    y = _layernorm_f32(x, g_ref[...].astype(jnp.float32),
                       b_ref[...].astype(jnp.float32), eps, inv_nm1)
    o_ref[...] = y.astype(o_ref.dtype)


# ---------------------------------------------------------------------------
# wrappers
# ---------------------------------------------------------------------------
def attention_block(x, g, b, w_qkv, b_qkv, w_o, b_o, n_heads, *, eps=1e-6):
    B, S, D = x.shape
    dk = D // n_heads
    kern = functools.partial(attn_block_kernel, n_heads=n_heads, eps=eps,
                             inv_nm1=1.0 / (D - 1), scale=1.0 / math.sqrt(dk))
    itemsize = jnp.dtype(x.dtype).itemsize
    cost = pl.CostEstimate(
        flops=int(B * (2 * S * D * 3 * D + 4 * S * S * D + 2 * S * D * D)),
        transcendentals=int(B * n_heads * S * S),
        bytes_accessed=int((2 * B * S * D + w_qkv.size + w_o.size) * itemsize),
    )
    return pl.pallas_call(
        kern,
        out_shape=jax.ShapeDtypeStruct((B, S, D), x.dtype),
        grid_spec=pltpu.PrefetchScalarGridSpec(
            num_scalar_prefetch=0,
            grid=(B,),
            in_specs=[
                pl.BlockSpec((1, S, D), lambda i: (i, 0, 0)),
                _const_spec((1, D)),
                _const_spec((1, D)),
                _const_spec((D, 3 * D)),
                _const_spec((1, 3 * D)),
                _const_spec((D, D)),
                _const_spec((1, D)),
            ],
            out_specs=pl.BlockSpec((1, S, D), lambda i: (i, 0, 0)),
        ),
        compiler_params=_compiler_params(("parallel",)),
        cost_estimate=cost,
    )(x, g.reshape(1, D), b.reshape(1, D), w_qkv, b_qkv.reshape(1, 3 * D),
      w_o, b_o.reshape(1, D))


def ffn_block(x, g, b, w1, b1, w2, b2, *, eps=1e-6, row_tile=512, dff_tile=2048):
    B, S, D = x.shape
    d_ff = w1.shape[1]
    M = B * S
    x2 = x.reshape(M, D)
    tm = _pick_row_tile(M, row_tile)
    Mp = _round_up(M, tm)
    xp = _pad_rows(x2, Mp)
    tf = _pick_dff_tile(d_ff, dff_tile)
    itemsize = jnp.dtype(x.dtype).itemsize
    kern = functools.partial(ffn_block_kernel, eps=eps, inv_nm1=1.0 / (D - 1))
    cost = pl.CostEstimate(
        flops=int(4 * Mp * D * d_ff),
        transcendentals=0,
        bytes_accessed=int((2 * Mp * D + w1.size + w2.size) * itemsize),
    )
    out = pl.pallas_call(
        kern,
        out_shape=jax.ShapeDtypeStruct((Mp, D), x.dtype),
        grid_spec=pltpu.PrefetchScalarGridSpec(
            num_scalar_prefetch=0,
            grid=(Mp // tm, d_ff // tf),
            in_specs=[
                pl.BlockSpec((tm, D), lambda i, k: (i, 0)),
                _const_spec((1, D)),
                _const_spec((1, D)),
                pl.BlockSpec((D, tf), lambda i, k: (0, k)),
                pl.BlockSpec((1, tf), lambda i, k: (0, k)),
                pl.BlockSpec((tf, D), lambda i, k: (k, 0)),
                _const_spec((1, D)),
            ],
            out_specs=pl.BlockSpec((tm, D), lambda i, k: (i, 0)),
            scratch_shapes=[pltpu.VMEM((tm, D), w1.dtype),
                            pltpu.VMEM((tm, D), jnp.float32)],
        ),
        compiler_params=_compiler_params(("parallel", "arbitrary")),
        cost_estimate=cost,
    )(xp, g.reshape(1, D), b.reshape(1, D), w1, b1.reshape(1, d_ff),
      w2, b2.reshape(1, D))
    if Mp != M:
        out = out[:M]
    return out.reshape(B, S, D)


def layer_norm(x, g, b, *, eps=1e-6, row_tile=512):
    B, S, D = x.shape
    M = B * S
    x2 = x.reshape(M, D)
    tm = _pick_row_tile(M, row_tile)
    Mp = _round_up(M, tm)
    xp = _pad_rows(x2, Mp)
    kern = functools.partial(layernorm_kernel, eps=eps, inv_nm1=1.0 / (D - 1))
    cost = pl.CostEstimate(
        flops=int(8 * Mp * D),
        transcendentals=int(Mp),
        bytes_accessed=int(2 * Mp * D * jnp.dtype(x.dtype).itemsize),
    )
    out = pl.pallas_call(
        kern,
        out_shape=jax.ShapeDtypeStruct((Mp, D), x.dtype),
        grid_spec=pltpu.PrefetchScalarGridSpec(
            num_scalar_prefetch=0,
            grid=(Mp // tm,),
            in_specs=[
                pl.BlockSpec((tm, D), lambda i: (i, 0)),
                _const_spec((1, D)),
                _const_spec((1, D)),
            ],
            out_specs=pl.BlockSpec((tm, D), lambda i: (i, 0)),
        ),
        compiler_params=_compiler_params(("parallel",)),
        cost_estimate=cost,
    )(xp, g.reshape(1, D), b.reshape(1, D))
    if Mp != M:
        out = out[:M]
    return out.reshape(B, S, D)


def encoder_forward(x, params, n_heads):
    """Encoder.forward in eval mode (dropouts identity), mask=None.

    Two fused pallas_calls per layer + one final LayerNorm call.
    """
    for lp in params["layers"]:
        x = attention_block(x, lp["ln1_g"], lp["ln1_b"],
                            lp["w_qkv"], lp["b_qkv"], lp["w_o"], lp["b_o"],
                            n_heads)
        x = ffn_block(x, lp["ln2_g"], lp["ln2_b"],
                      lp["w1"], lp["b1"], lp["w2"], lp["b2"])
    return layer_norm(x, params["out_g"], params["out_b"])


# ---------------------------------------------------------------------------
# params + pure-JAX reference
# ---------------------------------------------------------------------------
def init_encoder_params(key, n_layers, d_model, d_ff, dtype=jnp.float32):
    """Deterministic init mimicking torch.nn.Linear defaults; weights stored
    pre-transposed as (in_dim, out_dim)."""
    def linear_init(k, fan_in, fan_out):
        kw, kb = jax.random.split(k)
        bound = 1.0 / math.sqrt(fan_in)
        w = jax.random.uniform(kw, (fan_in, fan_out), jnp.float32, -bound, bound)
        b = jax.random.uniform(kb, (fan_out,), jnp.float32, -bound, bound)
        return w.astype(dtype), b.astype(dtype)

    layers = []
    for _ in range(n_layers):
        key, k1, k2, k3, k4 = jax.random.split(key, 5)
        w_qkv, b_qkv = linear_init(k1, d_model, 3 * d_model)
        w_o, b_o = linear_init(k2, d_model, d_model)
        w1, b1 = linear_init(k3, d_model, d_ff)
        w2, b2 = linear_init(k4, d_ff, d_model)
        layers.append(dict(
            w_qkv=w_qkv, b_qkv=b_qkv, w_o=w_o, b_o=b_o,
            w1=w1, b1=b1, w2=w2, b2=b2,
            ln1_g=jnp.ones((d_model,), dtype), ln1_b=jnp.zeros((d_model,), dtype),
            ln2_g=jnp.ones((d_model,), dtype), ln2_b=jnp.zeros((d_model,), dtype),
        ))
    return dict(layers=layers,
                out_g=jnp.ones((d_model,), dtype),
                out_b=jnp.zeros((d_model,), dtype))


def _ref_layer_norm(x, g, b, eps=1e-6):
    mean = x.mean(-1, keepdims=True)
    var = jnp.sum((x - mean) ** 2, axis=-1, keepdims=True) / (x.shape[-1] - 1)
    return g * (x - mean) / (jnp.sqrt(var) + eps) + b


def _ref_self_attention(x, lp, n_heads):
    B, S, D = x.shape
    dk = D // n_heads
    qkv = (x @ lp["w_qkv"] + lp["b_qkv"]).reshape(B, S, 3, n_heads, dk)
    q, k, v = (jnp.transpose(qkv[:, :, i], (0, 2, 1, 3)) for i in range(3))
    s = jnp.einsum("bhqd,bhkd->bhqk", q, k) / math.sqrt(dk)
    p = jax.nn.softmax(s, axis=-1)
    o = jnp.einsum("bhqk,bhkd->bhqd", p, v)
    o = jnp.transpose(o, (0, 2, 1, 3)).reshape(B, S, D)
    return o @ lp["w_o"] + lp["b_o"]


def _ref_encoder(x, params, n_heads):
    for lp in params["layers"]:
        x = x + _ref_self_attention(
            _ref_layer_norm(x, lp["ln1_g"], lp["ln1_b"]), lp, n_heads)
        h = _ref_layer_norm(x, lp["ln2_g"], lp["ln2_b"])
        x = x + (jnp.maximum(h @ lp["w1"] + lp["b1"], 0.0) @ lp["w2"] + lp["b2"])
    return _ref_layer_norm(x, params["out_g"], params["out_b"])


# ---------------------------------------------------------------------------
# demo
# ---------------------------------------------------------------------------
if __name__ == "__main__":
    batch, seq, d_model, d_ff, n_heads, n_layers = 2, 8, 128, 512, 4, 2

    key = jax.random.PRNGKey(0)
    kx, kp = jax.random.split(key)
    x = jax.random.normal(kx, (batch, seq, d_model), jnp.float32)
    params = init_encoder_params(kp, n_layers, d_model, d_ff)

    enc = jax.jit(encoder_forward, static_argnums=(2,))
    out = jax.block_until_ready(enc(x, params, n_heads))
    ref = _ref_encoder(x, params, n_heads)
    assert out.shape == (batch, seq, d_model)
    max_err = float(jnp.max(jnp.abs(out - ref)))
    assert max_err < 2e-3, max_err

    # bf16 smoke run: same kernels, bf16 operands with f32 MXU accumulation.
    xb = x.astype(jnp.bfloat16)
    pb = jax.tree_util.tree_map(lambda a: a.astype(jnp.bfloat16), params)
    outb = jax.block_until_ready(enc(xb, pb, n_heads))
    assert outb.shape == (batch, seq, d_model)
    assert bool(jnp.all(jnp.isfinite(outb.astype(jnp.float32))))

    print("KERNEL_OK")
</pallas_src>

<mosaic_0001>
module attributes {stable_mosaic.version = 11 : i64} {
  func.func @attn_block_kernel(%arg0: i32, %arg1: memref<1x8x128xf32, #tpu.memory_space<vmem>>, %arg2: memref<1x128xf32, #tpu.memory_space<vmem>>, %arg3: memref<1x128xf32, #tpu.memory_space<vmem>>, %arg4: memref<128x384xf32, #tpu.memory_space<vmem>>, %arg5: memref<1x384xf32, #tpu.memory_space<vmem>>, %arg6: memref<128x128xf32, #tpu.memory_space<vmem>>, %arg7: memref<1x128xf32, #tpu.memory_space<vmem>>, %arg8: memref<1x8x128xf32, #tpu.memory_space<vmem>>) attributes {dimension_semantics = [#tpu.dimension_semantics<parallel>], iteration_bounds = array<i64: 2>, scalar_prefetch = 0 : i64, scratch_operands = 0 : i64, tpu.core_type = #tpu.core_type<tc>, window_params = [{transform_indices = @transform_0, window_bounds = array<i64: 1, 8, 128>}, {pipeline_mode = #tpu.pipeline_mode<synchronous>, transform_indices = @transform_1, window_bounds = array<i64: 1, 128>}, {pipeline_mode = #tpu.pipeline_mode<synchronous>, transform_indices = @transform_2, window_bounds = array<i64: 1, 128>}, {pipeline_mode = #tpu.pipeline_mode<synchronous>, transform_indices = @transform_3, window_bounds = array<i64: 128, 384>}, {pipeline_mode = #tpu.pipeline_mode<synchronous>, transform_indices = @transform_4, window_bounds = array<i64: 1, 384>}, {pipeline_mode = #tpu.pipeline_mode<synchronous>, transform_indices = @transform_5, window_bounds = array<i64: 128, 128>}, {pipeline_mode = #tpu.pipeline_mode<synchronous>, transform_indices = @transform_6, window_bounds = array<i64: 1, 128>}, {transform_indices = @transform_7, window_bounds = array<i64: 1, 8, 128>}]} {
    %c0 = arith.constant 0 : index
    %c0_0 = arith.constant 0 : index
    %c0_1 = arith.constant 0 : index
    %0 = vector.load %arg1[%c0, %c0_0, %c0_1] : memref<1x8x128xf32, #tpu.memory_space<vmem>>, vector<1x8x128xf32>
    %1 = vector.shape_cast %0 : vector<1x8x128xf32> to vector<8x128xf32>
    %c0_2 = arith.constant 0 : index
    %c0_3 = arith.constant 0 : index
    %2 = vector.load %arg2[%c0_2, %c0_3] : memref<1x128xf32, #tpu.memory_space<vmem>>, vector<1x128xf32>
    %c0_4 = arith.constant 0 : index
    %c0_5 = arith.constant 0 : index
    %3 = vector.load %arg3[%c0_4, %c0_5] : memref<1x128xf32, #tpu.memory_space<vmem>>, vector<1x128xf32>
    %cst = arith.constant dense<0.000000e+00> : vector<8xf32>
    %4 = vector.multi_reduction <add>, %1, %cst [1] : vector<8x128xf32> to vector<8xf32>
    %5 = vector.shape_cast %4 : vector<8xf32> to vector<8x1xf32>
    %cst_6 = arith.constant 1.280000e+02 : f32
    %6 = vector.broadcast %cst_6 : f32 to vector<8x1xf32>
    %7 = arith.divf %5, %6 : vector<8x1xf32>
    %8 = vector.broadcast %7 : vector<8x1xf32> to vector<8x128xf32>
    %9 = arith.subf %1, %8 : vector<8x128xf32>
    %10 = arith.mulf %9, %9 : vector<8x128xf32>
    %cst_7 = arith.constant dense<0.000000e+00> : vector<8xf32>
    %11 = vector.multi_reduction <add>, %10, %cst_7 [1] : vector<8x128xf32> to vector<8xf32>
    %12 = vector.shape_cast %11 : vector<8xf32> to vector<8x1xf32>
    %cst_8 = arith.constant 0.00787401571 : f32
    %13 = vector.broadcast %cst_8 : f32 to vector<8x1xf32>
    %14 = arith.mulf %12, %13 : vector<8x1xf32>
    %15 = math.sqrt %14 : vector<8x1xf32>
    %16 = vector.broadcast %2 : vector<1x128xf32> to vector<8x128xf32>
    %17 = arith.mulf %16, %9 : vector<8x128xf32>
    %cst_9 = arith.constant 9.99999997E-7 : f32
    %18 = vector.broadcast %cst_9 : f32 to vector<8x1xf32>
    %19 = arith.addf %15, %18 : vector<8x1xf32>
    %20 = vector.broadcast %19 : vector<8x1xf32> to vector<8x128xf32>
    %21 = arith.divf %17, %20 : vector<8x128xf32>
    %22 = vector.broadcast %3 : vector<1x128xf32> to vector<8x128xf32>
    %23 = arith.addf %21, %22 : vector<8x128xf32>
    %c0_10 = arith.constant 0 : index
    %c0_11 = arith.constant 0 : index
    %24 = vector.load %arg4[%c0_10, %c0_11] : memref<128x384xf32, #tpu.memory_space<vmem>>, vector<128x384xf32>
    %cst_12 = arith.constant dense<0.000000e+00> : vector<8x384xf32>
    %25 = tpu.matmul %23, %24, %cst_12 {dimension_numbers = #tpu.dot_dimension_numbers<[1], [0], [0], [1], [0, 0, 1, 1], [], []>} : vector<8x128xf32>, vector<128x384xf32>, vector<8x384xf32> -> vector<8x384xf32>
    %c0_13 = arith.constant 0 : index
    %c0_14 = arith.constant 0 : index
    %26 = vector.load %arg5[%c0_13, %c0_14] : memref<1x384xf32, #tpu.memory_space<vmem>>, vector<1x384xf32>
    %27 = vector.broadcast %26 : vector<1x384xf32> to vector<8x384xf32>
    %28 = arith.addf %25, %27 : vector<8x384xf32>
    %29 = vector.extract_strided_slice %28 {offsets = [0, 0], sizes = [8, 128], strides = [1, 1]} : vector<8x384xf32> to vector<8x128xf32>
    %cst_15 = arith.constant 0.176776692 : f32
    %30 = vector.broadcast %cst_15 : f32 to vector<8x128xf32>
    %31 = arith.mulf %29, %30 : vector<8x128xf32>
    %32 = vector.extract_strided_slice %28 {offsets = [0, 128], sizes = [8, 128], strides = [1, 1]} : vector<8x384xf32> to vector<8x128xf32>
    %33 = vector.extract_strided_slice %28 {offsets = [0, 256], sizes = [8, 128], strides = [1, 1]} : vector<8x384xf32> to vector<8x128xf32>
    %34 = vector.extract_strided_slice %31 {offsets = [0, 0], sizes = [8, 32], strides = [1, 1]} : vector<8x128xf32> to vector<8x32xf32>
    %35 = vector.extract_strided_slice %32 {offsets = [0, 0], sizes = [8, 32], strides = [1, 1]} : vector<8x128xf32> to vector<8x32xf32>
    %36 = vector.extract_strided_slice %33 {offsets = [0, 0], sizes = [8, 32], strides = [1, 1]} : vector<8x128xf32> to vector<8x32xf32>
    %cst_16 = arith.constant dense<0.000000e+00> : vector<8x8xf32>
    %37 = tpu.matmul %34, %35, %cst_16 {dimension_numbers = #tpu.dot_dimension_numbers<[1], [1], [0], [0], [0, 0, 1, 0], [], []>} : vector<8x32xf32>, vector<8x32xf32>, vector<8x8xf32> -> vector<8x8xf32>
    %cst_17 = arith.constant dense<0xFF800000> : vector<8xf32>
    %38 = vector.multi_reduction <maximumf>, %37, %cst_17 [1] : vector<8x8xf32> to vector<8xf32>
    %39 = vector.shape_cast %38 : vector<8xf32> to vector<8x1xf32>
    %40 = vector.broadcast %39 : vector<8x1xf32> to vector<8x8xf32>
    %41 = arith.subf %37, %40 : vector<8x8xf32>
    %42 = math.exp %41 : vector<8x8xf32>
    %cst_18 = arith.constant dense<0.000000e+00> : vector<8xf32>
    %43 = vector.multi_reduction <add>, %42, %cst_18 [1] : vector<8x8xf32> to vector<8xf32>
    %44 = vector.shape_cast %43 : vector<8xf32> to vector<8x1xf32>
    %45 = tpu.reciprocal %44 {approx = true} : vector<8x1xf32> -> vector<8x1xf32>
    %46 = vector.broadcast %45 : vector<8x1xf32> to vector<8x8xf32>
    %47 = arith.mulf %42, %46 : vector<8x8xf32>
    %cst_19 = arith.constant dense<0.000000e+00> : vector<8x32xf32>
    %48 = tpu.matmul %47, %36, %cst_19 {dimension_numbers = #tpu.dot_dimension_numbers<[1], [0], [0], [1], [0, 0, 1, 1], [], []>} : vector<8x8xf32>, vector<8x32xf32>, vector<8x32xf32> -> vector<8x32xf32>
    %49 = vector.extract_strided_slice %31 {offsets = [0, 32], sizes = [8, 32], strides = [1, 1]} : vector<8x128xf32> to vector<8x32xf32>
    %50 = vector.extract_strided_slice %32 {offsets = [0, 32], sizes = [8, 32], strides = [1, 1]} : vector<8x128xf32> to vector<8x32xf32>
    %51 = vector.extract_strided_slice %33 {offsets = [0, 32], sizes = [8, 32], strides = [1, 1]} : vector<8x128xf32> to vector<8x32xf32>
    %cst_20 = arith.constant dense<0.000000e+00> : vector<8x8xf32>
    %52 = tpu.matmul %49, %50, %cst_20 {dimension_numbers = #tpu.dot_dimension_numbers<[1], [1], [0], [0], [0, 0, 1, 0], [], []>} : vector<8x32xf32>, vector<8x32xf32>, vector<8x8xf32> -> vector<8x8xf32>
    %cst_21 = arith.constant dense<0xFF800000> : vector<8xf32>
    %53 = vector.multi_reduction <maximumf>, %52, %cst_21 [1] : vector<8x8xf32> to vector<8xf32>
    %54 = vector.shape_cast %53 : vector<8xf32> to vector<8x1xf32>
    %55 = vector.broadcast %54 : vector<8x1xf32> to vector<8x8xf32>
    %56 = arith.subf %52, %55 : vector<8x8xf32>
    %57 = math.exp %56 : vector<8x8xf32>
    %cst_22 = arith.constant dense<0.000000e+00> : vector<8xf32>
    %58 = vector.multi_reduction <add>, %57, %cst_22 [1] : vector<8x8xf32> to vector<8xf32>
    %59 = vector.shape_cast %58 : vector<8xf32> to vector<8x1xf32>
    %60 = tpu.reciprocal %59 {approx = true} : vector<8x1xf32> -> vector<8x1xf32>
    %61 = vector.broadcast %60 : vector<8x1xf32> to vector<8x8xf32>
    %62 = arith.mulf %57, %61 : vector<8x8xf32>
    %cst_23 = arith.constant dense<0.000000e+00> : vector<8x32xf32>
    %63 = tpu.matmul %62, %51, %cst_23 {dimension_numbers = #tpu.dot_dimension_numbers<[1], [0], [0], [1], [0, 0, 1, 1], [], []>} : vector<8x8xf32>, vector<8x32xf32>, vector<8x32xf32> -> vector<8x32xf32>
    %64 = vector.extract_strided_slice %31 {offsets = [0, 64], sizes = [8, 32], strides = [1, 1]} : vector<8x128xf32> to vector<8x32xf32>
    %65 = vector.extract_strided_slice %32 {offsets = [0, 64], sizes = [8, 32], strides = [1, 1]} : vector<8x128xf32> to vector<8x32xf32>
    %66 = vector.extract_strided_slice %33 {offsets = [0, 64], sizes = [8, 32], strides = [1, 1]} : vector<8x128xf32> to vector<8x32xf32>
    %cst_24 = arith.constant dense<0.000000e+00> : vector<8x8xf32>
    %67 = tpu.matmul %64, %65, %cst_24 {dimension_numbers = #tpu.dot_dimension_numbers<[1], [1], [0], [0], [0, 0, 1, 0], [], []>} : vector<8x32xf32>, vector<8x32xf32>, vector<8x8xf32> -> vector<8x8xf32>
    %cst_25 = arith.constant dense<0xFF800000> : vector<8xf32>
    %68 = vector.multi_reduction <maximumf>, %67, %cst_25 [1] : vector<8x8xf32> to vector<8xf32>
    %69 = vector.shape_cast %68 : vector<8xf32> to vector<8x1xf32>
    %70 = vector.broadcast %69 : vector<8x1xf32> to vector<8x8xf32>
    %71 = arith.subf %67, %70 : vector<8x8xf32>
    %72 = math.exp %71 : vector<8x8xf32>
    %cst_26 = arith.constant dense<0.000000e+00> : vector<8xf32>
    %73 = vector.multi_reduction <add>, %72, %cst_26 [1] : vector<8x8xf32> to vector<8xf32>
    %74 = vector.shape_cast %73 : vector<8xf32> to vector<8x1xf32>
    %75 = tpu.reciprocal %74 {approx = true} : vector<8x1xf32> -> vector<8x1xf32>
    %76 = vector.broadcast %75 : vector<8x1xf32> to vector<8x8xf32>
    %77 = arith.mulf %72, %76 : vector<8x8xf32>
    %cst_27 = arith.constant dense<0.000000e+00> : vector<8x32xf32>
    %78 = tpu.matmul %77, %66, %cst_27 {dimension_numbers = #tpu.dot_dimension_numbers<[1], [0], [0], [1], [0, 0, 1, 1], [], []>} : vector<8x8xf32>, vector<8x32xf32>, vector<8x32xf32> -> vector<8x32xf32>
    %79 = vector.extract_strided_slice %31 {offsets = [0, 96], sizes = [8, 32], strides = [1, 1]} : vector<8x128xf32> to vector<8x32xf32>
    %80 = vector.extract_strided_slice %32 {offsets = [0, 96], sizes = [8, 32], strides = [1, 1]} : vector<8x128xf32> to vector<8x32xf32>
    %81 = vector.extract_strided_slice %33 {offsets = [0, 96], sizes = [8, 32], strides = [1, 1]} : vector<8x128xf32> to vector<8x32xf32>
    %cst_28 = arith.constant dense<0.000000e+00> : vector<8x8xf32>
    %82 = tpu.matmul %79, %80, %cst_28 {dimension_numbers = #tpu.dot_dimension_numbers<[1], [1], [0], [0], [0, 0, 1, 0], [], []>} : vector<8x32xf32>, vector<8x32xf32>, vector<8x8xf32> -> vector<8x8xf32>
    %cst_29 = arith.constant dense<0xFF800000> : vector<8xf32>
    %83 = vector.multi_reduction <maximumf>, %82, %cst_29 [1] : vector<8x8xf32> to vector<8xf32>
    %84 = vector.shape_cast %83 : vector<8xf32> to vector<8x1xf32>
    %85 = vector.broadcast %84 : vector<8x1xf32> to vector<8x8xf32>
    %86 = arith.subf %82, %85 : vector<8x8xf32>
    %87 = math.exp %86 : vector<8x8xf32>
    %cst_30 = arith.constant dense<0.000000e+00> : vector<8xf32>
    %88 = vector.multi_reduction <add>, %87, %cst_30 [1] : vector<8x8xf32> to vector<8xf32>
    %89 = vector.shape_cast %88 : vector<8xf32> to vector<8x1xf32>
    %90 = tpu.reciprocal %89 {approx = true} : vector<8x1xf32> -> vector<8x1xf32>
    %91 = vector.broadcast %90 : vector<8x1xf32> to vector<8x8xf32>
    %92 = arith.mulf %87, %91 : vector<8x8xf32>
    %cst_31 = arith.constant dense<0.000000e+00> : vector<8x32xf32>
    %93 = tpu.matmul %92, %81, %cst_31 {dimension_numbers = #tpu.dot_dimension_numbers<[1], [0], [0], [1], [0, 0, 1, 1], [], []>} : vector<8x8xf32>, vector<8x32xf32>, vector<8x32xf32> -> vector<8x32xf32>
    %94 = tpu.concatenate %48, %63, %78, %93 in 1 : vector<8x32xf32>, vector<8x32xf32>, vector<8x32xf32>, vector<8x32xf32> -> vector<8x128xf32>
    %c0_32 = arith.constant 0 : index
    %c0_33 = arith.constant 0 : index
    %95 = vector.load %arg6[%c0_32, %c0_33] : memref<128x128xf32, #tpu.memory_space<vmem>>, vector<128x128xf32>
    %cst_34 = arith.constant dense<0.000000e+00> : vector<8x128xf32>
    %96 = tpu.matmul %94, %95, %cst_34 {dimension_numbers = #tpu.dot_dimension_numbers<[1], [0], [0], [1], [0, 0, 1, 1], [], []>} : vector<8x128xf32>, vector<128x128xf32>, vector<8x128xf32> -> vector<8x128xf32>
    %c0_35 = arith.constant 0 : index
    %c0_36 = arith.constant 0 : index
    %97 = vector.load %arg7[%c0_35, %c0_36] : memref<1x128xf32, #tpu.memory_space<vmem>>, vector<1x128xf32>
    %98 = vector.broadcast %97 : vector<1x128xf32> to vector<8x128xf32>
    %99 = arith.addf %96, %98 : vector<8x128xf32>
    %100 = arith.addf %99, %1 : vector<8x128xf32>
    %c0_37 = arith.constant 0 : index
    %c0_38 = arith.constant 0 : index
    %c0_39 = arith.constant 0 : index
    %101 = vector.load %arg8[%c0_37, %c0_38, %c0_39] : memref<1x8x128xf32, #tpu.memory_space<vmem>>, vector<1x8x128xf32>
    %102 = vector.shape_cast %101 : vector<1x8x128xf32> to vector<8x128xf32>
    %103 = vector.shape_cast %100 : vector<8x128xf32> to vector<1x8x128xf32>
    tpu.vector_store %arg8[%c0_37, %c0_38, %c0_39], %103 {strides = array<i32>} : memref<1x8x128xf32, #tpu.memory_space<vmem>>, vector<1x8x128xf32>,
    return
  }
  func.func @transform_0(%arg0: i32) -> (i32, i32, i32) {
    %c0_i32 = arith.constant 0 : i32
    %c0_i32_0 = arith.constant 0 : i32
    %c0_i32_1 = arith.constant 0 : i32
    return %arg0, %c0_i32, %c0_i32_0 : i32, i32, i32
  }
  func.func @transform_1(%arg0: i32) -> (i32, i32) {
    %c0_i32 = arith.constant 0 : i32
    %c0_i32_0 = arith.constant 0 : i32
    %c0_i32_1 = arith.constant 0 : i32
    return %c0_i32, %c0_i32_0 : i32, i32
  }
  func.func @transform_2(%arg0: i32) -> (i32, i32) {
    %c0_i32 = arith.constant 0 : i32
    %c0_i32_0 = arith.constant 0 : i32
    %c0_i32_1 = arith.constant 0 : i32
    return %c0_i32, %c0_i32_0 : i32, i32
  }
  func.func @transform_3(%arg0: i32) -> (i32, i32) {
    %c0_i32 = arith.constant 0 : i32
    %c0_i32_0 = arith.constant 0 : i32
    %c0_i32_1 = arith.constant 0 : i32
    return %c0_i32, %c0_i32_0 : i32, i32
  }
  func.func @transform_4(%arg0: i32) -> (i32, i32) {
    %c0_i32 = arith.constant 0 : i32
    %c0_i32_0 = arith.constant 0 : i32
    %c0_i32_1 = arith.constant 0 : i32
    return %c0_i32, %c0_i32_0 : i32, i32
  }
  func.func @transform_5(%arg0: i32) -> (i32, i32) {
    %c0_i32 = arith.constant 0 : i32
    %c0_i32_0 = arith.constant 0 : i32
    %c0_i32_1 = arith.constant 0 : i32
    return %c0_i32, %c0_i32_0 : i32, i32
  }
  func.func @transform_6(%arg0: i32) -> (i32, i32) {
    %c0_i32 = arith.constant 0 : i32
    %c0_i32_0 = arith.constant 0 : i32
    %c0_i32_1 = arith.constant 0 : i32
    return %c0_i32, %c0_i32_0 : i32, i32
  }
  func.func @transform_7(%arg0: i32) -> (i32, i32, i32) {
    %c0_i32 = arith.constant 0 : i32
    %c0_i32_0 = arith.constant 0 : i32
    %c0_i32_1 = arith.constant 0 : i32
    return %arg0, %c0_i32, %c0_i32_0 : i32, i32, i32
  }
}

module attributes {stable_mosaic.version = 11 : i64} {
  func.func @ffn_block_kernel(%arg0: i32, %arg1: i32, %arg2: memref<8x128xf32, #tpu.memory_space<vmem>>, %arg3: memref<1x128xf32, #tpu.memory_space<vmem>>, %arg4: memref<1x128xf32, #tpu.memory_space<vmem>>, %arg5: memref<128x512xf32, #tpu.memory_space<vmem>>, %arg6: memref<1x512xf32, #tpu.memory_space<vmem>>, %arg7: memref<512x128xf32, #tpu.memory_space<vmem>>, %arg8: memref<1x128xf32, #tpu.memory_space<vmem>>, %arg9: memref<8x128xf32, #tpu.memory_space<vmem>>, %arg10: memref<8x128xf32, #tpu.memory_space<vmem>>, %arg11: memref<8x128xf32, #tpu.memory_space<vmem>>) attributes {dimension_semantics = [#tpu.dimension_semantics<parallel>, #tpu.dimension_semantics<arbitrary>], iteration_bounds = array<i64: 2, 1>, scalar_prefetch = 0 : i64, scratch_operands = 2 : i64, tpu.core_type = #tpu.core_type<tc>, window_params = [{transform_indices = @transform_0, window_bounds = array<i64: 8, 128>}, {pipeline_mode = #tpu.pipeline_mode<synchronous>, transform_indices = @transform_1, window_bounds = array<i64: 1, 128>}, {pipeline_mode = #tpu.pipeline_mode<synchronous>, transform_indices = @transform_2, window_bounds = array<i64: 1, 128>}, {transform_indices = @transform_3, window_bounds = array<i64: 128, 512>}, {transform_indices = @transform_4, window_bounds = array<i64: 1, 512>}, {transform_indices = @transform_5, window_bounds = array<i64: 512, 128>}, {pipeline_mode = #tpu.pipeline_mode<synchronous>, transform_indices = @transform_6, window_bounds = array<i64: 1, 128>}, {transform_indices = @transform_7, window_bounds = array<i64: 8, 128>}]} {
    %c0_i32 = arith.constant 0 : i32
    %0 = arith.cmpi eq, %arg1, %c0_i32 : i32
    %1 = arith.extui %0 : i1 to i32
    %c0_i32_0 = arith.constant 0 : i32
    %2 = arith.cmpi ne, %1, %c0_i32_0 : i32
    scf.if %2 {
      %c0_16 = arith.constant 0 : index
      %c0_17 = arith.constant 0 : index
      %19 = vector.load %arg2[%c0_16, %c0_17] : memref<8x128xf32, #tpu.memory_space<vmem>>, vector<8x128xf32>
      %c0_18 = arith.constant 0 : index
      %c0_19 = arith.constant 0 : index
      %20 = vector.load %arg3[%c0_18, %c0_19] : memref<1x128xf32, #tpu.memory_space<vmem>>, vector<1x128xf32>
      %c0_20 = arith.constant 0 : index
      %c0_21 = arith.constant 0 : index
      %21 = vector.load %arg4[%c0_20, %c0_21] : memref<1x128xf32, #tpu.memory_space<vmem>>, vector<1x128xf32>
      %cst_22 = arith.constant dense<0.000000e+00> : vector<8xf32>
      %22 = vector.multi_reduction <add>, %19, %cst_22 [1] : vector<8x128xf32> to vector<8xf32>
      %23 = vector.shape_cast %22 : vector<8xf32> to vector<8x1xf32>
      %cst_23 = arith.constant 1.280000e+02 : f32
      %24 = vector.broadcast %cst_23 : f32 to vector<8x1xf32>
      %25 = arith.divf %23, %24 : vector<8x1xf32>
      %26 = vector.broadcast %25 : vector<8x1xf32> to vector<8x128xf32>
      %27 = arith.subf %19, %26 : vector<8x128xf32>
      %28 = arith.mulf %27, %27 : vector<8x128xf32>
      %cst_24 = arith.constant dense<0.000000e+00> : vector<8xf32>
      %29 = vector.multi_reduction <add>, %28, %cst_24 [1] : vector<8x128xf32> to vector<8xf32>
      %30 = vector.shape_cast %29 : vector<8xf32> to vector<8x1xf32>
      %cst_25 = arith.constant 0.00787401571 : f32
      %31 = vector.broadcast %cst_25 : f32 to vector<8x1xf32>
      %32 = arith.mulf %30, %31 : vector<8x1xf32>
      %33 = math.sqrt %32 : vector<8x1xf32>
      %34 = vector.broadcast %20 : vector<1x128xf32> to vector<8x128xf32>
      %35 = arith.mulf %34, %27 : vector<8x128xf32>
      %cst_26 = arith.constant 9.99999997E-7 : f32
      %36 = vector.broadcast %cst_26 : f32 to vector<8x1xf32>
      %37 = arith.addf %33, %36 : vector<8x1xf32>
      %38 = vector.broadcast %37 : vector<8x1xf32> to vector<8x128xf32>
      %39 = arith.divf %35, %38 : vector<8x128xf32>
      %40 = vector.broadcast %21 : vector<1x128xf32> to vector<8x128xf32>
      %41 = arith.addf %39, %40 : vector<8x128xf32>
      %c0_27 = arith.constant 0 : index
      %c0_28 = arith.constant 0 : index
      %42 = vector.load %arg10[%c0_27, %c0_28] : memref<8x128xf32, #tpu.memory_space<vmem>>, vector<8x128xf32>
      tpu.vector_store %arg10[%c0_27, %c0_28], %41 {strides = array<i32>} : memref<8x128xf32, #tpu.memory_space<vmem>>, vector<8x128xf32>,
      %cst_29 = arith.constant 0.000000e+00 : f32
      %43 = vector.broadcast %cst_29 : f32 to vector<8x128xf32>
      %c0_30 = arith.constant 0 : index
      %c0_31 = arith.constant 0 : index
      %44 = vector.load %arg11[%c0_30, %c0_31] : memref<8x128xf32, #tpu.memory_space<vmem>>, vector<8x128xf32>
      tpu.vector_store %arg11[%c0_30, %c0_31], %43 {strides = array<i32>} : memref<8x128xf32, #tpu.memory_space<vmem>>, vector<8x128xf32>,
    } else {
    }
    %c0 = arith.constant 0 : index
    %c0_1 = arith.constant 0 : index
    %3 = vector.load %arg5[%c0, %c0_1] : memref<128x512xf32, #tpu.memory_space<vmem>>, vector<128x512xf32>
    %c0_2 = arith.constant 0 : index
    %c0_3 = arith.constant 0 : index
    %4 = vector.load %arg10[%c0_2, %c0_3] : memref<8x128xf32, #tpu.memory_space<vmem>>, vector<8x128xf32>
    %cst = arith.constant dense<0.000000e+00> : vector<8x512xf32>
    %5 = tpu.matmul %4, %3, %cst {dimension_numbers = #tpu.dot_dimension_numbers<[1], [0], [0], [1], [0, 0, 1, 1], [], []>} : vector<8x128xf32>, vector<128x512xf32>, vector<8x512xf32> -> vector<8x512xf32>
    %c0_4 = arith.constant 0 : index
    %c0_5 = arith.constant 0 : index
    %6 = vector.load %arg6[%c0_4, %c0_5] : memref<1x512xf32, #tpu.memory_space<vmem>>, vector<1x512xf32>
    %7 = vector.broadcast %6 : vector<1x512xf32> to vector<8x512xf32>
    %8 = arith.addf %5, %7 : vector<8x512xf32>
    %cst_6 = arith.constant 0.000000e+00 : f32
    %9 = vector.broadcast %cst_6 : f32 to vector<8x512xf32>
    %10 = arith.maximumf %8, %9 : vector<8x512xf32>
    %c0_7 = arith.constant 0 : index
    %c0_8 = arith.constant 0 : index
    %11 = vector.load %arg7[%c0_7, %c0_8] : memref<512x128xf32, #tpu.memory_space<vmem>>, vector<512x128xf32>
    %c0_9 = arith.constant 0 : index
    %c0_10 = arith.constant 0 : index
    %12 = vector.load %arg11[%c0_9, %c0_10] : memref<8x128xf32, #tpu.memory_space<vmem>>, vector<8x128xf32>
    %cst_11 = arith.constant dense<0.000000e+00> : vector<8x128xf32>
    %13 = tpu.matmul %10, %11, %cst_11 {dimension_numbers = #tpu.dot_dimension_numbers<[1], [0], [0], [1], [0, 0, 1, 1], [], []>} : vector<8x512xf32>, vector<512x128xf32>, vector<8x128xf32> -> vector<8x128xf32>
    %14 = arith.addf %12, %13 : vector<8x128xf32>
    %c0_12 = arith.constant 0 : index
    %c0_13 = arith.constant 0 : index
    %15 = vector.load %arg11[%c0_12, %c0_13] : memref<8x128xf32, #tpu.memory_space<vmem>>, vector<8x128xf32>
    tpu.vector_store %arg11[%c0_12, %c0_13], %14 {strides = array<i32>} : memref<8x128xf32, #tpu.memory_space<vmem>>, vector<8x128xf32>,
    %c0_i32_14 = arith.constant 0 : i32
    %16 = arith.cmpi eq, %arg1, %c0_i32_14 : i32
    %17 = arith.extui %16 : i1 to i32
    %c0_i32_15 = arith.constant 0 : i32
    %18 = arith.cmpi ne, %17, %c0_i32_15 : i32
    scf.if %18 {
      %c0_16 = arith.constant 0 : index
      %c0_17 = arith.constant 0 : index
      %19 = vector.load %arg11[%c0_16, %c0_17] : memref<8x128xf32, #tpu.memory_space<vmem>>, vector<8x128xf32>
      %c0_18 = arith.constant 0 : index
      %c0_19 = arith.constant 0 : index
      %20 = vector.load %arg8[%c0_18, %c0_19] : memref<1x128xf32, #tpu.memory_space<vmem>>, vector<1x128xf32>
      %21 = vector.broadcast %20 : vector<1x128xf32> to vector<8x128xf32>
      %22 = arith.addf %19, %21 : vector<8x128xf32>
      %c0_20 = arith.constant 0 : index
      %c0_21 = arith.constant 0 : index
      %23 = vector.load %arg2[%c0_20, %c0_21] : memref<8x128xf32, #tpu.memory_space<vmem>>, vector<8x128xf32>
      %24 = arith.addf %22, %23 : vector<8x128xf32>
      %c0_22 = arith.constant 0 : index
      %c0_23 = arith.constant 0 : index
      %25 = vector.load %arg9[%c0_22, %c0_23] : memref<8x128xf32, #tpu.memory_space<vmem>>, vector<8x128xf32>
      tpu.vector_store %arg9[%c0_22, %c0_23], %24 {strides = array<i32>} : memref<8x128xf32, #tpu.memory_space<vmem>>, vector<8x128xf32>,
    } else {
    }
    return
  }
  func.func @transform_0(%arg0: i32, %arg1: i32) -> (i32, i32) {
    %c0_i32 = arith.constant 0 : i32
    %c0_i32_0 = arith.constant 0 : i32
    return %arg0, %c0_i32 : i32, i32
  }
  func.func @transform_1(%arg0: i32, %arg1: i32) -> (i32, i32) {
    %c0_i32 = arith.constant 0 : i32
    %c0_i32_0 = arith.constant 0 : i32
    %c0_i32_1 = arith.constant 0 : i32
    return %c0_i32, %c0_i32_0 : i32, i32
  }
  func.func @transform_2(%arg0: i32, %arg1: i32) -> (i32, i32) {
    %c0_i32 = arith.constant 0 : i32
    %c0_i32_0 = arith.constant 0 : i32
    %c0_i32_1 = arith.constant 0 : i32
    return %c0_i32, %c0_i32_0 : i32, i32
  }
  func.func @transform_3(%arg0: i32, %arg1: i32) -> (i32, i32) {
    %c0_i32 = arith.constant 0 : i32
    %c0_i32_0 = arith.constant 0 : i32
    return %c0_i32, %arg1 : i32, i32
  }
  func.func @transform_4(%arg0: i32, %arg1: i32) -> (i32, i32) {
    %c0_i32 = arith.constant 0 : i32
    %c0_i32_0 = arith.constant 0 : i32
    return %c0_i32, %arg1 : i32, i32
  }
  func.func @transform_5(%arg0: i32, %arg1: i32) -> (i32, i32) {
    %c0_i32 = arith.constant 0 : i32
    %c0_i32_0 = arith.constant 0 : i32
    return %arg1, %c0_i32 : i32, i32
  }
  func.func @transform_6(%arg0: i32, %arg1: i32) -> (i32, i32) {
    %c0_i32 = arith.constant 0 : i32
    %c0_i32_0 = arith.constant 0 : i32
    %c0_i32_1 = arith.constant 0 : i32
    return %c0_i32, %c0_i32_0 : i32, i32
  }
  func.func @transform_7(%arg0: i32, %arg1: i32) -> (i32, i32) {
    %c0_i32 = arith.constant 0 : i32
    %c0_i32_0 = arith.constant 0 : i32
    return %arg0, %c0_i32 : i32, i32
  }
}

module attributes {stable_mosaic.version = 11 : i64} {
  func.func @ffn_block_kernel(%arg0: i32, %arg1: i32, %arg2: memref<8x128xf32, #tpu.memory_space<vmem>>, %arg3: memref<1x128xf32, #tpu.memory_space<vmem>>, %arg4: memref<1x128xf32, #tpu.memory_space<vmem>>, %arg5: memref<128x512xf32, #tpu.memory_space<vmem>>, %arg6: memref<1x512xf32, #tpu.memory_space<vmem>>, %arg7: memref<512x128xf32, #tpu.memory_space<vmem>>, %arg8: memref<1x128xf32, #tpu.memory_space<vmem>>, %arg9: memref<8x128xf32, #tpu.memory_space<vmem>>, %arg10: memref<8x128xf32, #tpu.memory_space<vmem>>, %arg11: memref<8x128xf32, #tpu.memory_space<vmem>>) attributes {dimension_semantics = [#tpu.dimension_semantics<parallel>, #tpu.dimension_semantics<arbitrary>], iteration_bounds = array<i64: 2, 1>, scalar_prefetch = 0 : i64, scratch_operands = 2 : i64, tpu.core_type = #tpu.core_type<tc>, window_params = [{transform_indices = @transform_0, window_bounds = array<i64: 8, 128>}, {pipeline_mode = #tpu.pipeline_mode<synchronous>, transform_indices = @transform_1, window_bounds = array<i64: 1, 128>}, {pipeline_mode = #tpu.pipeline_mode<synchronous>, transform_indices = @transform_2, window_bounds = array<i64: 1, 128>}, {transform_indices = @transform_3, window_bounds = array<i64: 128, 512>}, {transform_indices = @transform_4, window_bounds = array<i64: 1, 512>}, {transform_indices = @transform_5, window_bounds = array<i64: 512, 128>}, {pipeline_mode = #tpu.pipeline_mode<synchronous>, transform_indices = @transform_6, window_bounds = array<i64: 1, 128>}, {transform_indices = @transform_7, window_bounds = array<i64: 8, 128>}]} {
    %c0_i32 = arith.constant 0 : i32
    %0 = arith.cmpi eq, %arg1, %c0_i32 : i32
    %1 = arith.extui %0 : i1 to i32
    %c0_i32_0 = arith.constant 0 : i32
    %2 = arith.cmpi ne, %1, %c0_i32_0 : i32
    scf.if %2 {
      %c0_16 = arith.constant 0 : index
      %c0_17 = arith.constant 0 : index
      %19 = vector.load %arg2[%c0_16, %c0_17] : memref<8x128xf32, #tpu.memory_space<vmem>>, vector<8x128xf32>
      %c0_18 = arith.constant 0 : index
      %c0_19 = arith.constant 0 : index
      %20 = vector.load %arg3[%c0_18, %c0_19] : memref<1x128xf32, #tpu.memory_space<vmem>>, vector<1x128xf32>
      %c0_20 = arith.constant 0 : index
      %c0_21 = arith.constant 0 : index
      %21 = vector.load %arg4[%c0_20, %c0_21] : memref<1x128xf32, #tpu.memory_space<vmem>>, vector<1x128xf32>
      %cst_22 = arith.constant dense<0.000000e+00> : vector<8xf32>
      %22 = vector.multi_reduction <add>, %19, %cst_22 [1] : vector<8x128xf32> to vector<8xf32>
      %23 = vector.shape_cast %22 : vector<8xf32> to vector<8x1xf32>
      %cst_23 = arith.constant 1.280000e+02 : f32
      %24 = vector.broadcast %cst_23 : f32 to vector<8x1xf32>
      %25 = arith.divf %23, %24 : vector<8x1xf32>
      %26 = vector.broadcast %25 : vector<8x1xf32> to vector<8x128xf32>
      %27 = arith.subf %19, %26 : vector<8x128xf32>
      %28 = arith.mulf %27, %27 : vector<8x128xf32>
      %cst_24 = arith.constant dense<0.000000e+00> : vector<8xf32>
      %29 = vector.multi_reduction <add>, %28, %cst_24 [1] : vector<8x128xf32> to vector<8xf32>
      %30 = vector.shape_cast %29 : vector<8xf32> to vector<8x1xf32>
      %cst_25 = arith.constant 0.00787401571 : f32
      %31 = vector.broadcast %cst_25 : f32 to vector<8x1xf32>
      %32 = arith.mulf %30, %31 : vector<8x1xf32>
      %33 = math.sqrt %32 : vector<8x1xf32>
      %34 = vector.broadcast %20 : vector<1x128xf32> to vector<8x128xf32>
      %35 = arith.mulf %34, %27 : vector<8x128xf32>
      %cst_26 = arith.constant 9.99999997E-7 : f32
      %36 = vector.broadcast %cst_26 : f32 to vector<8x1xf32>
      %37 = arith.addf %33, %36 : vector<8x1xf32>
      %38 = vector.broadcast %37 : vector<8x1xf32> to vector<8x128xf32>
      %39 = arith.divf %35, %38 : vector<8x128xf32>
      %40 = vector.broadcast %21 : vector<1x128xf32> to vector<8x128xf32>
      %41 = arith.addf %39, %40 : vector<8x128xf32>
      %c0_27 = arith.constant 0 : index
      %c0_28 = arith.constant 0 : index
      %42 = vector.load %arg10[%c0_27, %c0_28] : memref<8x128xf32, #tpu.memory_space<vmem>>, vector<8x128xf32>
      tpu.vector_store %arg10[%c0_27, %c0_28], %41 {strides = array<i32>} : memref<8x128xf32, #tpu.memory_space<vmem>>, vector<8x128xf32>,
      %cst_29 = arith.constant 0.000000e+00 : f32
      %43 = vector.broadcast %cst_29 : f32 to vector<8x128xf32>
      %c0_30 = arith.constant 0 : index
      %c0_31 = arith.constant 0 : index
      %44 = vector.load %arg11[%c0_30, %c0_31] : memref<8x128xf32, #tpu.memory_space<vmem>>, vector<8x128xf32>
      tpu.vector_store %arg11[%c0_30, %c0_31], %43 {strides = array<i32>} : memref<8x128xf32, #tpu.memory_space<vmem>>, vector<8x128xf32>,
    } else {
    }
    %c0 = arith.constant 0 : index
    %c0_1 = arith.constant 0 : index
    %3 = vector.load %arg5[%c0, %c0_1] : memref<128x512xf32, #tpu.memory_space<vmem>>, vector<128x512xf32>
    %c0_2 = arith.constant 0 : index
    %c0_3 = arith.constant 0 : index
    %4 = vector.load %arg10[%c0_2, %c0_3] : memref<8x128xf32, #tpu.memory_space<vmem>>, vector<8x128xf32>
    %cst = arith.constant dense<0.000000e+00> : vector<8x512xf32>
    %5 = tpu.matmul %4, %3, %cst {dimension_numbers = #tpu.dot_dimension_numbers<[1], [0], [0], [1], [0, 0, 1, 1], [], []>} : vector<8x128xf32>, vector<128x512xf32>, vector<8x512xf32> -> vector<8x512xf32>
    %c0_4 = arith.constant 0 : index
    %c0_5 = arith.constant 0 : index
    %6 = vector.load %arg6[%c0_4, %c0_5] : memref<1x512xf32, #tpu.memory_space<vmem>>, vector<1x512xf32>
    %7 = vector.broadcast %6 : vector<1x512xf32> to vector<8x512xf32>
    %8 = arith.addf %5, %7 : vector<8x512xf32>
    %cst_6 = arith.constant 0.000000e+00 : f32
    %9 = vector.broadcast %cst_6 : f32 to vector<8x512xf32>
    %10 = arith.maximumf %8, %9 : vector<8x512xf32>
    %c0_7 = arith.constant 0 : index
    %c0_8 = arith.constant 0 : index
    %11 = vector.load %arg7[%c0_7, %c0_8] : memref<512x128xf32, #tpu.memory_space<vmem>>, vector<512x128xf32>
    %c0_9 = arith.constant 0 : index
    %c0_10 = arith.constant 0 : index
    %12 = vector.load %arg11[%c0_9, %c0_10] : memref<8x128xf32, #tpu.memory_space<vmem>>, vector<8x128xf32>
    %cst_11 = arith.constant dense<0.000000e+00> : vector<8x128xf32>
    %13 = tpu.matmul %10, %11, %cst_11 {dimension_numbers = #tpu.dot_dimension_numbers<[1], [0], [0], [1], [0, 0, 1, 1], [], []>} : vector<8x512xf32>, vector<512x128xf32>, vector<8x128xf32> -> vector<8x128xf32>
    %14 = arith.addf %12, %13 : vector<8x128xf32>
    %c0_12 = arith.constant 0 : index
    %c0_13 = arith.constant 0 : index
    %15 = vector.load %arg11[%c0_12, %c0_13] : memref<8x128xf32, #tpu.memory_space<vmem>>, vector<8x128xf32>
    tpu.vector_store %arg11[%c0_12, %c0_13], %14 {strides = array<i32>} : memref<8x128xf32, #tpu.memory_space<vmem>>, vector<8x128xf32>,
    %c0_i32_14 = arith.constant 0 : i32
    %16 = arith.cmpi eq, %arg1, %c0_i32_14 : i32
    %17 = arith.extui %16 : i1 to i32
    %c0_i32_15 = arith.constant 0 : i32
    %18 = arith.cmpi ne, %17, %c0_i32_15 : i32
    scf.if %18 {
      %c0_16 = arith.constant 0 : index
      %c0_17 = arith.constant 0 : index
      %19 = vector.load %arg11[%c0_16, %c0_17] : memref<8x128xf32, #tpu.memory_space<vmem>>, vector<8x128xf32>
      %c0_18 = arith.constant 0 : index
      %c0_19 = arith.constant 0 : index
      %20 = vector.load %arg8[%c0_18, %c0_19] : memref<1x128xf32, #tpu.memory_space<vmem>>, vector<1x128xf32>
      %21 = vector.broadcast %20 : vector<1x128xf32> to vector<8x128xf32>
      %22 = arith.addf %19, %21 : vector<8x128xf32>
      %c0_20 = arith.constant 0 : index
      %c0_21 = arith.constant 0 : index
      %23 = vector.load %arg2[%c0_20, %c0_21] : memref<8x128xf32, #tpu.memory_space<vmem>>, vector<8x128xf32>
      %24 = arith.addf %22, %23 : vector<8x128xf32>
      %c0_22 = arith.constant 0 : index
      %c0_23 = arith.constant 0 : index
      %25 = vector.load %arg9[%c0_22, %c0_23] : memref<8x128xf32, #tpu.memory_space<vmem>>, vector<8x128xf32>
      tpu.vector_store %arg9[%c0_22, %c0_23], %24 {strides = array<i32>} : memref<8x128xf32, #tpu.memory_space<vmem>>, vector<8x128xf32>,
    } else {
    }
    return
  }
  func.func @transform_0(%arg0: i32, %arg1: i32) -> (i32, i32) {
    %c0_i32 = arith.constant 0 : i32
    %c0_i32_0 = arith.constant 0 : i32
    return %arg0, %c0_i32 : i32, i32
  }
  func.func @transform_1(%arg0: i32, %arg1: i32) -> (i32, i32) {
    %c0_i32 = arith.constant 0 : i32
    %c0_i32_0 = arith.constant 0 : i32
    %c0_i32_1 = arith.constant 0 : i32
    return %c0_i32, %c0_i32_0 : i32, i32
  }
  func.func @transform_2(%arg0: i32, %arg1: i32) -> (i32, i32) {
    %c0_i32 = arith.constant 0 : i32
    %c0_i32_0 = arith.constant 0 : i32
    %c0_i32_1 = arith.constant 0 : i32
    return %c0_i32, %c0_i32_0 : i32, i32
  }
  func.func @transform_3(%arg0: i32, %arg1: i32) -> (i32, i32) {
    %c0_i32 = arith.constant 0 : i32
    %c0_i32_0 = arith.constant 0 : i32
    return %c0_i32, %arg1 : i32, i32
  }
  func.func @transform_4(%arg0: i32, %arg1: i32) -> (i32, i32) {
    %c0_i32 = arith.constant 0 : i32
    %c0_i32_0 = arith.constant 0 : i32
    return %c0_i32, %arg1 : i32, i32
  }
  func.func @transform_5(%arg0: i32, %arg1: i32) -> (i32, i32) {
    %c0_i32 = arith.constant 0 : i32
    %c0_i32_0 = arith.constant 0 : i32
    return %arg1, %c0_i32 : i32, i32
  }
  func.func @transform_6(%arg0: i32, %arg1: i32) -> (i32, i32) {
    %c0_i32 = arith.constant 0 : i32
    %c0_i32_0 = arith.constant 0 : i32
    %c0_i32_1 = arith.constant 0 : i32
    return %c0_i32, %c0_i32_0 : i32, i32
  }
  func.func @transform_7(%arg0: i32, %arg1: i32) -> (i32, i32) {
    %c0_i32 = arith.constant 0 : i32
    %c0_i32_0 = arith.constant 0 : i32
    return %arg0, %c0_i32 : i32, i32
  }
}

module attributes {stable_mosaic.version = 11 : i64} {
  func.func @attn_block_kernel(%arg0: i32, %arg1: memref<1x8x128xf32, #tpu.memory_space<vmem>>, %arg2: memref<1x128xf32, #tpu.memory_space<vmem>>, %arg3: memref<1x128xf32, #tpu.memory_space<vmem>>, %arg4: memref<128x384xf32, #tpu.memory_space<vmem>>, %arg5: memref<1x384xf32, #tpu.memory_space<vmem>>, %arg6: memref<128x128xf32, #tpu.memory_space<vmem>>, %arg7: memref<1x128xf32, #tpu.memory_space<vmem>>, %arg8: memref<1x8x128xf32, #tpu.memory_space<vmem>>) attributes {dimension_semantics = [#tpu.dimension_semantics<parallel>], iteration_bounds = array<i64: 2>, scalar_prefetch = 0 : i64, scratch_operands = 0 : i64, tpu.core_type = #tpu.core_type<tc>, window_params = [{transform_indices = @transform_0, window_bounds = array<i64: 1, 8, 128>}, {pipeline_mode = #tpu.pipeline_mode<synchronous>, transform_indices = @transform_1, window_bounds = array<i64: 1, 128>}, {pipeline_mode = #tpu.pipeline_mode<synchronous>, transform_indices = @transform_2, window_bounds = array<i64: 1, 128>}, {pipeline_mode = #tpu.pipeline_mode<synchronous>, transform_indices = @transform_3, window_bounds = array<i64: 128, 384>}, {pipeline_mode = #tpu.pipeline_mode<synchronous>, transform_indices = @transform_4, window_bounds = array<i64: 1, 384>}, {pipeline_mode = #tpu.pipeline_mode<synchronous>, transform_indices = @transform_5, window_bounds = array<i64: 128, 128>}, {pipeline_mode = #tpu.pipeline_mode<synchronous>, transform_indices = @transform_6, window_bounds = array<i64: 1, 128>}, {transform_indices = @transform_7, window_bounds = array<i64: 1, 8, 128>}]} {
    %c0 = arith.constant 0 : index
    %c0_0 = arith.constant 0 : index
    %c0_1 = arith.constant 0 : index
    %0 = vector.load %arg1[%c0, %c0_0, %c0_1] : memref<1x8x128xf32, #tpu.memory_space<vmem>>, vector<1x8x128xf32>
    %1 = vector.shape_cast %0 : vector<1x8x128xf32> to vector<8x128xf32>
    %c0_2 = arith.constant 0 : index
    %c0_3 = arith.constant 0 : index
    %2 = vector.load %arg2[%c0_2, %c0_3] : memref<1x128xf32, #tpu.memory_space<vmem>>, vector<1x128xf32>
    %c0_4 = arith.constant 0 : index
    %c0_5 = arith.constant 0 : index
    %3 = vector.load %arg3[%c0_4, %c0_5] : memref<1x128xf32, #tpu.memory_space<vmem>>, vector<1x128xf32>
    %cst = arith.constant dense<0.000000e+00> : vector<8xf32>
    %4 = vector.multi_reduction <add>, %1, %cst [1] : vector<8x128xf32> to vector<8xf32>
    %5 = vector.shape_cast %4 : vector<8xf32> to vector<8x1xf32>
    %cst_6 = arith.constant 1.280000e+02 : f32
    %6 = vector.broadcast %cst_6 : f32 to vector<8x1xf32>
    %7 = arith.divf %5, %6 : vector<8x1xf32>
    %8 = vector.broadcast %7 : vector<8x1xf32> to vector<8x128xf32>
    %9 = arith.subf %1, %8 : vector<8x128xf32>
    %10 = arith.mulf %9, %9 : vector<8x128xf32>
    %cst_7 = arith.constant dense<0.000000e+00> : vector<8xf32>
    %11 = vector.multi_reduction <add>, %10, %cst_7 [1] : vector<8x128xf32> to vector<8xf32>
    %12 = vector.shape_cast %11 : vector<8xf32> to vector<8x1xf32>
    %cst_8 = arith.constant 0.00787401571 : f32
    %13 = vector.broadcast %cst_8 : f32 to vector<8x1xf32>
    %14 = arith.mulf %12, %13 : vector<8x1xf32>
    %15 = math.sqrt %14 : vector<8x1xf32>
    %16 = vector.broadcast %2 : vector<1x128xf32> to vector<8x128xf32>
    %17 = arith.mulf %16, %9 : vector<8x128xf32>
    %cst_9 = arith.constant 9.99999997E-7 : f32
    %18 = vector.broadcast %cst_9 : f32 to vector<8x1xf32>
    %19 = arith.addf %15, %18 : vector<8x1xf32>
    %20 = vector.broadcast %19 : vector<8x1xf32> to vector<8x128xf32>
    %21 = arith.divf %17, %20 : vector<8x128xf32>
    %22 = vector.broadcast %3 : vector<1x128xf32> to vector<8x128xf32>
    %23 = arith.addf %21, %22 : vector<8x128xf32>
    %c0_10 = arith.constant 0 : index
    %c0_11 = arith.constant 0 : index
    %24 = vector.load %arg4[%c0_10, %c0_11] : memref<128x384xf32, #tpu.memory_space<vmem>>, vector<128x384xf32>
    %cst_12 = arith.constant dense<0.000000e+00> : vector<8x384xf32>
    %25 = tpu.matmul %23, %24, %cst_12 {dimension_numbers = #tpu.dot_dimension_numbers<[1], [0], [0], [1], [0, 0, 1, 1], [], []>} : vector<8x128xf32>, vector<128x384xf32>, vector<8x384xf32> -> vector<8x384xf32>
    %c0_13 = arith.constant 0 : index
    %c0_14 = arith.constant 0 : index
    %26 = vector.load %arg5[%c0_13, %c0_14] : memref<1x384xf32, #tpu.memory_space<vmem>>, vector<1x384xf32>
    %27 = vector.broadcast %26 : vector<1x384xf32> to vector<8x384xf32>
    %28 = arith.addf %25, %27 : vector<8x384xf32>
    %29 = vector.extract_strided_slice %28 {offsets = [0, 0], sizes = [8, 128], strides = [1, 1]} : vector<8x384xf32> to vector<8x128xf32>
    %cst_15 = arith.constant 0.176776692 : f32
    %30 = vector.broadcast %cst_15 : f32 to vector<8x128xf32>
    %31 = arith.mulf %29, %30 : vector<8x128xf32>
    %32 = vector.extract_strided_slice %28 {offsets = [0, 128], sizes = [8, 128], strides = [1, 1]} : vector<8x384xf32> to vector<8x128xf32>
    %33 = vector.extract_strided_slice %28 {offsets = [0, 256], sizes = [8, 128], strides = [1, 1]} : vector<8x384xf32> to vector<8x128xf32>
    %34 = vector.extract_strided_slice %31 {offsets = [0, 0], sizes = [8, 32], strides = [1, 1]} : vector<8x128xf32> to vector<8x32xf32>
    %35 = vector.extract_strided_slice %32 {offsets = [0, 0], sizes = [8, 32], strides = [1, 1]} : vector<8x128xf32> to vector<8x32xf32>
    %36 = vector.extract_strided_slice %33 {offsets = [0, 0], sizes = [8, 32], strides = [1, 1]} : vector<8x128xf32> to vector<8x32xf32>
    %cst_16 = arith.constant dense<0.000000e+00> : vector<8x8xf32>
    %37 = tpu.matmul %34, %35, %cst_16 {dimension_numbers = #tpu.dot_dimension_numbers<[1], [1], [0], [0], [0, 0, 1, 0], [], []>} : vector<8x32xf32>, vector<8x32xf32>, vector<8x8xf32> -> vector<8x8xf32>
    %cst_17 = arith.constant dense<0xFF800000> : vector<8xf32>
    %38 = vector.multi_reduction <maximumf>, %37, %cst_17 [1] : vector<8x8xf32> to vector<8xf32>
    %39 = vector.shape_cast %38 : vector<8xf32> to vector<8x1xf32>
    %40 = vector.broadcast %39 : vector<8x1xf32> to vector<8x8xf32>
    %41 = arith.subf %37, %40 : vector<8x8xf32>
    %42 = math.exp %41 : vector<8x8xf32>
    %cst_18 = arith.constant dense<0.000000e+00> : vector<8xf32>
    %43 = vector.multi_reduction <add>, %42, %cst_18 [1] : vector<8x8xf32> to vector<8xf32>
    %44 = vector.shape_cast %43 : vector<8xf32> to vector<8x1xf32>
    %45 = tpu.reciprocal %44 {approx = true} : vector<8x1xf32> -> vector<8x1xf32>
    %46 = vector.broadcast %45 : vector<8x1xf32> to vector<8x8xf32>
    %47 = arith.mulf %42, %46 : vector<8x8xf32>
    %cst_19 = arith.constant dense<0.000000e+00> : vector<8x32xf32>
    %48 = tpu.matmul %47, %36, %cst_19 {dimension_numbers = #tpu.dot_dimension_numbers<[1], [0], [0], [1], [0, 0, 1, 1], [], []>} : vector<8x8xf32>, vector<8x32xf32>, vector<8x32xf32> -> vector<8x32xf32>
    %49 = vector.extract_strided_slice %31 {offsets = [0, 32], sizes = [8, 32], strides = [1, 1]} : vector<8x128xf32> to vector<8x32xf32>
    %50 = vector.extract_strided_slice %32 {offsets = [0, 32], sizes = [8, 32], strides = [1, 1]} : vector<8x128xf32> to vector<8x32xf32>
    %51 = vector.extract_strided_slice %33 {offsets = [0, 32], sizes = [8, 32], strides = [1, 1]} : vector<8x128xf32> to vector<8x32xf32>
    %cst_20 = arith.constant dense<0.000000e+00> : vector<8x8xf32>
    %52 = tpu.matmul %49, %50, %cst_20 {dimension_numbers = #tpu.dot_dimension_numbers<[1], [1], [0], [0], [0, 0, 1, 0], [], []>} : vector<8x32xf32>, vector<8x32xf32>, vector<8x8xf32> -> vector<8x8xf32>
    %cst_21 = arith.constant dense<0xFF800000> : vector<8xf32>
    %53 = vector.multi_reduction <maximumf>, %52, %cst_21 [1] : vector<8x8xf32> to vector<8xf32>
    %54 = vector.shape_cast %53 : vector<8xf32> to vector<8x1xf32>
    %55 = vector.broadcast %54 : vector<8x1xf32> to vector<8x8xf32>
    %56 = arith.subf %52, %55 : vector<8x8xf32>
    %57 = math.exp %56 : vector<8x8xf32>
    %cst_22 = arith.constant dense<0.000000e+00> : vector<8xf32>
    %58 = vector.multi_reduction <add>, %57, %cst_22 [1] : vector<8x8xf32> to vector<8xf32>
    %59 = vector.shape_cast %58 : vector<8xf32> to vector<8x1xf32>
    %60 = tpu.reciprocal %59 {approx = true} : vector<8x1xf32> -> vector<8x1xf32>
    %61 = vector.broadcast %60 : vector<8x1xf32> to vector<8x8xf32>
    %62 = arith.mulf %57, %61 : vector<8x8xf32>
    %cst_23 = arith.constant dense<0.000000e+00> : vector<8x32xf32>
    %63 = tpu.matmul %62, %51, %cst_23 {dimension_numbers = #tpu.dot_dimension_numbers<[1], [0], [0], [1], [0, 0, 1, 1], [], []>} : vector<8x8xf32>, vector<8x32xf32>, vector<8x32xf32> -> vector<8x32xf32>
    %64 = vector.extract_strided_slice %31 {offsets = [0, 64], sizes = [8, 32], strides = [1, 1]} : vector<8x128xf32> to vector<8x32xf32>
    %65 = vector.extract_strided_slice %32 {offsets = [0, 64], sizes = [8, 32], strides = [1, 1]} : vector<8x128xf32> to vector<8x32xf32>
    %66 = vector.extract_strided_slice %33 {offsets = [0, 64], sizes = [8, 32], strides = [1, 1]} : vector<8x128xf32> to vector<8x32xf32>
    %cst_24 = arith.constant dense<0.000000e+00> : vector<8x8xf32>
    %67 = tpu.matmul %64, %65, %cst_24 {dimension_numbers = #tpu.dot_dimension_numbers<[1], [1], [0], [0], [0, 0, 1, 0], [], []>} : vector<8x32xf32>, vector<8x32xf32>, vector<8x8xf32> -> vector<8x8xf32>
    %cst_25 = arith.constant dense<0xFF800000> : vector<8xf32>
    %68 = vector.multi_reduction <maximumf>, %67, %cst_25 [1] : vector<8x8xf32> to vector<8xf32>
    %69 = vector.shape_cast %68 : vector<8xf32> to vector<8x1xf32>
    %70 = vector.broadcast %69 : vector<8x1xf32> to vector<8x8xf32>
    %71 = arith.subf %67, %70 : vector<8x8xf32>
    %72 = math.exp %71 : vector<8x8xf32>
    %cst_26 = arith.constant dense<0.000000e+00> : vector<8xf32>
    %73 = vector.multi_reduction <add>, %72, %cst_26 [1] : vector<8x8xf32> to vector<8xf32>
    %74 = vector.shape_cast %73 : vector<8xf32> to vector<8x1xf32>
    %75 = tpu.reciprocal %74 {approx = true} : vector<8x1xf32> -> vector<8x1xf32>
    %76 = vector.broadcast %75 : vector<8x1xf32> to vector<8x8xf32>
    %77 = arith.mulf %72, %76 : vector<8x8xf32>
    %cst_27 = arith.constant dense<0.000000e+00> : vector<8x32xf32>
    %78 = tpu.matmul %77, %66, %cst_27 {dimension_numbers = #tpu.dot_dimension_numbers<[1], [0], [0], [1], [0, 0, 1, 1], [], []>} : vector<8x8xf32>, vector<8x32xf32>, vector<8x32xf32> -> vector<8x32xf32>
    %79 = vector.extract_strided_slice %31 {offsets = [0, 96], sizes = [8, 32], strides = [1, 1]} : vector<8x128xf32> to vector<8x32xf32>
    %80 = vector.extract_strided_slice %32 {offsets = [0, 96], sizes = [8, 32], strides = [1, 1]} : vector<8x128xf32> to vector<8x32xf32>
    %81 = vector.extract_strided_slice %33 {offsets = [0, 96], sizes = [8, 32], strides = [1, 1]} : vector<8x128xf32> to vector<8x32xf32>
    %cst_28 = arith.constant dense<0.000000e+00> : vector<8x8xf32>
    %82 = tpu.matmul %79, %80, %cst_28 {dimension_numbers = #tpu.dot_dimension_numbers<[1], [1], [0], [0], [0, 0, 1, 0], [], []>} : vector<8x32xf32>, vector<8x32xf32>, vector<8x8xf32> -> vector<8x8xf32>
    %cst_29 = arith.constant dense<0xFF800000> : vector<8xf32>
    %83 = vector.multi_reduction <maximumf>, %82, %cst_29 [1] : vector<8x8xf32> to vector<8xf32>
    %84 = vector.shape_cast %83 : vector<8xf32> to vector<8x1xf32>
    %85 = vector.broadcast %84 : vector<8x1xf32> to vector<8x8xf32>
    %86 = arith.subf %82, %85 : vector<8x8xf32>
    %87 = math.exp %86 : vector<8x8xf32>
    %cst_30 = arith.constant dense<0.000000e+00> : vector<8xf32>
    %88 = vector.multi_reduction <add>, %87, %cst_30 [1] : vector<8x8xf32> to vector<8xf32>
    %89 = vector.shape_cast %88 : vector<8xf32> to vector<8x1xf32>
    %90 = tpu.reciprocal %89 {approx = true} : vector<8x1xf32> -> vector<8x1xf32>
    %91 = vector.broadcast %90 : vector<8x1xf32> to vector<8x8xf32>
    %92 = arith.mulf %87, %91 : vector<8x8xf32>
    %cst_31 = arith.constant dense<0.000000e+00> : vector<8x32xf32>
    %93 = tpu.matmul %92, %81, %cst_31 {dimension_numbers = #tpu.dot_dimension_numbers<[1], [0], [0], [1], [0, 0, 1, 1], [], []>} : vector<8x8xf32>, vector<8x32xf32>, vector<8x32xf32> -> vector<8x32xf32>
    %94 = tpu.concatenate %48, %63, %78, %93 in 1 : vector<8x32xf32>, vector<8x32xf32>, vector<8x32xf32>, vector<8x32xf32> -> vector<8x128xf32>
    %c0_32 = arith.constant 0 : index
    %c0_33 = arith.constant 0 : index
    %95 = vector.load %arg6[%c0_32, %c0_33] : memref<128x128xf32, #tpu.memory_space<vmem>>, vector<128x128xf32>
    %cst_34 = arith.constant dense<0.000000e+00> : vector<8x128xf32>
    %96 = tpu.matmul %94, %95, %cst_34 {dimension_numbers = #tpu.dot_dimension_numbers<[1], [0], [0], [1], [0, 0, 1, 1], [], []>} : vector<8x128xf32>, vector<128x128xf32>, vector<8x128xf32> -> vector<8x128xf32>
    %c0_35 = arith.constant 0 : index
    %c0_36 = arith.constant 0 : index
    %97 = vector.load %arg7[%c0_35, %c0_36] : memref<1x128xf32, #tpu.memory_space<vmem>>, vector<1x128xf32>
    %98 = vector.broadcast %97 : vector<1x128xf32> to vector<8x128xf32>
    %99 = arith.addf %96, %98 : vector<8x128xf32>
    %100 = arith.addf %99, %1 : vector<8x128xf32>
    %c0_37 = arith.constant 0 : index
    %c0_38 = arith.constant 0 : index
    %c0_39 = arith.constant 0 : index
    %101 = vector.load %arg8[%c0_37, %c0_38, %c0_39] : memref<1x8x128xf32, #tpu.memory_space<vmem>>, vector<1x8x128xf32>
    %102 = vector.shape_cast %101 : vector<1x8x128xf32> to vector<8x128xf32>
    %103 = vector.shape_cast %100 : vector<8x128xf32> to vector<1x8x128xf32>
    tpu.vector_store %arg8[%c0_37, %c0_38, %c0_39], %103 {strides = array<i32>} : memref<1x8x128xf32, #tpu.memory_space<vmem>>, vector<1x8x128xf32>,
    return
  }
  func.func @transform_0(%arg0: i32) -> (i32, i32, i32) {
    %c0_i32 = arith.constant 0 : i32
    %c0_i32_0 = arith.constant 0 : i32
    %c0_i32_1 = arith.constant 0 : i32
    return %arg0, %c0_i32, %c0_i32_0 : i32, i32, i32
  }
  func.func @transform_1(%arg0: i32) -> (i32, i32) {
    %c0_i32 = arith.constant 0 : i32
    %c0_i32_0 = arith.constant 0 : i32
    %c0_i32_1 = arith.constant 0 : i32
    return %c0_i32, %c0_i32_0 : i32, i32
  }
  func.func @transform_2(%arg0: i32) -> (i32, i32) {
    %c0_i32 = arith.constant 0 : i32
    %c0_i32_0 = arith.constant 0 : i32
    %c0_i32_1 = arith.constant 0 : i32
    return %c0_i32, %c0_i32_0 : i32, i32
  }
  func.func @transform_3(%arg0: i32) -> (i32, i32) {
    %c0_i32 = arith.constant 0 : i32
    %c0_i32_0 = arith.constant 0 : i32
    %c0_i32_1 = arith.constant 0 : i32
    return %c0_i32, %c0_i32_0 : i32, i32
  }
  func.func @transform_4(%arg0: i32) -> (i32, i32) {
    %c0_i32 = arith.constant 0 : i32
    %c0_i32_0 = arith.constant 0 : i32
    %c0_i32_1 = arith.constant 0 : i32
    return %c0_i32, %c0_i32_0 : i32, i32
  }
  func.func @transform_5(%arg0: i32) -> (i32, i32) {
    %c0_i32 = arith.constant 0 : i32
    %c0_i32_0 = arith.constant 0 : i32
    %c0_i32_1 = arith.constant 0 : i32
    return %c0_i32, %c0_i32_0 : i32, i32
  }
  func.func @transform_6(%arg0: i32) -> (i32, i32) {
    %c0_i32 = arith.constant 0 : i32
    %c0_i32_0 = arith.constant 0 : i32
    %c0_i32_1 = arith.constant 0 : i32
    return %c0_i32, %c0_i32_0 : i32, i32
  }
  func.func @transform_7(%arg0: i32) -> (i32, i32, i32) {
    %c0_i32 = arith.constant 0 : i32
    %c0_i32_0 = arith.constant 0 : i32
    %c0_i32_1 = arith.constant 0 : i32
    return %arg0, %c0_i32, %c0_i32_0 : i32, i32, i32
  }
}

module attributes {stable_mosaic.version = 11 : i64} {
  func.func @layernorm_kernel(%arg0: i32, %arg1: memref<8x128xf32, #tpu.memory_space<vmem>>, %arg2: memref<1x128xf32, #tpu.memory_space<vmem>>, %arg3: memref<1x128xf32, #tpu.memory_space<vmem>>, %arg4: memref<8x128xf32, #tpu.memory_space<vmem>>) attributes {dimension_semantics = [#tpu.dimension_semantics<parallel>], iteration_bounds = array<i64: 2>, scalar_prefetch = 0 : i64, scratch_operands = 0 : i64, tpu.core_type = #tpu.core_type<tc>, window_params = [{transform_indices = @transform_0, window_bounds = array<i64: 8, 128>}, {pipeline_mode = #tpu.pipeline_mode<synchronous>, transform_indices = @transform_1, window_bounds = array<i64: 1, 128>}, {pipeline_mode = #tpu.pipeline_mode<synchronous>, transform_indices = @transform_2, window_bounds = array<i64: 1, 128>}, {transform_indices = @transform_3, window_bounds = array<i64: 8, 128>}]} {
    %c0 = arith.constant 0 : index
    %c0_0 = arith.constant 0 : index
    %0 = vector.load %arg1[%c0, %c0_0] : memref<8x128xf32, #tpu.memory_space<vmem>>, vector<8x128xf32>
    %c0_1 = arith.constant 0 : index
    %c0_2 = arith.constant 0 : index
    %1 = vector.load %arg2[%c0_1, %c0_2] : memref<1x128xf32, #tpu.memory_space<vmem>>, vector<1x128xf32>
    %c0_3 = arith.constant 0 : index
    %c0_4 = arith.constant 0 : index
    %2 = vector.load %arg3[%c0_3, %c0_4] : memref<1x128xf32, #tpu.memory_space<vmem>>, vector<1x128xf32>
    %cst = arith.constant dense<0.000000e+00> : vector<8xf32>
    %3 = vector.multi_reduction <add>, %0, %cst [1] : vector<8x128xf32> to vector<8xf32>
    %4 = vector.shape_cast %3 : vector<8xf32> to vector<8x1xf32>
    %cst_5 = arith.constant 1.280000e+02 : f32
    %5 = vector.broadcast %cst_5 : f32 to vector<8x1xf32>
    %6 = arith.divf %4, %5 : vector<8x1xf32>
    %7 = vector.broadcast %6 : vector<8x1xf32> to vector<8x128xf32>
    %8 = arith.subf %0, %7 : vector<8x128xf32>
    %9 = arith.mulf %8, %8 : vector<8x128xf32>
    %cst_6 = arith.constant dense<0.000000e+00> : vector<8xf32>
    %10 = vector.multi_reduction <add>, %9, %cst_6 [1] : vector<8x128xf32> to vector<8xf32>
    %11 = vector.shape_cast %10 : vector<8xf32> to vector<8x1xf32>
    %cst_7 = arith.constant 0.00787401571 : f32
    %12 = vector.broadcast %cst_7 : f32 to vector<8x1xf32>
    %13 = arith.mulf %11, %12 : vector<8x1xf32>
    %14 = math.sqrt %13 : vector<8x1xf32>
    %15 = vector.broadcast %1 : vector<1x128xf32> to vector<8x128xf32>
    %16 = arith.mulf %15, %8 : vector<8x128xf32>
    %cst_8 = arith.constant 9.99999997E-7 : f32
    %17 = vector.broadcast %cst_8 : f32 to vector<8x1xf32>
    %18 = arith.addf %14, %17 : vector<8x1xf32>
    %19 = vector.broadcast %18 : vector<8x1xf32> to vector<8x128xf32>
    %20 = arith.divf %16, %19 : vector<8x128xf32>
    %21 = vector.broadcast %2 : vector<1x128xf32> to vector<8x128xf32>
    %22 = arith.addf %20, %21 : vector<8x128xf32>
    %c0_9 = arith.constant 0 : index
    %c0_10 = arith.constant 0 : index
    %23 = vector.load %arg4[%c0_9, %c0_10] : memref<8x128xf32, #tpu.memory_space<vmem>>, vector<8x128xf32>
    tpu.vector_store %arg4[%c0_9, %c0_10], %22 {strides = array<i32>} : memref<8x128xf32, #tpu.memory_space<vmem>>, vector<8x128xf32>,
    return
  }
  func.func @transform_0(%arg0: i32) -> (i32, i32) {
    %c0_i32 = arith.constant 0 : i32
    %c0_i32_0 = arith.constant 0 : i32
    return %arg0, %c0_i32 : i32, i32
  }
  func.func @transform_1(%arg0: i32) -> (i32, i32) {
    %c0_i32 = arith.constant 0 : i32
    %c0_i32_0 = arith.constant 0 : i32
    %c0_i32_1 = arith.constant 0 : i32
    return %c0_i32, %c0_i32_0 : i32, i32
  }
  func.func @transform_2(%arg0: i32) -> (i32, i32) {
    %c0_i32 = arith.constant 0 : i32
    %c0_i32_0 = arith.constant 0 : i32
    %c0_i32_1 = arith.constant 0 : i32
    return %c0_i32, %c0_i32_0 : i32, i32
  }
  func.func @transform_3(%arg0: i32) -> (i32, i32) {
    %c0_i32 = arith.constant 0 : i32
    %c0_i32_0 = arith.constant 0 : i32
    return %arg0, %c0_i32 : i32, i32
  }
}

</mosaic_0001>

<llo_original>
// kernel: encoder_forward.6
$region0: #{encoder_forward.6}
  #allocation0 [shape = 'u32[]', space=smem, size = 0x4, offset = 0x4, fixed_abs, tag = 'smem constant byte address 0x4 - core index']
  #allocation1 [shape = 'u32[72,128]{1,0:T(1,128)}', space=vmem, size = 0x9000, scoped, tag = 'internal scratch']
  #allocation2 [shape = 'f32[8,128]{1,0:T(8,128)}', space=vmem, size = 0x1000, scoped, tag = 'scratch operand']
  #allocation3 [shape = 'f32[8,128]{1,0:T(8,128)}', space=vmem, size = 0x1000, scoped, tag = 'scratch operand']
  %s0 = inlined_call_operand.vmem [shape: f32[16,128], index: 0, kind: input, shape index: {}]
  %s1 = inlined_call_operand.vmem [shape: f32[1,128], index: 1, kind: input, shape index: {}]
  %s2 = inlined_call_operand.vmem [shape: f32[1,128], index: 2, kind: input, shape index: {}]
  %s3 = inlined_call_operand.vmem [shape: f32[128,512], index: 3, kind: input, shape index: {}]
  %s4 = inlined_call_operand.vmem [shape: f32[1,512], index: 4, kind: input, shape index: {}]
  %s5 = inlined_call_operand.hbm [shape: f32[512,128], index: 5, kind: input, shape index: {}]
  %s6 = inlined_call_operand.vmem [shape: f32[1,128], index: 6, kind: input, shape index: {}]
  %s7 = inlined_call_operand.vmem [shape: f32[16,128], index: 7, kind: output, shape index: {}]
  %s8 = sld [smem:[#allocation0]]
  $region73: #{encoder_forward.6} parent=0
    _
  %s10 = ssub.s32 1, %s8
  %s11 = scalar_select 0, %s10, %s8
  $region1: #{encoder_forward.6} parent=0
    #allocation4 [shape = 'u8[262144]{0}', space=vmem, size = 0x40000, scoped, tag = 'input window, operand 5, single buffered']
    #allocation5 [shape = 's32[2]{0}', space=sflag, size = 0x8, scoped, tag = 'scoped memory for encoder_forward.6']
    %12 = vsyncpa [#allocation5], 0
    loop: start=0, step=1, limit=4
    $region2: #{encoder_forward.6} parent=1 // loop_pre_header
      _
    $region3: #{encoder_forward.6} parent=1 // loop_header
      %s14 = sphi 0, %s18
      %p15 = scmp.ge.s32.totalorder %s14, 4
      %s21 = sphi 0, %s33
      %s22 = sphi 0, %s29
      %s23 = sphi 0, %s21
      %s24 = sphi 0, %s22
      %s25 = sphi 0, %s23
      %s26 = sphi 0, %s24
      %s36 = sphi 0, %s38
      %s39 = sphi 0, %s36
      %s40 = sphi 0, %s39
      %s56 = sphi 0, %s40
      %s60 = sphi 0, %s60
      %s62 = sphi 0, %s60
      %s63 = sphi 0, %s62
      %s77 = sphi 0, %s63
      %s81 = sphi 0, %s81
      %s83 = sphi 0, %s81
      %s84 = sphi 0, %s83
      %s98 = sphi 0, %s84
      %s104 = sphi 0, %s106
      %s107 = sphi 0, %s104
      %s108 = sphi 0, %s107
      %s124 = sphi 0, %s108
      %s130 = sphi 0, %s132
      %s133 = sphi 0, %s130
      %s134 = sphi 0, %s133
      %s150 = sphi 0, %s134
      %s156 = sphi 0, %s158
      %s159 = sphi 0, %s156
      %s160 = sphi 0, %s159
      %s176 = sphi 0, %s160
      %s180 = sphi 0, %s180
      %s182 = sphi 0, %s180
      %s183 = sphi 0, %s182
      %s197 = sphi 0, %s183
      %s203 = sphi 0, %s205
      %s206 = sphi 0, %s203
      %s207 = sphi 0, %s206
      %s223 = sphi 0, %s207
    $region4: #{encoder_forward.6} parent=1 // loop_header_branch
      %17 = sbr.rel (%p15) target = $region8
    $region5: #{encoder_forward.6} parent=1 // loop_body
      %s19 = ssub.s32 %s14, 1
      %s20 = ssub.s32 %s14, 2
      %s27 = sadd.s32 1, %s22
      %p28 = scmp.ge.s32.totalorder %s27, 1
      %s29 = scalar_select %p28, 0, %s27
      %s30 = sadd.s32 1, %s21
      %s31 = scalar_select %p28, %s30, %s21
      %p32 = scmp.ge.s32.totalorder %s31, 2
      %s33 = scalar_select %p32, 0, %s31
      %s34 = ssub.s32 %s21, %s33
      %p35 = scmp.eq.s32.totalorder %s34, 0
      %s37 = sadd.s32 %s36, 1
      %s38 = scalar_select %p35, %s36, %s37
      %p41 = pneg %p35
      %p42 = scmp.eq.s32.totalorder %s14, 1
      %p43 = por %p41, %p42
      %p44 = scmp.ne.s32.totalorder %s36, %s39
      %p45 = scmp.eq.s32.totalorder %s14, 0
      %p46 = por %p44, %p45
      %p47 = scmp.ne.s32.totalorder %s36, %s39
      %p48 = scmp.eq.s32.totalorder %s19, 1
      %p49 = por %p47, %p48
      %p50 = scmp.ne.s32.totalorder %s39, %s40
      %p51 = scmp.eq.s32.totalorder %s19, 0
      %p52 = por %p50, %p51
      %p53 = scmp.ne.s32.totalorder %s39, %s40
      %p54 = scmp.eq.s32.totalorder %s20, 1
      %p55 = por %p53, %p54
      %p57 = scmp.ne.s32.totalorder %s40, %s56
      %p58 = scmp.eq.s32.totalorder %s20, 0
      %p59 = por %p57, %p58
      %s61 = sadd.s32 %s60, 1
      %p64 = scmp.eq.s32.totalorder %s14, 1
      %p65 = scmp.ne.s32.totalorder %s60, %s62
      %p66 = scmp.eq.s32.totalorder %s14, 0
      %p67 = por %p65, %p66
      %p68 = scmp.ne.s32.totalorder %s60, %s62
      %p69 = scmp.eq.s32.totalorder %s19, 1
      %p70 = por %p68, %p69
      %p71 = scmp.ne.s32.totalorder %s62, %s63
      %p72 = scmp.eq.s32.totalorder %s19, 0
      %p73 = por %p71, %p72
      %p74 = scmp.ne.s32.totalorder %s62, %s63
      %p75 = scmp.eq.s32.totalorder %s20, 1
      %p76 = por %p74, %p75
      %p78 = scmp.ne.s32.totalorder %s63, %s77
      %p79 = scmp.eq.s32.totalorder %s20, 0
      %p80 = por %p78, %p79
      %s82 = sadd.s32 %s81, 1
      %p85 = scmp.eq.s32.totalorder %s14, 1
      %p86 = scmp.ne.s32.totalorder %s81, %s83
      %p87 = scmp.eq.s32.totalorder %s14, 0
      %p88 = por %p86, %p87
      %p89 = scmp.ne.s32.totalorder %s81, %s83
      %p90 = scmp.eq.s32.totalorder %s19, 1
      %p91 = por %p89, %p90
      %p92 = scmp.ne.s32.totalorder %s83, %s84
      %p93 = scmp.eq.s32.totalorder %s19, 0
      %p94 = por %p92, %p93
      %p95 = scmp.ne.s32.totalorder %s83, %s84
      %p96 = scmp.eq.s32.totalorder %s20, 1
      %p97 = por %p95, %p96
      %p99 = scmp.ne.s32.totalorder %s84, %s98
      %p100 = scmp.eq.s32.totalorder %s20, 0
      %p101 = por %p99, %p100
      %s102 = ssub.s32 %s22, %s29
      %p103 = scmp.eq.s32.totalorder %s102, 0
      %s105 = sadd.s32 %s104, 1
      %s106 = scalar_select %p103, %s104, %s105
      %p109 = pneg %p103
      %p110 = scmp.eq.s32.totalorder %s14, 1
      %p111 = por %p109, %p110
      %p112 = scmp.ne.s32.totalorder %s104, %s107
      %p113 = scmp.eq.s32.totalorder %s14, 0
      %p114 = por %p112, %p113
      %p115 = scmp.ne.s32.totalorder %s104, %s107
      %p116 = scmp.eq.s32.totalorder %s19, 1
      %p117 = por %p115, %p116
      %p118 = scmp.ne.s32.totalorder %s107, %s108
      %p119 = scmp.eq.s32.totalorder %s19, 0
      %p120 = por %p118, %p119
      %p121 = scmp.ne.s32.totalorder %s107, %s108
      %p122 = scmp.eq.s32.totalorder %s20, 1
      %p123 = por %p121, %p122
      %p125 = scmp.ne.s32.totalorder %s108, %s124
      %p126 = scmp.eq.s32.totalorder %s20, 0
      %p127 = por %p125, %p126
      %s128 = ssub.s32 %s22, %s29
      %p129 = scmp.eq.s32.totalorder %s128, 0
      %s131 = sadd.s32 %s130, 1
      %s132 = scalar_select %p129, %s130, %s131
      %p135 = pneg %p129
      %p136 = scmp.eq.s32.totalorder %s14, 1
      %p137 = por %p135, %p136
      %p138 = scmp.ne.s32.totalorder %s130, %s133
      %p139 = scmp.eq.s32.totalorder %s14, 0
      %p140 = por %p138, %p139
      %p141 = scmp.ne.s32.totalorder %s130, %s133
      %p142 = scmp.eq.s32.totalorder %s19, 1
      %p143 = por %p141, %p142
      %p144 = scmp.ne.s32.totalorder %s133, %s134
      %p145 = scmp.eq.s32.totalorder %s19, 0
      %p146 = por %p144, %p145
      %p147 = scmp.ne.s32.totalorder %s133, %s134
      %p148 = scmp.eq.s32.totalorder %s20, 1
      %p149 = por %p147, %p148
      %p151 = scmp.ne.s32.totalorder %s134, %s150
      %p152 = scmp.eq.s32.totalorder %s20, 0
      %p153 = por %p151, %p152
      %s154 = ssub.s32 %s22, %s29
      %p155 = scmp.eq.s32.totalorder %s154, 0
      %s157 = sadd.s32 %s156, 1
      %s158 = scalar_select %p155, %s156, %s157
      %p161 = pneg %p155
      %p162 = scmp.eq.s32.totalorder %s14, 1
      %p163 = por %p161, %p162
      %p164 = scmp.ne.s32.totalorder %s156, %s159
      %p165 = scmp.eq.s32.totalorder %s14, 0
      %p166 = por %p164, %p165
      %p167 = scmp.ne.s32.totalorder %s156, %s159
      %p168 = scmp.eq.s32.totalorder %s19, 1
      %p169 = por %p167, %p168
      %p170 = scmp.ne.s32.totalorder %s159, %s160
      %p171 = scmp.eq.s32.totalorder %s19, 0
      %p172 = por %p170, %p171
      %p173 = scmp.ne.s32.totalorder %s159, %s160
      %p174 = scmp.eq.s32.totalorder %s20, 1
      %p175 = por %p173, %p174
      %p177 = scmp.ne.s32.totalorder %s160, %s176
      %p178 = scmp.eq.s32.totalorder %s20, 0
      %p179 = por %p177, %p178
      %s181 = sadd.s32 %s180, 1
      %p184 = scmp.eq.s32.totalorder %s14, 1
      %p185 = scmp.ne.s32.totalorder %s180, %s182
      %p186 = scmp.eq.s32.totalorder %s14, 0
      %p187 = por %p185, %p186
      %p188 = scmp.ne.s32.totalorder %s180, %s182
      %p189 = scmp.eq.s32.totalorder %s19, 1
      %p190 = por %p188, %p189
      %p191 = scmp.ne.s32.totalorder %s182, %s183
      %p192 = scmp.eq.s32.totalorder %s19, 0
      %p193 = por %p191, %p192
      %p194 = scmp.ne.s32.totalorder %s182, %s183
      %p195 = scmp.eq.s32.totalorder %s20, 1
      %p196 = por %p194, %p195
      %p198 = scmp.ne.s32.totalorder %s183, %s197
      %p199 = scmp.eq.s32.totalorder %s20, 0
      %p200 = por %p198, %p199
      %s201 = ssub.s32 %s21, %s33
      %p202 = scmp.eq.s32.totalorder %s201, 0
      %s204 = sadd.s32 %s203, 1
      %s205 = scalar_select %p202, %s203, %s204
      %p208 = pneg %p202
      %p209 = scmp.eq.s32.totalorder %s14, 1
      %p210 = por %p208, %p209
      %p211 = scmp.ne.s32.totalorder %s203, %s206
      %p212 = scmp.eq.s32.totalorder %s14, 0
      %p213 = por %p211, %p212
      %p214 = scmp.ne.s32.totalorder %s203, %s206
      %p215 = scmp.eq.s32.totalorder %s19, 1
      %p216 = por %p214, %p215
      %p217 = scmp.ne.s32.totalorder %s206, %s207
      %p218 = scmp.eq.s32.totalorder %s19, 0
      %p219 = por %p217, %p218
      %p220 = scmp.ne.s32.totalorder %s206, %s207
      %p221 = scmp.eq.s32.totalorder %s20, 1
      %p222 = por %p220, %p221
      %p224 = scmp.ne.s32.totalorder %s207, %s223
      %p225 = scmp.eq.s32.totalorder %s20, 0
      %p226 = por %p224, %p225
      %p227 = scmp.le.s32.totalorder 1, %s14
      %p228 = scmp.lt.s32.totalorder %s14, 3
      %p229 = pnand %p227, %p228
      %p230 = pneg %p229
      // Predicated region
      $region9: #{encoder_forward.6} parent=5 // pred_check
        _
      $region10: #{encoder_forward.6} parent=5 // pred_check_branch
        %232 = sbr.rel (%p229) target = $region12
      $region11: #{encoder_forward.6} parent=5 // pred_region
        %s233 = ssub.s32 %s14, 1
        // Predicated region
        $region13: #{encoder_forward.6} parent=11 // pred_check
          %p234 = pneg %p73
        $region14: #{encoder_forward.6} parent=11 // pred_check_branch
          %236 = sbr.rel (%p234) target = $region16
        $region15: #{encoder_forward.6} parent=11 // pred_region
          _
        $region16: #{encoder_forward.6} parent=11 // pred_fallthru
          _
        // Predicated region
        $region17: #{encoder_forward.6} parent=11 // pred_check
          %p237 = pneg %p94
        $region18: #{encoder_forward.6} parent=11 // pred_check_branch
          %239 = sbr.rel (%p237) target = $region20
        $region19: #{encoder_forward.6} parent=11 // pred_region
          _
        $region20: #{encoder_forward.6} parent=11 // pred_fallthru
          _
        // Predicated region
        $region21: #{encoder_forward.6} parent=11 // pred_check
          %p240 = pneg %p120
        $region22: #{encoder_forward.6} parent=11 // pred_check_branch
          %242 = sbr.rel (%p240) target = $region24
        $region23: #{encoder_forward.6} parent=11 // pred_region
          %s243 = smul.u32 4, %s24
          %p244 = scmp.lt.s32.totalorder %s243, 3
          %s245 = scalar_select %p244, %s243, 3
          %s246 = smul.addr %s245, 8
          %s247 = scalar_lea.vmem %s3, %s246
          %s248 = smul.u32 4, %s24
        $region24: #{encoder_forward.6} parent=11 // pred_fallthru
          _
        // Predicated region
        $region25: #{encoder_forward.6} parent=11 // pred_check
          %p249 = pneg %p146
        $region26: #{encoder_forward.6} parent=11 // pred_check_branch
          %251 = sbr.rel (%p249) target = $region28
        $region27: #{encoder_forward.6} parent=11 // pred_region
          %s252 = smul.u32 4, %s24
          %p253 = scmp.lt.s32.totalorder %s252, 3
          %s254 = scalar_select %p253, %s252, 3
          %s255 = scalar_lea.vmem %s4, %s254
          %s256 = smul.u32 4, %s24
        $region28: #{encoder_forward.6} parent=11 // pred_fallthru
          _
        // Predicated region
        $region29: #{encoder_forward.6} parent=11 // pred_check
          %p257 = pneg %p172
        $region30: #{encoder_forward.6} parent=11 // pred_check_branch
          %259 = sbr.rel (%p257) target = $region32
        $region31: #{encoder_forward.6} parent=11 // pred_region
          %s260 = smul.u32 64, %s24
          %262 = vsyncadd [#allocation5], 0
          %s263 = smul.addr %s260, 8
          %s264 = scalar_lea.hbm %s5, %s263
          %s265 = sshll.u32 %s264, 4
          %s266 = int_to_ptr.hbm [resolvable:$true] %s265
          %s267 = sshll.u32 [#allocation4], 4
          %s268 = int_to_ptr.vmem [resolvable:$true] %s267
          %273 = dma.hbm_to_vmem [thread:$0]  %s266, 8192, %s268, [#allocation5], 128, 128, 8
        $region32: #{encoder_forward.6} parent=11 // pred_fallthru
          _
        // Predicated region
        $region33: #{encoder_forward.6} parent=11 // pred_check
          %p274 = pneg %p193
        $region34: #{encoder_forward.6} parent=11 // pred_check_branch
          %276 = sbr.rel (%p274) target = $region36
        $region35: #{encoder_forward.6} parent=11 // pred_region
          _
        $region36: #{encoder_forward.6} parent=11 // pred_fallthru
          _
      $region12: #{encoder_forward.6} parent=5 // pred_fallthru
        _
      %p277 = scmp.lt.s32.totalorder %s14, 2
      // Predicated region
      $region37: #{encoder_forward.6} parent=5 // pred_check
        %p278 = pneg %p277
      $region38: #{encoder_forward.6} parent=5 // pred_check_branch
        %280 = sbr.rel (%p278) target = $region40
      $region39: #{encoder_forward.6} parent=5 // pred_region
        // Predicated region
        $region41: #{encoder_forward.6} parent=39 // pred_check
          %p281 = pneg %p46
        $region42: #{encoder_forward.6} parent=39 // pred_check_branch
          %283 = sbr.rel (%p281) target = $region44
        $region43: #{encoder_forward.6} parent=39 // pred_region
          %p284 = scmp.lt.s32.totalorder %s21, 1
          %s285 = scalar_select %p284, %s21, 1
          %s286 = smul.addr %s285, 8
          %s287 = scalar_lea.vmem %s0, %s286
        $region44: #{encoder_forward.6} parent=39 // pred_fallthru
          _
      $region40: #{encoder_forward.6} parent=5 // pred_fallthru
        _
      %p288 = scmp.le.s32.totalorder 1, %s14
      %p289 = scmp.lt.s32.totalorder %s14, 3
      %p290 = pnand %p288, %p289
      %p291 = pneg %p290
      // Predicated region
      $region45: #{encoder_forward.6} parent=5 // pred_check
        _
      $region46: #{encoder_forward.6} parent=5 // pred_check_branch
        %293 = sbr.rel (%p290) target = $region48
      $region47: #{encoder_forward.6} parent=5 // pred_region
        %s294 = ssub.s32 %s14, 1
        // Predicated region
        $region49: #{encoder_forward.6} parent=47 // pred_check
          %p295 = pneg %p172
        $region50: #{encoder_forward.6} parent=47 // pred_check_branch
          %297 = sbr.rel (%p295) target = $region52
        $region51: #{encoder_forward.6} parent=47 // pred_region
          %299 = dma.done [#allocation5], 8192
        $region52: #{encoder_forward.6} parent=47 // pred_fallthru
          _
        %p300 = scmp.lt.s32.totalorder %s23, 1
        %s301 = scalar_select %p300, %s23, 1
        %s302 = smul.addr %s301, 8
        %s303 = scalar_lea.vmem %s0, %s302
        %p304 = pneg %p52
        %p305 = pneg %p49
        %p306 = pneg %p73
        %p307 = pneg %p70
        %p308 = pneg %p94
        %p309 = pneg %p91
        %s310 = smul.u32 4, %s24
        %p311 = scmp.lt.s32.totalorder %s310, 3
        %s312 = scalar_select %p311, %s310, 3
        %s313 = smul.addr %s312, 8
        %s314 = scalar_lea.vmem %s3, %s313
        %p315 = pneg %p120
        %p316 = pneg %p117
        %s317 = smul.u32 4, %s24
        %p318 = scmp.lt.s32.totalorder %s317, 3
        %s319 = scalar_select %p318, %s317, 3
        %s320 = scalar_lea.vmem %s4, %s319
        %p321 = pneg %p146
        %p322 = pneg %p143
        %p323 = pneg %p172
        %p324 = pneg %p169
        %p325 = pneg %p193
        %p326 = pneg %p190
        %p327 = pneg %p219
        %p328 = pneg %p216
        %p329 = scmp.lt.s32.totalorder %s23, 1
        %s330 = scalar_select %p329, %s23, 1
        %s331 = smul.addr %s330, 8
        %s332 = scalar_lea.vmem %s7, %s331
        %p333 = scmp.lt.s32.totalorder %s23, 1
        %s334 = scalar_select %p333, %s23, 1
        %s335 = smul.addr %s334, 8
        %s336 = scalar_lea.vmem %s0, %s335
        %s337 = smul.u32 4, %s24
        %p338 = scmp.lt.s32.totalorder %s337, 3
        %s339 = scalar_select %p338, %s337, 3
        %s340 = smul.addr %s339, 8
        %s341 = scalar_lea.vmem %s3, %s340
        %s342 = smul.u32 4, %s24
        %s343 = smul.u32 4, %s24
        %p344 = scmp.lt.s32.totalorder %s343, 3
        %s345 = scalar_select %p344, %s343, 3
        %s346 = scalar_lea.vmem %s4, %s345
        %s347 = smul.u32 4, %s24
        %s348 = smul.u32 64, %s24
        %p349 = scmp.lt.s32.totalorder %s23, 1
        %s350 = scalar_select %p349, %s23, 1
        %s351 = smul.addr %s350, 8
        %s352 = scalar_lea.vmem %s7, %s351
        %p353 = scmp.eq.s32.totalorder %s24, 0
        // Predicated region
        $region53: #{encoder_forward.6} parent=47 // pred_check
          %p354 = pneg %p353
        $region54: #{encoder_forward.6} parent=47 // pred_check_branch
          %356 = sbr.rel (%p354) target = $region56
        $region55: #{encoder_forward.6} parent=47 // pred_region
          %v357 = vld [vmem:[%s336] sm:$0xff]
          %v358 = vld [vmem:[%s1] sm:$0x1]
          %v359 = vld [vmem:[%s2] sm:$0x1]
          %360 = vadd.xlane.f32.xlu0 %v357
          %v361 = vpop.xlane.xlu0 %360
          %v362 = vrcp.pop 128.0
          %v363 = vmul.f32 128.0, %v362
          %v364 = vsub.f32 1.0, %v363
          %v365 = vmul.f32 %v362, %v364
          %v366 = vadd.f32 %v362, %v365
          %vm367 = vweird.f32 %v362
          %v368 = vsel %vm367, %v362, %v366
          %v369 = vmul.f32 %v361, %v368
          %v370 = vsub.f32 %v357, %v369
          %v371 = vmul.f32 %v370, %v370
          %372 = vadd.xlane.f32.xlu0 %v371
          %v373 = vpop.xlane.xlu0 %372
          %v374 = vmul.f32 %v373, 0.007874016
          %v375 = vrsqrt.pop %v374
          %v376 = vmul.f32 %v375, %v374
          %v377 = vmul.f32 %v376, %v375
          %v378 = vmul.f32 0.5, %v377
          %v379 = vsub.f32 1.5, %v378
          %v380 = vmul.f32 %v375, %v379
          %v381 = vmul.f32 %v374, %v380
          %vm382 = vcmp.eq.f32.partialorder %v374, inf
          %v383 = vsel %vm382, %v374, %v381
          %vm384 = vcmp.eq.f32.partialorder %v374, 0.0
          %v385 = vand.u32 %v374, 2147483648
          %v386 = vsel %vm384, %v385, %v383
          %v388 = vperm.slane %v358, 0
          %v390 = vmul.f32 %v388, %v370
          %v391 = vadd.f32 %v386, 1e-06
          %v392 = vrcp.pop %v391
          %v393 = vmul.f32 %v391, %v392
          %v394 = vsub.f32 1.0, %v393
          %v395 = vmul.f32 %v392, %v394
          %v396 = vadd.f32 %v392, %v395
          %vm397 = vweird.f32 %v391
          %vm398 = vweird.f32 %v392
          %vm399 = vmor %vm397, %vm398
          %v400 = vsel %vm399, %v392, %v396
          %v401 = vand.u32 2147483647, %v391
          %vm402 = vcmp.eq.f32.partialorder %v401, 8.507059e+37
          %v403 = vand.u32 %v391, 2147483648
          %v404 = vor.u32 1.1754944e-38, %v403
          %v405 = vsel %vm402, %v404, %v400
          %v406 = vmul.f32 %v390, %v405
          %v408 = vperm.slane %v359, 0
          %v410 = vadd.f32 %v406, %v408
          %411 = vst [vmem:[#allocation2] sm:$0xff] %v410
          %412 = vst [vmem:[#allocation3] sm:$0xff] 0.0
        $region56: #{encoder_forward.6} parent=47 // pred_fallthru
          _
        %v413 = vld [vmem:[%s341] sm:$0xff]
        %v414 = vld [vmem:[%s341 + $0x8] sm:$0xff]
        %v415 = vld [vmem:[%s341 + $0x10] sm:$0xff]
        %v416 = vld [vmem:[%s341 + $0x18] sm:$0xff]
        %v417 = vld [vmem:[%s341 + $0x20] sm:$0xff]
        %v418 = vld [vmem:[%s341 + $0x28] sm:$0xff]
        %v419 = vld [vmem:[%s341 + $0x30] sm:$0xff]
        %v420 = vld [vmem:[%s341 + $0x38] sm:$0xff]
        %v421 = vld [vmem:[%s341 + $0x40] sm:$0xff]
        %v422 = vld [vmem:[%s341 + $0x48] sm:$0xff]
        %v423 = vld [vmem:[%s341 + $0x50] sm:$0xff]
        %v424 = vld [vmem:[%s341 + $0x58] sm:$0xff]
        %v425 = vld [vmem:[%s341 + $0x60] sm:$0xff]
        %v426 = vld [vmem:[%s341 + $0x68] sm:$0xff]
        %v427 = vld [vmem:[%s341 + $0x70] sm:$0xff]
        %v428 = vld [vmem:[%s341 + $0x78] sm:$0xff]
        %v429 = vld [vmem:[%s341 + $0x80] sm:$0xff]
        %v430 = vld [vmem:[%s341 + $0x88] sm:$0xff]
        %v431 = vld [vmem:[%s341 + $0x90] sm:$0xff]
        %v432 = vld [vmem:[%s341 + $0x98] sm:$0xff]
        %v433 = vld [vmem:[%s341 + $0xa0] sm:$0xff]
        %v434 = vld [vmem:[%s341 + $0xa8] sm:$0xff]
        %v435 = vld [vmem:[%s341 + $0xb0] sm:$0xff]
        %v436 = vld [vmem:[%s341 + $0xb8] sm:$0xff]
        %v437 = vld [vmem:[%s341 + $0xc0] sm:$0xff]
        %v438 = vld [vmem:[%s341 + $0xc8] sm:$0xff]
        %v439 = vld [vmem:[%s341 + $0xd0] sm:$0xff]
        %v440 = vld [vmem:[%s341 + $0xd8] sm:$0xff]
        %v441 = vld [vmem:[%s341 + $0xe0] sm:$0xff]
        %v442 = vld [vmem:[%s341 + $0xe8] sm:$0xff]
        %v443 = vld [vmem:[%s341 + $0xf0] sm:$0xff]
        %v444 = vld [vmem:[%s341 + $0xf8] sm:$0xff]
        %v445 = vld [vmem:[%s341 + $0x100] sm:$0xff]
        %v446 = vld [vmem:[%s341 + $0x108] sm:$0xff]
        %v447 = vld [vmem:[%s341 + $0x110] sm:$0xff]
        %v448 = vld [vmem:[%s341 + $0x118] sm:$0xff]
        %v449 = vld [vmem:[%s341 + $0x120] sm:$0xff]
        %v450 = vld [vmem:[%s341 + $0x128] sm:$0xff]
        %v451 = vld [vmem:[%s341 + $0x130] sm:$0xff]
        %v452 = vld [vmem:[%s341 + $0x138] sm:$0xff]
        %v453 = vld [vmem:[%s341 + $0x140] sm:$0xff]
        %v454 = vld [vmem:[%s341 + $0x148] sm:$0xff]
        %v455 = vld [vmem:[%s341 + $0x150] sm:$0xff]
        %v456 = vld [vmem:[%s341 + $0x158] sm:$0xff]
        %v457 = vld [vmem:[%s341 + $0x160] sm:$0xff]
        %v458 = vld [vmem:[%s341 + $0x168] sm:$0xff]
        %v459 = vld [vmem:[%s341 + $0x170] sm:$0xff]
        %v460 = vld [vmem:[%s341 + $0x178] sm:$0xff]
        %v461 = vld [vmem:[%s341 + $0x180] sm:$0xff]
        %v462 = vld [vmem:[%s341 + $0x188] sm:$0xff]
        %v463 = vld [vmem:[%s341 + $0x190] sm:$0xff]
        %v464 = vld [vmem:[%s341 + $0x198] sm:$0xff]
        %v465 = vld [vmem:[%s341 + $0x1a0] sm:$0xff]
        %v466 = vld [vmem:[%s341 + $0x1a8] sm:$0xff]
        %v467 = vld [vmem:[%s341 + $0x1b0] sm:$0xff]
        %v468 = vld [vmem:[%s341 + $0x1b8] sm:$0xff]
        %v469 = vld [vmem:[%s341 + $0x1c0] sm:$0xff]
        %v470 = vld [vmem:[%s341 + $0x1c8] sm:$0xff]
        %v471 = vld [vmem:[%s341 + $0x1d0] sm:$0xff]
        %v472 = vld [vmem:[%s341 + $0x1d8] sm:$0xff]
        %v473 = vld [vmem:[%s341 + $0x1e0] sm:$0xff]
        %v474 = vld [vmem:[%s341 + $0x1e8] sm:$0xff]
        %v475 = vld [vmem:[%s341 + $0x1f0] sm:$0xff]
        %v476 = vld [vmem:[%s341 + $0x1f8] sm:$0xff]
        %v477 = vld [vmem:[#allocation2] sm:$0xff]
        %v478 = vld [vmem:[%s346] sm:$0xf]
        %v480 = vperm.slane %v478, 0
        %v481 = vperm.slane %v478, 1
        %v482 = vperm.slane %v478, 2
        %v483 = vperm.slane %v478, 3
        %488 = vmatpush.msra.mxu0 %v473
        %489 = vmatpush.msra.mxu0 %v469
        %490 = vmatpush.msra.mxu0 %v465
        %491 = vmatpush.msra.mxu0 %v461
        %492 = vmatpush.msra.mxu0 %v457
        %493 = vmatpush.msra.mxu0 %v453
        %494 = vmatpush.msra.mxu0 %v449
        %495 = vmatpush.msra.mxu0 %v445
        %496 = vmatpush.msra.mxu0 %v441
        %497 = vmatpush.msra.mxu0 %v437
        %498 = vmatpush.msra.mxu0 %v433
        %499 = vmatpush.msra.mxu0 %v429
        %500 = vmatpush.msra.mxu0 %v425
        %501 = vmatpush.msra.mxu0 %v421
        %502 = vmatpush.msra.mxu0 %v417
        %503 = vmatpush.msra.mxu0 %v413
        %504 = vmatmul.f32.gmra.mxu0 %v477
        %v505 = vpop.f32.mrf.mxu0
        %v506 = vadd.f32 %v480, %v505
        %507 = vdwg.mxu0
        %508 = vmatpush.msra.mxu0 %v474
        %509 = vmatpush.msra.mxu0 %v470
        %510 = vmatpush.msra.mxu0 %v466
        %511 = vmatpush.msra.mxu0 %v462
        %512 = vmatpush.msra.mxu0 %v458
        %513 = vmatpush.msra.mxu0 %v454
        %514 = vmatpush.msra.mxu0 %v450
        %515 = vmatpush.msra.mxu0 %v446
        %516 = vmatpush.msra.mxu0 %v442
        %517 = vmatpush.msra.mxu0 %v438
        %518 = vmatpush.msra.mxu0 %v434
        %519 = vmatpush.msra.mxu0 %v430
        %520 = vmatpush.msra.mxu0 %v426
        %521 = vmatpush.msra.mxu0 %v422
        %522 = vmatpush.msra.mxu0 %v418
        %523 = vmatpush.msra.mxu0 %v414
        %524 = vmatmul.f32.gmra.mxu0 %v477
        %v525 = vpop.f32.mrf.mxu0
        %v526 = vadd.f32 %v481, %v525
        %527 = vdwg.mxu0
        %528 = vmatpush.msra.mxu0 %v475
        %529 = vmatpush.msra.mxu0 %v471
        %530 = vmatpush.msra.mxu0 %v467
        %531 = vmatpush.msra.mxu0 %v463
        %532 = vmatpush.msra.mxu0 %v459
        %533 = vmatpush.msra.mxu0 %v455
        %534 = vmatpush.msra.mxu0 %v451
        %535 = vmatpush.msra.mxu0 %v447
        %536 = vmatpush.msra.mxu0 %v443
        %537 = vmatpush.msra.mxu0 %v439
        %538 = vmatpush.msra.mxu0 %v435
        %539 = vmatpush.msra.mxu0 %v431
        %540 = vmatpush.msra.mxu0 %v427
        %541 = vmatpush.msra.mxu0 %v423
        %542 = vmatpush.msra.mxu0 %v419
        %543 = vmatpush.msra.mxu0 %v415
        %544 = vmatmul.f32.gmra.mxu0 %v477
        %v545 = vpop.f32.mrf.mxu0
        %v546 = vadd.f32 %v482, %v545
        %547 = vdwg.mxu0
        %548 = vmatpush.msra.mxu0 %v476
        %549 = vmatpush.msra.mxu0 %v472
        %550 = vmatpush.msra.mxu0 %v468
        %551 = vmatpush.msra.mxu0 %v464
        %552 = vmatpush.msra.mxu0 %v460
        %553 = vmatpush.msra.mxu0 %v456
        %554 = vmatpush.msra.mxu0 %v452
        %555 = vmatpush.msra.mxu0 %v448
        %556 = vmatpush.msra.mxu0 %v444
        %557 = vmatpush.msra.mxu0 %v440
        %558 = vmatpush.msra.mxu0 %v436
        %559 = vmatpush.msra.mxu0 %v432
        %560 = vmatpush.msra.mxu0 %v428
        %561 = vmatpush.msra.mxu0 %v424
        %562 = vmatpush.msra.mxu0 %v420
        %563 = vmatpush.msra.mxu0 %v416
        %564 = vmatmul.f32.gmra.mxu0 %v477
        %v565 = vpop.f32.mrf.mxu0
        %v566 = vadd.f32 %v483, %v565
        %567 = vdwg.mxu0
        %v568 = vmax.f32 %v506, 0.0
        %v569 = vmax.f32 %v526, 0.0
        %v570 = vmax.f32 %v546, 0.0
        %v571 = vmax.f32 %v566, 0.0
        %v572 = vld [vmem:[#allocation4] sm:$0xff]
        %v573 = vld [vmem:[#allocation4 + $0x8] sm:$0xff]
        %v574 = vld [vmem:[#allocation4 + $0x10] sm:$0xff]
        %v575 = vld [vmem:[#allocation4 + $0x18] sm:$0xff]
        %v576 = vld [vmem:[#allocation4 + $0x20] sm:$0xff]
        %v577 = vld [vmem:[#allocation4 + $0x28] sm:$0xff]
        %v578 = vld [vmem:[#allocation4 + $0x30] sm:$0xff]
        %v579 = vld [vmem:[#allocation4 + $0x38] sm:$0xff]
        %v580 = vld [vmem:[#allocation4 + $0x40] sm:$0xff]
        %v581 = vld [vmem:[#allocation4 + $0x48] sm:$0xff]
        %v582 = vld [vmem:[#allocation4 + $0x50] sm:$0xff]
        %v583 = vld [vmem:[#allocation4 + $0x58] sm:$0xff]
        %v584 = vld [vmem:[#allocation4 + $0x60] sm:$0xff]
        %v585 = vld [vmem:[#allocation4 + $0x68] sm:$0xff]
        %v586 = vld [vmem:[#allocation4 + $0x70] sm:$0xff]
        %v587 = vld [vmem:[#allocation4 + $0x78] sm:$0xff]
        %v588 = vld [vmem:[#allocation4 + $0x80] sm:$0xff]
        %v589 = vld [vmem:[#allocation4 + $0x88] sm:$0xff]
        %v590 = vld [vmem:[#allocation4 + $0x90] sm:$0xff]
        %v591 = vld [vmem:[#allocation4 + $0x98] sm:$0xff]
        %v592 = vld [vmem:[#allocation4 + $0xa0] sm:$0xff]
        %v593 = vld [vmem:[#allocation4 + $0xa8] sm:$0xff]
        %v594 = vld [vmem:[#allocation4 + $0xb0] sm:$0xff]
        %v595 = vld [vmem:[#allocation4 + $0xb8] sm:$0xff]
        %v596 = vld [vmem:[#allocation4 + $0xc0] sm:$0xff]
        %v597 = vld [vmem:[#allocation4 + $0xc8] sm:$0xff]
        %v598 = vld [vmem:[#allocation4 + $0xd0] sm:$0xff]
        %v599 = vld [vmem:[#allocation4 + $0xd8] sm:$0xff]
        %v600 = vld [vmem:[#allocation4 + $0xe0] sm:$0xff]
        %v601 = vld [vmem:[#allocation4 + $0xe8] sm:$0xff]
        %v602 = vld [vmem:[#allocation4 + $0xf0] sm:$0xff]
        %v603 = vld [vmem:[#allocation4 + $0xf8] sm:$0xff]
        %v604 = vld [vmem:[#allocation4 + $0x100] sm:$0xff]
        %v605 = vld [vmem:[#allocation4 + $0x108] sm:$0xff]
        %v606 = vld [vmem:[#allocation4 + $0x110] sm:$0xff]
        %v607 = vld [vmem:[#allocation4 + $0x118] sm:$0xff]
        %v608 = vld [vmem:[#allocation4 + $0x120] sm:$0xff]
        %v609 = vld [vmem:[#allocation4 + $0x128] sm:$0xff]
        %v610 = vld [vmem:[#allocation4 + $0x130] sm:$0xff]
        %v611 = vld [vmem:[#allocation4 + $0x138] sm:$0xff]
        %v612 = vld [vmem:[#allocation4 + $0x140] sm:$0xff]
        %v613 = vld [vmem:[#allocation4 + $0x148] sm:$0xff]
        %v614 = vld [vmem:[#allocation4 + $0x150] sm:$0xff]
        %v615 = vld [vmem:[#allocation4 + $0x158] sm:$0xff]
        %v616 = vld [vmem:[#allocation4 + $0x160] sm:$0xff]
        %v617 = vld [vmem:[#allocation4 + $0x168] sm:$0xff]
        %v618 = vld [vmem:[#allocation4 + $0x170] sm:$0xff]
        %v619 = vld [vmem:[#allocation4 + $0x178] sm:$0xff]
        %v620 = vld [vmem:[#allocation4 + $0x180] sm:$0xff]
        %v621 = vld [vmem:[#allocation4 + $0x188] sm:$0xff]
        %v622 = vld [vmem:[#allocation4 + $0x190] sm:$0xff]
        %v623 = vld [vmem:[#allocation4 + $0x198] sm:$0xff]
        %v624 = vld [vmem:[#allocation4 + $0x1a0] sm:$0xff]
        %v625 = vld [vmem:[#allocation4 + $0x1a8] sm:$0xff]
        %v626 = vld [vmem:[#allocation4 + $0x1b0] sm:$0xff]
        %v627 = vld [vmem:[#allocation4 + $0x1b8] sm:$0xff]
        %v628 = vld [vmem:[#allocation4 + $0x1c0] sm:$0xff]
        %v629 = vld [vmem:[#allocation4 + $0x1c8] sm:$0xff]
        %v630 = vld [vmem:[#allocation4 + $0x1d0] sm:$0xff]
        %v631 = vld [vmem:[#allocation4 + $0x1d8] sm:$0xff]
        %v632 = vld [vmem:[#allocation4 + $0x1e0] sm:$0xff]
        %v633 = vld [vmem:[#allocation4 + $0x1e8] sm:$0xff]
        %v634 = vld [vmem:[#allocation4 + $0x1f0] sm:$0xff]
        %v635 = vld [vmem:[#allocation4 + $0x1f8] sm:$0xff]
        %v636 = vld [vmem:[#allocation3] sm:$0xff]
        %637 = vmatpush.msra.mxu0 %v587
        %638 = vmatpush.msra.mxu0 %v586
        %639 = vmatpush.msra.mxu0 %v585
        %640 = vmatpush.msra.mxu0 %v584
        %641 = vmatpush.msra.mxu0 %v583
        %642 = vmatpush.msra.mxu0 %v582
        %643 = vmatpush.msra.mxu0 %v581
        %644 = vmatpush.msra.mxu0 %v580
        %645 = vmatpush.msra.mxu0 %v579
        %646 = vmatpush.msra.mxu0 %v578
        %647 = vmatpush.msra.mxu0 %v577
        %648 = vmatpush.msra.mxu0 %v576
        %649 = vmatpush.msra.mxu0 %v575
        %650 = vmatpush.msra.mxu0 %v574
        %651 = vmatpush.msra.mxu0 %v573
        %652 = vmatpush.msra.mxu0 %v572
        %653 = vmatmul.f32.gmra.mxu0 %v568
        %v654 = vpop.f32.mrf.mxu0
        %v655 = vadd.f32 0.0, %v654
        %656 = vdwg.mxu0
        %657 = vmatpush.msra.mxu0 %v603
        %658 = vmatpush.msra.mxu0 %v602
        %659 = vmatpush.msra.mxu0 %v601
        %660 = vmatpush.msra.mxu0 %v600
        %661 = vmatpush.msra.mxu0 %v599
        %662 = vmatpush.msra.mxu0 %v598
        %663 = vmatpush.msra.mxu0 %v597
        %664 = vmatpush.msra.mxu0 %v596
        %665 = vmatpush.msra.mxu0 %v595
        %666 = vmatpush.msra.mxu0 %v594
        %667 = vmatpush.msra.mxu0 %v593
        %668 = vmatpush.msra.mxu0 %v592
        %669 = vmatpush.msra.mxu0 %v591
        %670 = vmatpush.msra.mxu0 %v590
        %671 = vmatpush.msra.mxu0 %v589
        %672 = vmatpush.msra.mxu0 %v588
        %673 = vmatmul.f32.gmra.mxu0 %v569
        %v674 = vpop.f32.mrf.mxu0
        %v675 = vadd.f32 %v655, %v674
        %676 = vdwg.mxu0
        %677 = vmatpush.msra.mxu0 %v619
        %678 = vmatpush.msra.mxu0 %v618
        %679 = vmatpush.msra.mxu0 %v617
        %680 = vmatpush.msra.mxu0 %v616
        %681 = vmatpush.msra.mxu0 %v615
        %682 = vmatpush.msra.mxu0 %v614
        %683 = vmatpush.msra.mxu0 %v613
        %684 = vmatpush.msra.mxu0 %v612
        %685 = vmatpush.msra.mxu0 %v611
        %686 = vmatpush.msra.mxu0 %v610
        %687 = vmatpush.msra.mxu0 %v609
        %688 = vmatpush.msra.mxu0 %v608
        %689 = vmatpush.msra.mxu0 %v607
        %690 = vmatpush.msra.mxu0 %v606
        %691 = vmatpush.msra.mxu0 %v605
        %692 = vmatpush.msra.mxu0 %v604
        %693 = vmatmul.f32.gmra.mxu0 %v570
        %v694 = vpop.f32.mrf.mxu0
        %v695 = vadd.f32 %v675, %v694
        %696 = vdwg.mxu0
        %697 = vmatpush.msra.mxu0 %v635
        %698 = vmatpush.msra.mxu0 %v634
        %699 = vmatpush.msra.mxu0 %v633
        %700 = vmatpush.msra.mxu0 %v632
        %701 = vmatpush.msra.mxu0 %v631
        %702 = vmatpush.msra.mxu0 %v630
        %703 = vmatpush.msra.mxu0 %v629
        %704 = vmatpush.msra.mxu0 %v628
        %705 = vmatpush.msra.mxu0 %v627
        %706 = vmatpush.msra.mxu0 %v626
        %707 = vmatpush.msra.mxu0 %v625
        %708 = vmatpush.msra.mxu0 %v624
        %709 = vmatpush.msra.mxu0 %v623
        %710 = vmatpush.msra.mxu0 %v622
        %711 = vmatpush.msra.mxu0 %v621
        %712 = vmatpush.msra.mxu0 %v620
        %713 = vmatmul.f32.gmra.mxu0 %v571
        %v714 = vpop.f32.mrf.mxu0
        %v715 = vadd.f32 %v695, %v714
        %716 = vdwg.mxu0
        %v717 = vadd.f32 %v636, %v715
        %718 = vst [vmem:[#allocation3] sm:$0xff] %v717
        // Predicated region
        $region57: #{encoder_forward.6} parent=47 // pred_check
          %p719 = pneg %p353
        $region58: #{encoder_forward.6} parent=47 // pred_check_branch
          %721 = sbr.rel (%p719) target = $region60
        $region59: #{encoder_forward.6} parent=47 // pred_region
          %v722 = vld [vmem:[#allocation3] sm:$0xff]
          %v723 = vld [vmem:[%s6] sm:$0x1]
          %v725 = vperm.slane %v723, 0
          %v727 = vadd.f32 %v722, %v725
          %v728 = vld [vmem:[%s336] sm:$0xff]
          %v729 = vadd.f32 %v727, %v728
          %730 = vst [vmem:[%s352] sm:$0xff] %v729
        $region60: #{encoder_forward.6} parent=47 // pred_fallthru
          _
        %p731 = scmp.lt.s32.totalorder %s23, 1
        %s732 = scalar_select %p731, %s23, 1
        %s733 = smul.addr %s732, 8
        %s734 = scalar_lea.vmem %s7, %s733
        // Predicated region
        $region61: #{encoder_forward.6} parent=47 // pred_check
          %p735 = pneg %p216
        $region62: #{encoder_forward.6} parent=47 // pred_check_branch
          %737 = sbr.rel (%p735) target = $region64
        $region63: #{encoder_forward.6} parent=47 // pred_region
          _
        $region64: #{encoder_forward.6} parent=47 // pred_fallthru
          _
      $region48: #{encoder_forward.6} parent=5 // pred_fallthru
        _
      %p738 = scmp.le.s32.totalorder 2, %s14
      // Predicated region
      $region65: #{encoder_forward.6} parent=5 // pred_check
        %p739 = pneg %p738
      $region66: #{encoder_forward.6} parent=5 // pred_check_branch
        %741 = sbr.rel (%p739) target = $region68
      $region67: #{encoder_forward.6} parent=5 // pred_region
        %s742 = ssub.s32 %s14, 2
        // Predicated region
        $region69: #{encoder_forward.6} parent=67 // pred_check
          %p743 = pneg %p222
        $region70: #{encoder_forward.6} parent=67 // pred_check_branch
          %745 = sbr.rel (%p743) target = $region72
        $region71: #{encoder_forward.6} parent=67 // pred_region
          %p746 = scmp.lt.s32.totalorder %s25, 1
          %s747 = scalar_select %p746, %s25, 1
          %s748 = smul.addr %s747, 8
          %s749 = scalar_lea.vmem %s7, %s748
        $region72: #{encoder_forward.6} parent=67 // pred_fallthru
          _
      $region68: #{encoder_forward.6} parent=5 // pred_fallthru
        _
    $region6: #{encoder_forward.6} parent=1 // loop_footer
      %s18 = sadd.s32 1, %s14
    $region7: #{encoder_forward.6} parent=1 // loop_footer_branch
      %13 = sbr.rel target = $region3
    $region8: #{encoder_forward.6} parent=1 // loop_exit
      _
    %750 = vsyncpa [#allocation5], 1
    %s751 = scalar_lea.sflag [#allocation5], 1
    %752 = vsyncpa %s751, 1

// kernel: encoder_forward.5
$region0: #{encoder_forward.5}
  #allocation0 [shape = 'u32[]', space=smem, size = 0x4, offset = 0x4, fixed_abs, tag = 'smem constant byte address 0x4 - core index']
  #allocation1 [shape = 'u32[72,128]{1,0:T(1,128)}', space=vmem, size = 0x9000, scoped, tag = 'internal scratch']
  %s0 = inlined_call_operand.hbm [shape: f32[2,8,128], index: 0, kind: input, shape index: {}]
  %s1 = inlined_call_operand.hbm [shape: f32[1,128], index: 1, kind: input, shape index: {}]
  %s2 = inlined_call_operand.hbm [shape: f32[1,128], index: 2, kind: input, shape index: {}]
  %s3 = inlined_call_operand.hbm [shape: f32[128,384], index: 3, kind: input, shape index: {}]
  %s4 = inlined_call_operand.vmem [shape: f32[1,384], index: 4, kind: input, shape index: {}]
  %s5 = inlined_call_operand.hbm [shape: f32[128,128], index: 5, kind: input, shape index: {}]
  %s6 = inlined_call_operand.hbm [shape: f32[1,128], index: 6, kind: input, shape index: {}]
  %s7 = inlined_call_operand.vmem [shape: f32[2,8,128], index: 7, kind: output, shape index: {}]
  %s8 = sld [smem:[#allocation0]]
  $region85: #{encoder_forward.5} parent=0
    _
  %s10 = ssub.s32 1, %s8
  %s11 = scalar_select 0, %s10, %s8
  $region1: #{encoder_forward.5} parent=0
    #allocation2 [shape = 'u8[8192]{0}', space=vmem, size = 0x2000, scoped, tag = 'input window, operand 0']
    #allocation3 [shape = 's32[2]{0}', space=sflag, size = 0x8, scoped, tag = 'scoped memory for encoder_forward.5']
    #allocation4 [shape = 'u8[512]{0}', space=vmem, size = 0x400, scoped, tag = 'input window, operand 1, single buffered']
    #allocation5 [shape = 's32[1]{0}', space=sflag, size = 0x4, scoped, tag = 'scoped memory for encoder_forward.5']
    #allocation6 [shape = 'u8[512]{0}', space=vmem, size = 0x400, scoped, tag = 'input window, operand 2, single buffered']
    #allocation7 [shape = 'u8[196608]{0}', space=vmem, size = 0x30000, scoped, tag = 'input window, operand 3, single buffered']
    #allocation8 [shape = 's32[1]{0}', space=sflag, size = 0x4, scoped, tag = 'scoped memory for encoder_forward.5']
    #allocation9 [shape = 'u8[65536]{0}', space=vmem, size = 0x10000, scoped, tag = 'input window, operand 5, single buffered']
    #allocation10 [shape = 'u8[512]{0}', space=vmem, size = 0x400, scoped, tag = 'input window, operand 6, single buffered']
    #allocation11 [shape = 's32[1]{0}', space=sflag, size = 0x4, scoped, tag = 'scoped memory for encoder_forward.5']
    %12 = vsyncpa [#allocation3], 0
    %s13 = scalar_lea.sflag [#allocation3], 1
    %14 = vsyncpa %s13, 0
    %15 = vsyncpa [#allocation5], 0
    %16 = vsyncpa [#allocation8], 0
    %17 = vsyncpa [#allocation11], 0
    loop: start=0, step=1, limit=4
    $region2: #{encoder_forward.5} parent=1 // loop_pre_header
      _
    $region3: #{encoder_forward.5} parent=1 // loop_header
      %s19 = sphi 0, %s23
      %p20 = scmp.ge.s32.totalorder %s19, 4
      %s29 = sphi 0, %s31
      %s32 = sphi 0, %s29
      %s33 = sphi 0, %s32
      %s49 = sphi 0, %s33
      %s53 = sphi 0, %s53
      %s55 = sphi 0, %s53
      %s56 = sphi 0, %s55
      %s70 = sphi 0, %s56
      %s74 = sphi 0, %s74
      %s76 = sphi 0, %s74
      %s77 = sphi 0, %s76
      %s91 = sphi 0, %s77
      %s95 = sphi 0, %s95
      %s97 = sphi 0, %s95
      %s98 = sphi 0, %s97
      %s112 = sphi 0, %s98
      %s116 = sphi 0, %s116
      %s118 = sphi 0, %s116
      %s119 = sphi 0, %s118
      %s133 = sphi 0, %s119
      %s137 = sphi 0, %s137
      %s139 = sphi 0, %s137
      %s140 = sphi 0, %s139
      %s154 = sphi 0, %s140
      %s158 = sphi 0, %s158
      %s160 = sphi 0, %s158
      %s161 = sphi 0, %s160
      %s175 = sphi 0, %s161
      %s181 = sphi 0, %s183
      %s184 = sphi 0, %s181
      %s185 = sphi 0, %s184
      %s201 = sphi 0, %s185
    $region4: #{encoder_forward.5} parent=1 // loop_header_branch
      %22 = sbr.rel (%p20) target = $region8
    $region5: #{encoder_forward.5} parent=1 // loop_body
      %s24 = ssub.s32 %s19, 1
      %s25 = ssub.s32 %s19, 2
      %s26 = sadd.s32 %s19, 1
      %s27 = ssub.s32 %s19, %s26
      %p28 = scmp.eq.s32.totalorder %s27, 0
      %s30 = sadd.s32 %s29, 1
      %s31 = scalar_select %p28, %s29, %s30
      %p34 = pneg %p28
      %p35 = scmp.eq.s32.totalorder %s19, 1
      %p36 = por %p34, %p35
      %p37 = scmp.ne.s32.totalorder %s29, %s32
      %p38 = scmp.eq.s32.totalorder %s19, 0
      %p39 = por %p37, %p38
      %p40 = scmp.ne.s32.totalorder %s29, %s32
      %p41 = scmp.eq.s32.totalorder %s24, 1
      %p42 = por %p40, %p41
      %p43 = scmp.ne.s32.totalorder %s32, %s33
      %p44 = scmp.eq.s32.totalorder %s24, 0
      %p45 = por %p43, %p44
      %p46 = scmp.ne.s32.totalorder %s32, %s33
      %p47 = scmp.eq.s32.totalorder %s25, 1
      %p48 = por %p46, %p47
      %p50 = scmp.ne.s32.totalorder %s33, %s49
      %p51 = scmp.eq.s32.totalorder %s25, 0
      %p52 = por %p50, %p51
      %s54 = sadd.s32 %s53, 1
      %p57 = scmp.eq.s32.totalorder %s19, 1
      %p58 = scmp.ne.s32.totalorder %s53, %s55
      %p59 = scmp.eq.s32.totalorder %s19, 0
      %p60 = por %p58, %p59
      %p61 = scmp.ne.s32.totalorder %s53, %s55
      %p62 = scmp.eq.s32.totalorder %s24, 1
      %p63 = por %p61, %p62
      %p64 = scmp.ne.s32.totalorder %s55, %s56
      %p65 = scmp.eq.s32.totalorder %s24, 0
      %p66 = por %p64, %p65
      %p67 = scmp.ne.s32.totalorder %s55, %s56
      %p68 = scmp.eq.s32.totalorder %s25, 1
      %p69 = por %p67, %p68
      %p71 = scmp.ne.s32.totalorder %s56, %s70
      %p72 = scmp.eq.s32.totalorder %s25, 0
      %p73 = por %p71, %p72
      %s75 = sadd.s32 %s74, 1
      %p78 = scmp.eq.s32.totalorder %s19, 1
      %p79 = scmp.ne.s32.totalorder %s74, %s76
      %p80 = scmp.eq.s32.totalorder %s19, 0
      %p81 = por %p79, %p80
      %p82 = scmp.ne.s32.totalorder %s74, %s76
      %p83 = scmp.eq.s32.totalorder %s24, 1
      %p84 = por %p82, %p83
      %p85 = scmp.ne.s32.totalorder %s76, %s77
      %p86 = scmp.eq.s32.totalorder %s24, 0
      %p87 = por %p85, %p86
      %p88 = scmp.ne.s32.totalorder %s76, %s77
      %p89 = scmp.eq.s32.totalorder %s25, 1
      %p90 = por %p88, %p89
      %p92 = scmp.ne.s32.totalorder %s77, %s91
      %p93 = scmp.eq.s32.totalorder %s25, 0
      %p94 = por %p92, %p93
      %s96 = sadd.s32 %s95, 1
      %p99 = scmp.eq.s32.totalorder %s19, 1
      %p100 = scmp.ne.s32.totalorder %s95, %s97
      %p101 = scmp.eq.s32.totalorder %s19, 0
      %p102 = por %p100, %p101
      %p103 = scmp.ne.s32.totalorder %s95, %s97
      %p104 = scmp.eq.s32.totalorder %s24, 1
      %p105 = por %p103, %p104
      %p106 = scmp.ne.s32.totalorder %s97, %s98
      %p107 = scmp.eq.s32.totalorder %s24, 0
      %p108 = por %p106, %p107
      %p109 = scmp.ne.s32.totalorder %s97, %s98
      %p110 = scmp.eq.s32.totalorder %s25, 1
      %p111 = por %p109, %p110
      %p113 = scmp.ne.s32.totalorder %s98, %s112
      %p114 = scmp.eq.s32.totalorder %s25, 0
      %p115 = por %p113, %p114
      %s117 = sadd.s32 %s116, 1
      %p120 = scmp.eq.s32.totalorder %s19, 1
      %p121 = scmp.ne.s32.totalorder %s116, %s118
      %p122 = scmp.eq.s32.totalorder %s19, 0
      %p123 = por %p121, %p122
      %p124 = scmp.ne.s32.totalorder %s116, %s118
      %p125 = scmp.eq.s32.totalorder %s24, 1
      %p126 = por %p124, %p125
      %p127 = scmp.ne.s32.totalorder %s118, %s119
      %p128 = scmp.eq.s32.totalorder %s24, 0
      %p129 = por %p127, %p128
      %p130 = scmp.ne.s32.totalorder %s118, %s119
      %p131 = scmp.eq.s32.totalorder %s25, 1
      %p132 = por %p130, %p131
      %p134 = scmp.ne.s32.totalorder %s119, %s133
      %p135 = scmp.eq.s32.totalorder %s25, 0
      %p136 = por %p134, %p135
      %s138 = sadd.s32 %s137, 1
      %p141 = scmp.eq.s32.totalorder %s19, 1
      %p142 = scmp.ne.s32.totalorder %s137, %s139
      %p143 = scmp.eq.s32.totalorder %s19, 0
      %p144 = por %p142, %p143
      %p145 = scmp.ne.s32.totalorder %s137, %s139
      %p146 = scmp.eq.s32.totalorder %s24, 1
      %p147 = por %p145, %p146
      %p148 = scmp.ne.s32.totalorder %s139, %s140
      %p149 = scmp.eq.s32.totalorder %s24, 0
      %p150 = por %p148, %p149
      %p151 = scmp.ne.s32.totalorder %s139, %s140
      %p152 = scmp.eq.s32.totalorder %s25, 1
      %p153 = por %p151, %p152
      %p155 = scmp.ne.s32.totalorder %s140, %s154
      %p156 = scmp.eq.s32.totalorder %s25, 0
      %p157 = por %p155, %p156
      %s159 = sadd.s32 %s158, 1
      %p162 = scmp.eq.s32.totalorder %s19, 1
      %p163 = scmp.ne.s32.totalorder %s158, %s160
      %p164 = scmp.eq.s32.totalorder %s19, 0
      %p165 = por %p163, %p164
      %p166 = scmp.ne.s32.totalorder %s158, %s160
      %p167 = scmp.eq.s32.totalorder %s24, 1
      %p168 = por %p166, %p167
      %p169 = scmp.ne.s32.totalorder %s160, %s161
      %p170 = scmp.eq.s32.totalorder %s24, 0
      %p171 = por %p169, %p170
      %p172 = scmp.ne.s32.totalorder %s160, %s161
      %p173 = scmp.eq.s32.totalorder %s25, 1
      %p174 = por %p172, %p173
      %p176 = scmp.ne.s32.totalorder %s161, %s175
      %p177 = scmp.eq.s32.totalorder %s25, 0
      %p178 = por %p176, %p177
      %s179 = ssub.s32 %s19, %s26
      %p180 = scmp.eq.s32.totalorder %s179, 0
      %s182 = sadd.s32 %s181, 1
      %s183 = scalar_select %p180, %s181, %s182
      %p186 = pneg %p180
      %p187 = scmp.eq.s32.totalorder %s19, 1
      %p188 = por %p186, %p187
      %p189 = scmp.ne.s32.totalorder %s181, %s184
      %p190 = scmp.eq.s32.totalorder %s19, 0
      %p191 = por %p189, %p190
      %p192 = scmp.ne.s32.totalorder %s181, %s184
      %p193 = scmp.eq.s32.totalorder %s24, 1
      %p194 = por %p192, %p193
      %p195 = scmp.ne.s32.totalorder %s184, %s185
      %p196 = scmp.eq.s32.totalorder %s24, 0
      %p197 = por %p195, %p196
      %p198 = scmp.ne.s32.totalorder %s184, %s185
      %p199 = scmp.eq.s32.totalorder %s25, 1
      %p200 = por %p198, %p199
      %p202 = scmp.ne.s32.totalorder %s185, %s201
      %p203 = scmp.eq.s32.totalorder %s25, 0
      %p204 = por %p202, %p203
      %p205 = scmp.le.s32.totalorder 1, %s19
      %p206 = scmp.lt.s32.totalorder %s19, 3
      %p207 = pnand %p205, %p206
      %p208 = pneg %p207
      // Predicated region
      $region9: #{encoder_forward.5} parent=5 // pred_check
        _
      $region10: #{encoder_forward.5} parent=5 // pred_check_branch
        %210 = sbr.rel (%p207) target = $region12
      $region11: #{encoder_forward.5} parent=5 // pred_region
        %s211 = ssub.s32 %s19, 1
        // Predicated region
        $region13: #{encoder_forward.5} parent=11 // pred_check
          %p212 = pneg %p66
        $region14: #{encoder_forward.5} parent=11 // pred_check_branch
          %214 = sbr.rel (%p212) target = $region16
        $region15: #{encoder_forward.5} parent=11 // pred_region
          %216 = vsyncadd [#allocation5], 0
          %s218 = sshll.u32 %s1, 4
          %s219 = int_to_ptr.hbm [resolvable:$true] %s218
          %s220 = sshll.u32 [#allocation4], 4
          %s221 = int_to_ptr.vmem [resolvable:$true] %s220
          %223 = dma.hbm_to_vmem [thread:$0]  %s219, 16, %s221, [#allocation5]
        $region16: #{encoder_forward.5} parent=11 // pred_fallthru
          _
        // Predicated region
        $region17: #{encoder_forward.5} parent=11 // pred_check
          %p224 = pneg %p87
        $region18: #{encoder_forward.5} parent=11 // pred_check_branch
          %226 = sbr.rel (%p224) target = $region20
        $region19: #{encoder_forward.5} parent=11 // pred_region
          %228 = vsyncadd [#allocation5], 0
          %s230 = sshll.u32 %s2, 4
          %s231 = int_to_ptr.hbm [resolvable:$true] %s230
          %s232 = sshll.u32 [#allocation6], 4
          %s233 = int_to_ptr.vmem [resolvable:$true] %s232
          %235 = dma.hbm_to_vmem [thread:$0]  %s231, 16, %s233, [#allocation5]
        $region20: #{encoder_forward.5} parent=11 // pred_fallthru
          _
        // Predicated region
        $region21: #{encoder_forward.5} parent=11 // pred_check
          %p236 = pneg %p108
        $region22: #{encoder_forward.5} parent=11 // pred_check_branch
          %238 = sbr.rel (%p236) target = $region24
        $region23: #{encoder_forward.5} parent=11 // pred_region
          %240 = vsyncadd [#allocation8], 0
          %s241 = sshll.u32 %s3, 4
          %s242 = int_to_ptr.hbm [resolvable:$true] %s241
          %s243 = sshll.u32 [#allocation7], 4
          %s244 = int_to_ptr.vmem [resolvable:$true] %s243
          %249 = dma.hbm_to_vmem [thread:$0]  %s242, 6144, %s244, [#allocation8], 384, 384, 24
        $region24: #{encoder_forward.5} parent=11 // pred_fallthru
          _
        // Predicated region
        $region25: #{encoder_forward.5} parent=11 // pred_check
          %p250 = pneg %p129
        $region26: #{encoder_forward.5} parent=11 // pred_check_branch
          %252 = sbr.rel (%p250) target = $region28
        $region27: #{encoder_forward.5} parent=11 // pred_region
          _
        $region28: #{encoder_forward.5} parent=11 // pred_fallthru
          _
        // Predicated region
        $region29: #{encoder_forward.5} parent=11 // pred_check
          %p253 = pneg %p150
        $region30: #{encoder_forward.5} parent=11 // pred_check_branch
          %255 = sbr.rel (%p253) target = $region32
        $region31: #{encoder_forward.5} parent=11 // pred_region
          %257 = vsyncadd [#allocation8], 0
          %s258 = sshll.u32 %s5, 4
          %s259 = int_to_ptr.hbm [resolvable:$true] %s258
          %s260 = sshll.u32 [#allocation9], 4
          %s261 = int_to_ptr.vmem [resolvable:$true] %s260
          %266 = dma.hbm_to_vmem [thread:$0]  %s259, 2048, %s261, [#allocation8], 128, 128, 8
        $region32: #{encoder_forward.5} parent=11 // pred_fallthru
          _
        // Predicated region
        $region33: #{encoder_forward.5} parent=11 // pred_check
          %p267 = pneg %p171
        $region34: #{encoder_forward.5} parent=11 // pred_check_branch
          %269 = sbr.rel (%p267) target = $region36
        $region35: #{encoder_forward.5} parent=11 // pred_region
          %271 = vsyncadd [#allocation11], 0
          %s273 = sshll.u32 %s6, 4
          %s274 = int_to_ptr.hbm [resolvable:$true] %s273
          %s275 = sshll.u32 [#allocation10], 4
          %s276 = int_to_ptr.vmem [resolvable:$true] %s275
          %278 = dma.hbm_to_vmem [thread:$0]  %s274, 16, %s276, [#allocation11]
        $region36: #{encoder_forward.5} parent=11 // pred_fallthru
          _
      $region12: #{encoder_forward.5} parent=5 // pred_fallthru
        _
      %p279 = scmp.lt.s32.totalorder %s19, 2
      // Predicated region
      $region37: #{encoder_forward.5} parent=5 // pred_check
        %p280 = pneg %p279
      $region38: #{encoder_forward.5} parent=5 // pred_check_branch
        %282 = sbr.rel (%p280) target = $region40
      $region39: #{encoder_forward.5} parent=5 // pred_region
        // Predicated region
        $region41: #{encoder_forward.5} parent=39 // pred_check
          %p283 = pneg %p39
        $region42: #{encoder_forward.5} parent=39 // pred_check_branch
          %285 = sbr.rel (%p283) target = $region44
        $region43: #{encoder_forward.5} parent=39 // pred_region
          %s286 = sand.u32 %s29, 1
          %s287 = scalar_lea.sflag [#allocation3], %s286
          %s288 = sand.u32 %s29, 1
          %s289 = smul.addr %s288, 8
          %s290 = scalar_lea.vmem [#allocation2], %s289
          %292 = vsyncadd %s287, 0
          %s293 = smul.addr %s19, 8
          %s294 = scalar_lea.hbm %s0, %s293
          %s296 = sshll.u32 %s294, 4
          %s297 = int_to_ptr.hbm [resolvable:$true] %s296
          %s298 = sshll.u32 %s290, 4
          %s299 = int_to_ptr.vmem [resolvable:$true] %s298
          %301 = dma.hbm_to_vmem [thread:$0]  %s297, 128, %s299, %s287
        $region44: #{encoder_forward.5} parent=39 // pred_fallthru
          _
      $region40: #{encoder_forward.5} parent=5 // pred_fallthru
        _
      %p302 = scmp.le.s32.totalorder 1, %s19
      %p303 = scmp.lt.s32.totalorder %s19, 3
      %p304 = pnand %p302, %p303
      %p305 = pneg %p304
      // Predicated region
      $region45: #{encoder_forward.5} parent=5 // pred_check
        _
      $region46: #{encoder_forward.5} parent=5 // pred_check_branch
        %307 = sbr.rel (%p304) target = $region48
      $region47: #{encoder_forward.5} parent=5 // pred_region
        %s308 = ssub.s32 %s19, 1
        %s309 = sand.u32 %s32, 1
        %s310 = scalar_lea.sflag [#allocation3], %s309
        %s311 = sand.u32 %s32, 1
        %s312 = smul.addr %s311, 8
        %s313 = scalar_lea.vmem [#allocation2], %s312
        // Predicated region
        $region49: #{encoder_forward.5} parent=47 // pred_check
          %p314 = pneg %p45
        $region50: #{encoder_forward.5} parent=47 // pred_check_branch
          %316 = sbr.rel (%p314) target = $region52
        $region51: #{encoder_forward.5} parent=47 // pred_region
          %318 = dma.done %s310, 128
        $region52: #{encoder_forward.5} parent=47 // pred_fallthru
          _
        // Predicated region
        $region53: #{encoder_forward.5} parent=47 // pred_check
          %p319 = pneg %p66
        $region54: #{encoder_forward.5} parent=47 // pred_check_branch
          %321 = sbr.rel (%p319) target = $region56
        $region55: #{encoder_forward.5} parent=47 // pred_region
          %323 = dma.done [#allocation5], 16
        $region56: #{encoder_forward.5} parent=47 // pred_fallthru
          _
        // Predicated region
        $region57: #{encoder_forward.5} parent=47 // pred_check
          %p324 = pneg %p87
        $region58: #{encoder_forward.5} parent=47 // pred_check_branch
          %326 = sbr.rel (%p324) target = $region60
        $region59: #{encoder_forward.5} parent=47 // pred_region
          %328 = dma.done [#allocation5], 16
        $region60: #{encoder_forward.5} parent=47 // pred_fallthru
          _
        // Predicated region
        $region61: #{encoder_forward.5} parent=47 // pred_check
          %p329 = pneg %p108
        $region62: #{encoder_forward.5} parent=47 // pred_check_branch
          %331 = sbr.rel (%p329) target = $region64
        $region63: #{encoder_forward.5} parent=47 // pred_region
          %333 = dma.done [#allocation8], 6144
        $region64: #{encoder_forward.5} parent=47 // pred_fallthru
          _
        // Predicated region
        $region65: #{encoder_forward.5} parent=47 // pred_check
          %p334 = pneg %p150
        $region66: #{encoder_forward.5} parent=47 // pred_check_branch
          %336 = sbr.rel (%p334) target = $region68
        $region67: #{encoder_forward.5} parent=47 // pred_region
          %338 = dma.done [#allocation8], 2048
        $region68: #{encoder_forward.5} parent=47 // pred_fallthru
          _
        // Predicated region
        $region69: #{encoder_forward.5} parent=47 // pred_check
          %p339 = pneg %p171
        $region70: #{encoder_forward.5} parent=47 // pred_check_branch
          %341 = sbr.rel (%p339) target = $region72
        $region71: #{encoder_forward.5} parent=47 // pred_region
          %343 = dma.done [#allocation11], 16
        $region72: #{encoder_forward.5} parent=47 // pred_fallthru
          _
        %s344 = sand.u32 %s32, 1
        %s345 = scalar_lea.sflag [#allocation3], %s344
        %s346 = sand.u32 %s32, 1
        %s347 = smul.addr %s346, 8
        %s348 = scalar_lea.vmem [#allocation2], %s347
        %p349 = pneg %p45
        %p350 = pneg %p42
        %p351 = pneg %p66
        %p352 = pneg %p63
        %p353 = pneg %p87
        %p354 = pneg %p84
        %p355 = pneg %p108
        %p356 = pneg %p105
        %p357 = pneg %p129
        %p358 = pneg %p126
        %p359 = pneg %p150
        %p360 = pneg %p147
        %p361 = pneg %p171
        %p362 = pneg %p168
        %p363 = pneg %p197
        %p364 = pneg %p194
        %p365 = scmp.lt.s32.totalorder %s24, 1
        %s366 = scalar_select %p365, %s24, 1
        %s367 = smul.addr %s366, 8
        %s368 = scalar_lea.vmem %s7, %s367
        %p369 = scmp.lt.s32.totalorder %s24, 1
        %s370 = scalar_select %p369, %s24, 1
        %s371 = smul.addr %s370, 8
        %s372 = scalar_lea.vmem %s7, %s371
        %v373 = vld [vmem:[%s313] sm:$0xff]
        %v374 = vld [vmem:[#allocation4] sm:$0x1]
        %v375 = vld [vmem:[#allocation6] sm:$0x1]
        %376 = vadd.xlane.f32.xlu0 %v373
        %v377 = vpop.xlane.xlu0 %376
        %v378 = vrcp.pop 128.0
        %v379 = vmul.f32 128.0, %v378
        %v380 = vsub.f32 1.0, %v379
        %v381 = vmul.f32 %v378, %v380
        %v382 = vadd.f32 %v378, %v381
        %vm383 = vweird.f32 %v378
        %v384 = vsel %vm383, %v378, %v382
        %v385 = vmul.f32 %v377, %v384
        %v386 = vsub.f32 %v373, %v385
        %v387 = vmul.f32 %v386, %v386
        %388 = vadd.xlane.f32.xlu0 %v387
        %v389 = vpop.xlane.xlu0 %388
        %v390 = vmul.f32 %v389, 0.007874016
        %v391 = vrsqrt.pop %v390
        %v392 = vmul.f32 %v391, %v390
        %v393 = vmul.f32 %v392, %v391
        %v394 = vmul.f32 0.5, %v393
        %v395 = vsub.f32 1.5, %v394
        %v396 = vmul.f32 %v391, %v395
        %v397 = vmul.f32 %v390, %v396
        %vm398 = vcmp.eq.f32.partialorder %v390, inf
        %v399 = vsel %vm398, %v390, %v397
        %vm400 = vcmp.eq.f32.partialorder %v390, 0.0
        %v401 = vand.u32 %v390, 2147483648
        %v402 = vsel %vm400, %v401, %v399
        %v404 = vperm.slane %v374, 0
        %v406 = vmul.f32 %v404, %v386
        %v407 = vadd.f32 %v402, 1e-06
        %v408 = vrcp.pop %v407
        %v409 = vmul.f32 %v407, %v408
        %v410 = vsub.f32 1.0, %v409
        %v411 = vmul.f32 %v408, %v410
        %v412 = vadd.f32 %v408, %v411
        %vm413 = vweird.f32 %v407
        %vm414 = vweird.f32 %v408
        %vm415 = vmor %vm413, %vm414
        %v416 = vsel %vm415, %v408, %v412
        %v417 = vand.u32 2147483647, %v407
        %vm418 = vcmp.eq.f32.partialorder %v417, 8.507059e+37
        %v419 = vand.u32 %v407, 2147483648
        %v420 = vor.u32 1.1754944e-38, %v419
        %v421 = vsel %vm418, %v420, %v416
        %v422 = vmul.f32 %v406, %v421
        %v424 = vperm.slane %v375, 0
        %v426 = vadd.f32 %v422, %v424
        %v427 = vld [vmem:[#allocation7] sm:$0xff]
        %v428 = vld [vmem:[#allocation7 + $0x8] sm:$0xff]
        %v429 = vld [vmem:[#allocation7 + $0x10] sm:$0xff]
        %v430 = vld [vmem:[#allocation7 + $0x18] sm:$0xff]
        %v431 = vld [vmem:[#allocation7 + $0x20] sm:$0xff]
        %v432 = vld [vmem:[#allocation7 + $0x28] sm:$0xff]
        %v433 = vld [vmem:[#allocation7 + $0x30] sm:$0xff]
        %v434 = vld [vmem:[#allocation7 + $0x38] sm:$0xff]
        %v435 = vld [vmem:[#allocation7 + $0x40] sm:$0xff]
        %v436 = vld [vmem:[#allocation7 + $0x48] sm:$0xff]
        %v437 = vld [vmem:[#allocation7 + $0x50] sm:$0xff]
        %v438 = vld [vmem:[#allocation7 + $0x58] sm:$0xff]
        %v439 = vld [vmem:[#allocation7 + $0x60] sm:$0xff]
        %v440 = vld [vmem:[#allocation7 + $0x68] sm:$0xff]
        %v441 = vld [vmem:[#allocation7 + $0x70] sm:$0xff]
        %v442 = vld [vmem:[#allocation7 + $0x78] sm:$0xff]
        %v443 = vld [vmem:[#allocation7 + $0x80] sm:$0xff]
        %v444 = vld [vmem:[#allocation7 + $0x88] sm:$0xff]
        %v445 = vld [vmem:[#allocation7 + $0x90] sm:$0xff]
        %v446 = vld [vmem:[#allocation7 + $0x98] sm:$0xff]
        %v447 = vld [vmem:[#allocation7 + $0xa0] sm:$0xff]
        %v448 = vld [vmem:[#allocation7 + $0xa8] sm:$0xff]
        %v449 = vld [vmem:[#allocation7 + $0xb0] sm:$0xff]
        %v450 = vld [vmem:[#allocation7 + $0xb8] sm:$0xff]
        %v451 = vld [vmem:[#allocation7 + $0xc0] sm:$0xff]
        %v452 = vld [vmem:[#allocation7 + $0xc8] sm:$0xff]
        %v453 = vld [vmem:[#allocation7 + $0xd0] sm:$0xff]
        %v454 = vld [vmem:[#allocation7 + $0xd8] sm:$0xff]
        %v455 = vld [vmem:[#allocation7 + $0xe0] sm:$0xff]
        %v456 = vld [vmem:[#allocation7 + $0xe8] sm:$0xff]
        %v457 = vld [vmem:[#allocation7 + $0xf0] sm:$0xff]
        %v458 = vld [vmem:[#allocation7 + $0xf8] sm:$0xff]
        %v459 = vld [vmem:[#allocation7 + $0x100] sm:$0xff]
        %v460 = vld [vmem:[#allocation7 + $0x108] sm:$0xff]
        %v461 = vld [vmem:[#allocation7 + $0x110] sm:$0xff]
        %v462 = vld [vmem:[#allocation7 + $0x118] sm:$0xff]
        %v463 = vld [vmem:[#allocation7 + $0x120] sm:$0xff]
        %v464 = vld [vmem:[#allocation7 + $0x128] sm:$0xff]
        %v465 = vld [vmem:[#allocation7 + $0x130] sm:$0xff]
        %v466 = vld [vmem:[#allocation7 + $0x138] sm:$0xff]
        %v467 = vld [vmem:[#allocation7 + $0x140] sm:$0xff]
        %v468 = vld [vmem:[#allocation7 + $0x148] sm:$0xff]
        %v469 = vld [vmem:[#allocation7 + $0x150] sm:$0xff]
        %v470 = vld [vmem:[#allocation7 + $0x158] sm:$0xff]
        %v471 = vld [vmem:[#allocation7 + $0x160] sm:$0xff]
        %v472 = vld [vmem:[#allocation7 + $0x168] sm:$0xff]
        %v473 = vld [vmem:[#allocation7 + $0x170] sm:$0xff]
        %v474 = vld [vmem:[#allocation7 + $0x178] sm:$0xff]
        %v475 = vld [vmem:[%s4] sm:$0x7]
        %v477 = vperm.slane %v475, 0
        %v478 = vperm.slane %v475, 1
        %v479 = vperm.slane %v475, 2
        %483 = vmatpush.msra.mxu0 %v472
        %484 = vmatpush.msra.mxu0 %v469
        %485 = vmatpush.msra.mxu0 %v466
        %486 = vmatpush.msra.mxu0 %v463
        %487 = vmatpush.msra.mxu0 %v460
        %488 = vmatpush.msra.mxu0 %v457
        %489 = vmatpush.msra.mxu0 %v454
        %490 = vmatpush.msra.mxu0 %v451
        %491 = vmatpush.msra.mxu0 %v448
        %492 = vmatpush.msra.mxu0 %v445
        %493 = vmatpush.msra.mxu0 %v442
        %494 = vmatpush.msra.mxu0 %v439
        %495 = vmatpush.msra.mxu0 %v436
        %496 = vmatpush.msra.mxu0 %v433
        %497 = vmatpush.msra.mxu0 %v430
        %498 = vmatpush.msra.mxu0 %v427
        %499 = vmatmul.f32.gmra.mxu0 %v426
        %v500 = vpop.f32.mrf.mxu0
        %v501 = vadd.f32 %v477, %v500
        %502 = vdwg.mxu0
        %503 = vmatpush.msra.mxu0 %v473
        %504 = vmatpush.msra.mxu0 %v470
        %505 = vmatpush.msra.mxu0 %v467
        %506 = vmatpush.msra.mxu0 %v464
        %507 = vmatpush.msra.mxu0 %v461
        %508 = vmatpush.msra.mxu0 %v458
        %509 = vmatpush.msra.mxu0 %v455
        %510 = vmatpush.msra.mxu0 %v452
        %511 = vmatpush.msra.mxu0 %v449
        %512 = vmatpush.msra.mxu0 %v446
        %513 = vmatpush.msra.mxu0 %v443
        %514 = vmatpush.msra.mxu0 %v440
        %515 = vmatpush.msra.mxu0 %v437
        %516 = vmatpush.msra.mxu0 %v434
        %517 = vmatpush.msra.mxu0 %v431
        %518 = vmatpush.msra.mxu0 %v428
        %519 = vmatmul.f32.gmra.mxu0 %v426
        %v520 = vpop.f32.mrf.mxu0
        %v521 = vadd.f32 %v478, %v520
        %522 = vdwg.mxu0
        %523 = vmatpush.msra.mxu0 %v474
        %524 = vmatpush.msra.mxu0 %v471
        %525 = vmatpush.msra.mxu0 %v468
        %526 = vmatpush.msra.mxu0 %v465
        %527 = vmatpush.msra.mxu0 %v462
        %528 = vmatpush.msra.mxu0 %v459
        %529 = vmatpush.msra.mxu0 %v456
        %530 = vmatpush.msra.mxu0 %v453
        %531 = vmatpush.msra.mxu0 %v450
        %532 = vmatpush.msra.mxu0 %v447
        %533 = vmatpush.msra.mxu0 %v444
        %534 = vmatpush.msra.mxu0 %v441
        %535 = vmatpush.msra.mxu0 %v438
        %536 = vmatpush.msra.mxu0 %v435
        %537 = vmatpush.msra.mxu0 %v432
        %538 = vmatpush.msra.mxu0 %v429
        %539 = vmatmul.f32.gmra.mxu0 %v426
        %v540 = vpop.f32.mrf.mxu0
        %v541 = vadd.f32 %v479, %v540
        %542 = vdwg.mxu0
        %v543 = vmul.f32 %v501, 0.17677669
        %vm544 = vcmask 261120
        %v546 = vsel %vm544, %v543, 0
        %v549 = vsel %vm544, %v521, 0
        %551 = vmatpush.xpose.msra.mxu0 0.0
        %552 = vmatpush.xpose.msra.mxu0 0.0
        %553 = vmatpush.xpose.msra.mxu0 0.0
        %554 = vmatpush.xpose.msra.mxu0 0.0
        %555 = vmatpush.xpose.msra.mxu0 0.0
        %556 = vmatpush.xpose.msra.mxu0 0.0
        %557 = vmatpush.xpose.msra.mxu0 0.0
        %558 = vmatpush.xpose.msra.mxu0 0.0
        %559 = vmatpush.xpose.msra.mxu0 0.0
        %560 = vmatpush.xpose.msra.mxu0 0.0
        %561 = vmatpush.xpose.msra.mxu0 0.0
        %562 = vmatpush.xpose.msra.mxu0 0.0
        %563 = vmatpush.xpose.msra.mxu0 0.0
        %564 = vmatpush.xpose.msra.mxu0 0.0
        %565 = vmatpush.xpose.msra.mxu0 0.0
        %566 = vmatpush.xpose.msra.mxu0 %v549
        %567 = vmatmul.f32.gmra.mxu0 %v546
        %v568 = vpop.f32.mrf.mxu0
        %v569 = vadd.f32 0.0, %v568
        %570 = vdwg.mxu0
        %vm571 = vcmask 64512
        %v572 = vsel %vm571, %v569, -inf
        %573 = vmax.xlane.f32.xlu0 %v572
        %v574 = vpop.xlane.xlu0 %573
        %v575 = vsub.f32 %v569, %v574
        %v576 = vmul.f32 %v575, 1.442695
        %v577 = vpow.pop %v576
        %v578 = vsel %vm571, %v577, 0.0
        %579 = vadd.xlane.f32.xlu0 %v578
        %v580 = vpop.xlane.xlu0 %579
        %v581 = vrcp.pop %v580
        %v582 = vmul.f32 %v577, %v581
        %v584 = vsel %vm571, %v582, 0
        %586 = vmatpush.msra.mxu0 0.0
        %587 = vmatpush.msra.mxu0 0.0
        %588 = vmatpush.msra.mxu0 0.0
        %589 = vmatpush.msra.mxu0 0.0
        %590 = vmatpush.msra.mxu0 0.0
        %591 = vmatpush.msra.mxu0 0.0
        %592 = vmatpush.msra.mxu0 0.0
        %593 = vmatpush.msra.mxu0 0.0
        %594 = vmatpush.msra.mxu0 0.0
        %595 = vmatpush.msra.mxu0 0.0
        %596 = vmatpush.msra.mxu0 0.0
        %597 = vmatpush.msra.mxu0 0.0
        %598 = vmatpush.msra.mxu0 0.0
        %599 = vmatpush.msra.mxu0 0.0
        %600 = vmatpush.msra.mxu0 0.0
        %601 = vmatpush.msra.mxu0 %v541
        %602 = vmatmul.f32.gmra.mxu0 %v584
        %v603 = vpop.f32.mrf.mxu0
        %v604 = vadd.f32 0.0, %v603
        %605 = vdwg.mxu0
        %606 = vrot.lane.b32.xlu0 %v543, 96
        %v607 = vpop.permute.xlu0 %606
        %608 = vrot.lane.b32.xlu0 %v521, 96
        %v609 = vpop.permute.xlu0 %608
        %v610 = vsel %vm544, %v607, 0
        %v612 = vsel %vm544, %v609, 0
        %614 = vmatpush.xpose.msra.mxu0 0.0
        %615 = vmatpush.xpose.msra.mxu0 0.0
        %616 = vmatpush.xpose.msra.mxu0 0.0
        %617 = vmatpush.xpose.msra.mxu0 0.0
        %618 = vmatpush.xpose.msra.mxu0 0.0
        %619 = vmatpush.xpose.msra.mxu0 0.0
        %620 = vmatpush.xpose.msra.mxu0 0.0
        %621 = vmatpush.xpose.msra.mxu0 0.0
        %622 = vmatpush.xpose.msra.mxu0 0.0
        %623 = vmatpush.xpose.msra.mxu0 0.0
        %624 = vmatpush.xpose.msra.mxu0 0.0
        %625 = vmatpush.xpose.msra.mxu0 0.0
        %626 = vmatpush.xpose.msra.mxu0 0.0
        %627 = vmatpush.xpose.msra.mxu0 0.0
        %628 = vmatpush.xpose.msra.mxu0 0.0
        %629 = vmatpush.xpose.msra.mxu0 %v612
        %630 = vmatmul.f32.gmra.mxu0 %v610
        %v631 = vpop.f32.mrf.mxu0
        %v632 = vadd.f32 0.0, %v631
        %633 = vdwg.mxu0
        %v634 = vsel %vm571, %v632, -inf
        %635 = vmax.xlane.f32.xlu0 %v634
        %v636 = vpop.xlane.xlu0 %635
        %v637 = vsub.f32 %v632, %v636
        %v638 = vmul.f32 %v637, 1.442695
        %v639 = vpow.pop %v638
        %v640 = vsel %vm571, %v639, 0.0
        %641 = vadd.xlane.f32.xlu0 %v640
        %v642 = vpop.xlane.xlu0 %641
        %v643 = vrcp.pop %v642
        %v644 = vmul.f32 %v639, %v643
        %646 = vrot.lane.b32.xlu0 %v541, 96
        %v647 = vpop.permute.xlu0 %646
        %v650 = vsel %vm571, %v644, 0
        %652 = vmatpush.msra.mxu0 0.0
        %653 = vmatpush.msra.mxu0 0.0
        %654 = vmatpush.msra.mxu0 0.0
        %655 = vmatpush.msra.mxu0 0.0
        %656 = vmatpush.msra.mxu0 0.0
        %657 = vmatpush.msra.mxu0 0.0
        %658 = vmatpush.msra.mxu0 0.0
        %659 = vmatpush.msra.mxu0 0.0
        %660 = vmatpush.msra.mxu0 0.0
        %661 = vmatpush.msra.mxu0 0.0
        %662 = vmatpush.msra.mxu0 0.0
        %663 = vmatpush.msra.mxu0 0.0
        %664 = vmatpush.msra.mxu0 0.0
        %665 = vmatpush.msra.mxu0 0.0
        %666 = vmatpush.msra.mxu0 0.0
        %667 = vmatpush.msra.mxu0 %v647
        %668 = vmatmul.f32.gmra.mxu0 %v650
        %v669 = vpop.f32.mrf.mxu0
        %v670 = vadd.f32 0.0, %v669
        %671 = vdwg.mxu0
        %672 = vrot.lane.b32.xlu0 %v543, 64
        %v673 = vpop.permute.xlu0 %672
        %674 = vrot.lane.b32.xlu0 %v521, 64
        %v675 = vpop.permute.xlu0 %674
        %v676 = vsel %vm544, %v673, 0
        %v678 = vsel %vm544, %v675, 0
        %680 = vmatpush.xpose.msra.mxu0 0.0
        %681 = vmatpush.xpose.msra.mxu0 0.0
        %682 = vmatpush.xpose.msra.mxu0 0.0
        %683 = vmatpush.xpose.msra.mxu0 0.0
        %684 = vmatpush.xpose.msra.mxu0 0.0
        %685 = vmatpush.xpose.msra.mxu0 0.0
        %686 = vmatpush.xpose.msra.mxu0 0.0
        %687 = vmatpush.xpose.msra.mxu0 0.0
        %688 = vmatpush.xpose.msra.mxu0 0.0
        %689 = vmatpush.xpose.msra.mxu0 0.0
        %690 = vmatpush.xpose.msra.mxu0 0.0
        %691 = vmatpush.xpose.msra.mxu0 0.0
        %692 = vmatpush.xpose.msra.mxu0 0.0
        %693 = vmatpush.xpose.msra.mxu0 0.0
        %694 = vmatpush.xpose.msra.mxu0 0.0
        %695 = vmatpush.xpose.msra.mxu0 %v678
        %696 = vmatmul.f32.gmra.mxu0 %v676
        %v697 = vpop.f32.mrf.mxu0
        %v698 = vadd.f32 0.0, %v697
        %699 = vdwg.mxu0
        %v700 = vsel %vm571, %v698, -inf
        %701 = vmax.xlane.f32.xlu0 %v700
        %v702 = vpop.xlane.xlu0 %701
        %v703 = vsub.f32 %v698, %v702
        %v704 = vmul.f32 %v703, 1.442695
        %v705 = vpow.pop %v704
        %v706 = vsel %vm571, %v705, 0.0
        %707 = vadd.xlane.f32.xlu0 %v706
        %v708 = vpop.xlane.xlu0 %707
        %v709 = vrcp.pop %v708
        %v710 = vmul.f32 %v705, %v709
        %711 = vrot.lane.b32.xlu0 %v541, 64
        %v712 = vpop.permute.xlu0 %711
        %v715 = vsel %vm571, %v710, 0
        %717 = vmatpush.msra.mxu0 0.0
        %718 = vmatpush.msra.mxu0 0.0
        %719 = vmatpush.msra.mxu0 0.0
        %720 = vmatpush.msra.mxu0 0.0
        %721 = vmatpush.msra.mxu0 0.0
        %722 = vmatpush.msra.mxu0 0.0
        %723 = vmatpush.msra.mxu0 0.0
        %724 = vmatpush.msra.mxu0 0.0
        %725 = vmatpush.msra.mxu0 0.0
        %726 = vmatpush.msra.mxu0 0.0
        %727 = vmatpush.msra.mxu0 0.0
        %728 = vmatpush.msra.mxu0 0.0
        %729 = vmatpush.msra.mxu0 0.0
        %730 = vmatpush.msra.mxu0 0.0
        %731 = vmatpush.msra.mxu0 0.0
        %732 = vmatpush.msra.mxu0 %v712
        %733 = vmatmul.f32.gmra.mxu0 %v715
        %v734 = vpop.f32.mrf.mxu0
        %v735 = vadd.f32 0.0, %v734
        %736 = vdwg.mxu0
        %737 = vrot.lane.b32.xlu0 %v543, 32
        %v738 = vpop.permute.xlu0 %737
        %739 = vrot.lane.b32.xlu0 %v521, 32
        %v740 = vpop.permute.xlu0 %739
        %v741 = vsel %vm544, %v738, 0
        %v743 = vsel %vm544, %v740, 0
        %745 = vmatpush.xpose.msra.mxu0 0.0
        %746 = vmatpush.xpose.msra.mxu0 0.0
        %747 = vmatpush.xpose.msra.mxu0 0.0
        %748 = vmatpush.xpose.msra.mxu0 0.0
        %749 = vmatpush.xpose.msra.mxu0 0.0
        %750 = vmatpush.xpose.msra.mxu0 0.0
        %751 = vmatpush.xpose.msra.mxu0 0.0
        %752 = vmatpush.xpose.msra.mxu0 0.0
        %753 = vmatpush.xpose.msra.mxu0 0.0
        %754 = vmatpush.xpose.msra.mxu0 0.0
        %755 = vmatpush.xpose.msra.mxu0 0.0
        %756 = vmatpush.xpose.msra.mxu0 0.0
        %757 = vmatpush.xpose.msra.mxu0 0.0
        %758 = vmatpush.xpose.msra.mxu0 0.0
        %759 = vmatpush.xpose.msra.mxu0 0.0
        %760 = vmatpush.xpose.msra.mxu0 %v743
        %761 = vmatmul.f32.gmra.mxu0 %v741
        %v762 = vpop.f32.mrf.mxu0
        %v763 = vadd.f32 0.0, %v762
        %764 = vdwg.mxu0
        %v765 = vsel %vm571, %v763, -inf
        %766 = vmax.xlane.f32.xlu0 %v765
        %v767 = vpop.xlane.xlu0 %766
        %v768 = vsub.f32 %v763, %v767
        %v769 = vmul.f32 %v768, 1.442695
        %v770 = vpow.pop %v769
        %v771 = vsel %vm571, %v770, 0.0
        %772 = vadd.xlane.f32.xlu0 %v771
        %v773 = vpop.xlane.xlu0 %772
        %v774 = vrcp.pop %v773
        %v775 = vmul.f32 %v770, %v774
        %776 = vrot.lane.b32.xlu0 %v541, 32
        %v777 = vpop.permute.xlu0 %776
        %v780 = vsel %vm571, %v775, 0
        %782 = vmatpush.msra.mxu0 0.0
        %783 = vmatpush.msra.mxu0 0.0
        %784 = vmatpush.msra.mxu0 0.0
        %785 = vmatpush.msra.mxu0 0.0
        %786 = vmatpush.msra.mxu0 0.0
        %787 = vmatpush.msra.mxu0 0.0
        %788 = vmatpush.msra.mxu0 0.0
        %789 = vmatpush.msra.mxu0 0.0
        %790 = vmatpush.msra.mxu0 0.0
        %791 = vmatpush.msra.mxu0 0.0
        %792 = vmatpush.msra.mxu0 0.0
        %793 = vmatpush.msra.mxu0 0.0
        %794 = vmatpush.msra.mxu0 0.0
        %795 = vmatpush.msra.mxu0 0.0
        %796 = vmatpush.msra.mxu0 0.0
        %797 = vmatpush.msra.mxu0 %v777
        %798 = vmatmul.f32.gmra.mxu0 %v780
        %v799 = vpop.f32.mrf.mxu0
        %v800 = vadd.f32 0.0, %v799
        %801 = vdwg.mxu0
        %803 = vrot.lane.b32.xlu0 %v670, 32
        %v804 = vpop.permute.xlu0 %803
        %807 = vrot.lane.b32.xlu0 %v735, 64
        %v808 = vpop.permute.xlu0 %807
        %811 = vrot.lane.b32.xlu0 %v800, 96
        %v812 = vpop.permute.xlu0 %811
        %v814 = vsel %vm544, %v604, %v804
        %vm815 = vcmask 523264
        %v816 = vsel %vm815, %v814, %v808
        %vm817 = vcmask 785408
        %v818 = vsel %vm817, %v816, %v812
        %v819 = vld [vmem:[#allocation9] sm:$0xff]
        %v820 = vld [vmem:[#allocation9 + $0x8] sm:$0xff]
        %v821 = vld [vmem:[#allocation9 + $0x10] sm:$0xff]
        %v822 = vld [vmem:[#allocation9 + $0x18] sm:$0xff]
        %v823 = vld [vmem:[#allocation9 + $0x20] sm:$0xff]
        %v824 = vld [vmem:[#allocation9 + $0x28] sm:$0xff]
        %v825 = vld [vmem:[#allocation9 + $0x30] sm:$0xff]
        %v826 = vld [vmem:[#allocation9 + $0x38] sm:$0xff]
        %v827 = vld [vmem:[#allocation9 + $0x40] sm:$0xff]
        %v828 = vld [vmem:[#allocation9 + $0x48] sm:$0xff]
        %v829 = vld [vmem:[#allocation9 + $0x50] sm:$0xff]
        %v830 = vld [vmem:[#allocation9 + $0x58] sm:$0xff]
        %v831 = vld [vmem:[#allocation9 + $0x60] sm:$0xff]
        %v832 = vld [vmem:[#allocation9 + $0x68] sm:$0xff]
        %v833 = vld [vmem:[#allocation9 + $0x70] sm:$0xff]
        %v834 = vld [vmem:[#allocation9 + $0x78] sm:$0xff]
        %v835 = vld [vmem:[#allocation10] sm:$0x1]
        %v837 = vperm.slane %v835, 0
        %839 = vmatpush.msra.mxu0 %v834
        %840 = vmatpush.msra.mxu0 %v833
        %841 = vmatpush.msra.mxu0 %v832
        %842 = vmatpush.msra.mxu0 %v831
        %843 = vmatpush.msra.mxu0 %v830
        %844 = vmatpush.msra.mxu0 %v829
        %845 = vmatpush.msra.mxu0 %v828
        %846 = vmatpush.msra.mxu0 %v827
        %847 = vmatpush.msra.mxu0 %v826
        %848 = vmatpush.msra.mxu0 %v825
        %849 = vmatpush.msra.mxu0 %v824
        %850 = vmatpush.msra.mxu0 %v823
        %851 = vmatpush.msra.mxu0 %v822
        %852 = vmatpush.msra.mxu0 %v821
        %853 = vmatpush.msra.mxu0 %v820
        %854 = vmatpush.msra.mxu0 %v819
        %855 = vmatmul.f32.gmra.mxu0 %v818
        %v856 = vpop.f32.mrf.mxu0
        %v857 = vadd.f32 %v837, %v856
        %858 = vdwg.mxu0
        %v859 = vadd.f32 %v857, %v373
        %860 = vst [vmem:[%s372] sm:$0xff] %v859
        %p861 = scmp.lt.s32.totalorder %s24, 1
        %s862 = scalar_select %p861, %s24, 1
        %s863 = smul.addr %s862, 8
        %s864 = scalar_lea.vmem %s7, %s863
        // Predicated region
        $region73: #{encoder_forward.5} parent=47 // pred_check
          %p865 = pneg %p194
        $region74: #{encoder_forward.5} parent=47 // pred_check_branch
          %867 = sbr.rel (%p865) target = $region76
        $region75: #{encoder_forward.5} parent=47 // pred_region
          _
        $region76: #{encoder_forward.5} parent=47 // pred_fallthru
          _
      $region48: #{encoder_forward.5} parent=5 // pred_fallthru
        _
      %p868 = scmp.le.s32.totalorder 2, %s19
      // Predicated region
      $region77: #{encoder_forward.5} parent=5 // pred_check
        %p869 = pneg %p868
      $region78: #{encoder_forward.5} parent=5 // pred_check_branch
        %871 = sbr.rel (%p869) target = $region80
      $region79: #{encoder_forward.5} parent=5 // pred_region
        %s872 = ssub.s32 %s19, 2
        // Predicated region
        $region81: #{encoder_forward.5} parent=79 // pred_check
          %p873 = pneg %p200
        $region82: #{encoder_forward.5} parent=79 // pred_check_branch
          %875 = sbr.rel (%p873) target = $region84
        $region83: #{encoder_forward.5} parent=79 // pred_region
          %p876 = scmp.lt.s32.totalorder %s25, 1
          %s877 = scalar_select %p876, %s25, 1
          %s878 = smul.addr %s877, 8
          %s879 = scalar_lea.vmem %s7, %s878
        $region84: #{encoder_forward.5} parent=79 // pred_fallthru
          _
      $region80: #{encoder_forward.5} parent=5 // pred_fallthru
        _
    $region6: #{encoder_forward.5} parent=1 // loop_footer
      %s23 = sadd.s32 1, %s19
    $region7: #{encoder_forward.5} parent=1 // loop_footer_branch
      %18 = sbr.rel target = $region3
    $region8: #{encoder_forward.5} parent=1 // loop_exit
      _
    %880 = vsyncpa [#allocation3], 1
    %s881 = scalar_lea.sflag [#allocation3], 1
    %882 = vsyncpa %s881, 1
    %883 = vsyncpa [#allocation5], 1
    %884 = vsyncpa [#allocation8], 1
    %885 = vsyncpa [#allocation11], 1

// kernel: encoder_forward.8
$region0: #{encoder_forward.8}
  #allocation0 [shape = 'u32[]', space=smem, size = 0x4, offset = 0x4, fixed_abs, tag = 'smem constant byte address 0x4 - core index']
  #allocation1 [shape = 'u32[72,128]{1,0:T(1,128)}', space=vmem, size = 0x9000, scoped, tag = 'internal scratch']
  #allocation2 [shape = 'f32[8,128]{1,0:T(8,128)}', space=vmem, size = 0x1000, scoped, tag = 'scratch operand']
  #allocation3 [shape = 'f32[8,128]{1,0:T(8,128)}', space=vmem, size = 0x1000, scoped, tag = 'scratch operand']
  %s0 = inlined_call_operand.vmem [shape: f32[16,128], index: 0, kind: input, shape index: {}]
  %s1 = inlined_call_operand.vmem [shape: f32[1,128], index: 1, kind: input, shape index: {}]
  %s2 = inlined_call_operand.vmem [shape: f32[1,128], index: 2, kind: input, shape index: {}]
  %s3 = inlined_call_operand.vmem [shape: f32[128,512], index: 3, kind: input, shape index: {}]
  %s4 = inlined_call_operand.vmem [shape: f32[1,512], index: 4, kind: input, shape index: {}]
  %s5 = inlined_call_operand.vmem [shape: f32[512,128], index: 5, kind: input, shape index: {}]
  %s6 = inlined_call_operand.vmem [shape: f32[1,128], index: 6, kind: input, shape index: {}]
  %s7 = inlined_call_operand.vmem [shape: f32[16,128], index: 7, kind: output, shape index: {}]
  %s8 = sld [smem:[#allocation0]]
  $region69: #{encoder_forward.8} parent=0
    _
  %s10 = ssub.s32 1, %s8
  %s11 = scalar_select 0, %s10, %s8
  loop: start=0, step=1, limit=4
  $region2: #{encoder_forward.8} parent=0 // loop_pre_header
    _
  $region3: #{encoder_forward.8} parent=0 // loop_header
    %s13 = sphi 0, %s17
    %p14 = scmp.ge.s32.totalorder %s13, 4
    %s20 = sphi 0, %s32
    %s21 = sphi 0, %s28
    %s22 = sphi 0, %s20
    %s23 = sphi 0, %s21
    %s24 = sphi 0, %s22
    %s25 = sphi 0, %s23
    %s35 = sphi 0, %s37
    %s38 = sphi 0, %s35
    %s39 = sphi 0, %s38
    %s55 = sphi 0, %s39
    %s59 = sphi 0, %s59
    %s61 = sphi 0, %s59
    %s62 = sphi 0, %s61
    %s76 = sphi 0, %s62
    %s80 = sphi 0, %s80
    %s82 = sphi 0, %s80
    %s83 = sphi 0, %s82
    %s97 = sphi 0, %s83
    %s103 = sphi 0, %s105
    %s106 = sphi 0, %s103
    %s107 = sphi 0, %s106
    %s123 = sphi 0, %s107
    %s129 = sphi 0, %s131
    %s132 = sphi 0, %s129
    %s133 = sphi 0, %s132
    %s149 = sphi 0, %s133
    %s155 = sphi 0, %s157
    %s158 = sphi 0, %s155
    %s159 = sphi 0, %s158
    %s175 = sphi 0, %s159
    %s179 = sphi 0, %s179
    %s181 = sphi 0, %s179
    %s182 = sphi 0, %s181
    %s196 = sphi 0, %s182
    %s202 = sphi 0, %s204
    %s205 = sphi 0, %s202
    %s206 = sphi 0, %s205
    %s222 = sphi 0, %s206
  $region4: #{encoder_forward.8} parent=0 // loop_header_branch
    %16 = sbr.rel (%p14) target = $region8
  $region5: #{encoder_forward.8} parent=0 // loop_body
    %s18 = ssub.s32 %s13, 1
    %s19 = ssub.s32 %s13, 2
    %s26 = sadd.s32 1, %s21
    %p27 = scmp.ge.s32.totalorder %s26, 1
    %s28 = scalar_select %p27, 0, %s26
    %s29 = sadd.s32 1, %s20
    %s30 = scalar_select %p27, %s29, %s20
    %p31 = scmp.ge.s32.totalorder %s30, 2
    %s32 = scalar_select %p31, 0, %s30
    %s33 = ssub.s32 %s20, %s32
    %p34 = scmp.eq.s32.totalorder %s33, 0
    %s36 = sadd.s32 %s35, 1
    %s37 = scalar_select %p34, %s35, %s36
    %p40 = pneg %p34
    %p41 = scmp.eq.s32.totalorder %s13, 1
    %p42 = por %p40, %p41
    %p43 = scmp.ne.s32.totalorder %s35, %s38
    %p44 = scmp.eq.s32.totalorder %s13, 0
    %p45 = por %p43, %p44
    %p46 = scmp.ne.s32.totalorder %s35, %s38
    %p47 = scmp.eq.s32.totalorder %s18, 1
    %p48 = por %p46, %p47
    %p49 = scmp.ne.s32.totalorder %s38, %s39
    %p50 = scmp.eq.s32.totalorder %s18, 0
    %p51 = por %p49, %p50
    %p52 = scmp.ne.s32.totalorder %s38, %s39
    %p53 = scmp.eq.s32.totalorder %s19, 1
    %p54 = por %p52, %p53
    %p56 = scmp.ne.s32.totalorder %s39, %s55
    %p57 = scmp.eq.s32.totalorder %s19, 0
    %p58 = por %p56, %p57
    %s60 = sadd.s32 %s59, 1
    %p63 = scmp.eq.s32.totalorder %s13, 1
    %p64 = scmp.ne.s32.totalorder %s59, %s61
    %p65 = scmp.eq.s32.totalorder %s13, 0
    %p66 = por %p64, %p65
    %p67 = scmp.ne.s32.totalorder %s59, %s61
    %p68 = scmp.eq.s32.totalorder %s18, 1
    %p69 = por %p67, %p68
    %p70 = scmp.ne.s32.totalorder %s61, %s62
    %p71 = scmp.eq.s32.totalorder %s18, 0
    %p72 = por %p70, %p71
    %p73 = scmp.ne.s32.totalorder %s61, %s62
    %p74 = scmp.eq.s32.totalorder %s19, 1
    %p75 = por %p73, %p74
    %p77 = scmp.ne.s32.totalorder %s62, %s76
    %p78 = scmp.eq.s32.totalorder %s19, 0
    %p79 = por %p77, %p78
    %s81 = sadd.s32 %s80, 1
    %p84 = scmp.eq.s32.totalorder %s13, 1
    %p85 = scmp.ne.s32.totalorder %s80, %s82
    %p86 = scmp.eq.s32.totalorder %s13, 0
    %p87 = por %p85, %p86
    %p88 = scmp.ne.s32.totalorder %s80, %s82
    %p89 = scmp.eq.s32.totalorder %s18, 1
    %p90 = por %p88, %p89
    %p91 = scmp.ne.s32.totalorder %s82, %s83
    %p92 = scmp.eq.s32.totalorder %s18, 0
    %p93 = por %p91, %p92
    %p94 = scmp.ne.s32.totalorder %s82, %s83
    %p95 = scmp.eq.s32.totalorder %s19, 1
    %p96 = por %p94, %p95
    %p98 = scmp.ne.s32.totalorder %s83, %s97
    %p99 = scmp.eq.s32.totalorder %s19, 0
    %p100 = por %p98, %p99
    %s101 = ssub.s32 %s21, %s28
    %p102 = scmp.eq.s32.totalorder %s101, 0
    %s104 = sadd.s32 %s103, 1
    %s105 = scalar_select %p102, %s103, %s104
    %p108 = pneg %p102
    %p109 = scmp.eq.s32.totalorder %s13, 1
    %p110 = por %p108, %p109
    %p111 = scmp.ne.s32.totalorder %s103, %s106
    %p112 = scmp.eq.s32.totalorder %s13, 0
    %p113 = por %p111, %p112
    %p114 = scmp.ne.s32.totalorder %s103, %s106
    %p115 = scmp.eq.s32.totalorder %s18, 1
    %p116 = por %p114, %p115
    %p117 = scmp.ne.s32.totalorder %s106, %s107
    %p118 = scmp.eq.s32.totalorder %s18, 0
    %p119 = por %p117, %p118
    %p120 = scmp.ne.s32.totalorder %s106, %s107
    %p121 = scmp.eq.s32.totalorder %s19, 1
    %p122 = por %p120, %p121
    %p124 = scmp.ne.s32.totalorder %s107, %s123
    %p125 = scmp.eq.s32.totalorder %s19, 0
    %p126 = por %p124, %p125
    %s127 = ssub.s32 %s21, %s28
    %p128 = scmp.eq.s32.totalorder %s127, 0
    %s130 = sadd.s32 %s129, 1
    %s131 = scalar_select %p128, %s129, %s130
    %p134 = pneg %p128
    %p135 = scmp.eq.s32.totalorder %s13, 1
    %p136 = por %p134, %p135
    %p137 = scmp.ne.s32.totalorder %s129, %s132
    %p138 = scmp.eq.s32.totalorder %s13, 0
    %p139 = por %p137, %p138
    %p140 = scmp.ne.s32.totalorder %s129, %s132
    %p141 = scmp.eq.s32.totalorder %s18, 1
    %p142 = por %p140, %p141
    %p143 = scmp.ne.s32.totalorder %s132, %s133
    %p144 = scmp.eq.s32.totalorder %s18, 0
    %p145 = por %p143, %p144
    %p146 = scmp.ne.s32.totalorder %s132, %s133
    %p147 = scmp.eq.s32.totalorder %s19, 1
    %p148 = por %p146, %p147
    %p150 = scmp.ne.s32.totalorder %s133, %s149
    %p151 = scmp.eq.s32.totalorder %s19, 0
    %p152 = por %p150, %p151
    %s153 = ssub.s32 %s21, %s28
    %p154 = scmp.eq.s32.totalorder %s153, 0
    %s156 = sadd.s32 %s155, 1
    %s157 = scalar_select %p154, %s155, %s156
    %p160 = pneg %p154
    %p161 = scmp.eq.s32.totalorder %s13, 1
    %p162 = por %p160, %p161
    %p163 = scmp.ne.s32.totalorder %s155, %s158
    %p164 = scmp.eq.s32.totalorder %s13, 0
    %p165 = por %p163, %p164
    %p166 = scmp.ne.s32.totalorder %s155, %s158
    %p167 = scmp.eq.s32.totalorder %s18, 1
    %p168 = por %p166, %p167
    %p169 = scmp.ne.s32.totalorder %s158, %s159
    %p170 = scmp.eq.s32.totalorder %s18, 0
    %p171 = por %p169, %p170
    %p172 = scmp.ne.s32.totalorder %s158, %s159
    %p173 = scmp.eq.s32.totalorder %s19, 1
    %p174 = por %p172, %p173
    %p176 = scmp.ne.s32.totalorder %s159, %s175
    %p177 = scmp.eq.s32.totalorder %s19, 0
    %p178 = por %p176, %p177
    %s180 = sadd.s32 %s179, 1
    %p183 = scmp.eq.s32.totalorder %s13, 1
    %p184 = scmp.ne.s32.totalorder %s179, %s181
    %p185 = scmp.eq.s32.totalorder %s13, 0
    %p186 = por %p184, %p185
    %p187 = scmp.ne.s32.totalorder %s179, %s181
    %p188 = scmp.eq.s32.totalorder %s18, 1
    %p189 = por %p187, %p188
    %p190 = scmp.ne.s32.totalorder %s181, %s182
    %p191 = scmp.eq.s32.totalorder %s18, 0
    %p192 = por %p190, %p191
    %p193 = scmp.ne.s32.totalorder %s181, %s182
    %p194 = scmp.eq.s32.totalorder %s19, 1
    %p195 = por %p193, %p194
    %p197 = scmp.ne.s32.totalorder %s182, %s196
    %p198 = scmp.eq.s32.totalorder %s19, 0
    %p199 = por %p197, %p198
    %s200 = ssub.s32 %s20, %s32
    %p201 = scmp.eq.s32.totalorder %s200, 0
    %s203 = sadd.s32 %s202, 1
    %s204 = scalar_select %p201, %s202, %s203
    %p207 = pneg %p201
    %p208 = scmp.eq.s32.totalorder %s13, 1
    %p209 = por %p207, %p208
    %p210 = scmp.ne.s32.totalorder %s202, %s205
    %p211 = scmp.eq.s32.totalorder %s13, 0
    %p212 = por %p210, %p211
    %p213 = scmp.ne.s32.totalorder %s202, %s205
    %p214 = scmp.eq.s32.totalorder %s18, 1
    %p215 = por %p213, %p214
    %p216 = scmp.ne.s32.totalorder %s205, %s206
    %p217 = scmp.eq.s32.totalorder %s18, 0
    %p218 = por %p216, %p217
    %p219 = scmp.ne.s32.totalorder %s205, %s206
    %p220 = scmp.eq.s32.totalorder %s19, 1
    %p221 = por %p219, %p220
    %p223 = scmp.ne.s32.totalorder %s206, %s222
    %p224 = scmp.eq.s32.totalorder %s19, 0
    %p225 = por %p223, %p224
    %p226 = scmp.le.s32.totalorder 1, %s13
    %p227 = scmp.lt.s32.totalorder %s13, 3
    %p228 = pnand %p226, %p227
    %p229 = pneg %p228
    // Predicated region
    $region9: #{encoder_forward.8} parent=5 // pred_check
      _
    $region10: #{encoder_forward.8} parent=5 // pred_check_branch
      %231 = sbr.rel (%p228) target = $region12
    $region11: #{encoder_forward.8} parent=5 // pred_region
      %s232 = ssub.s32 %s13, 1
      // Predicated region
      $region13: #{encoder_forward.8} parent=11 // pred_check
        %p233 = pneg %p72
      $region14: #{encoder_forward.8} parent=11 // pred_check_branch
        %235 = sbr.rel (%p233) target = $region16
      $region15: #{encoder_forward.8} parent=11 // pred_region
        _
      $region16: #{encoder_forward.8} parent=11 // pred_fallthru
        _
      // Predicated region
      $region17: #{encoder_forward.8} parent=11 // pred_check
        %p236 = pneg %p93
      $region18: #{encoder_forward.8} parent=11 // pred_check_branch
        %238 = sbr.rel (%p236) target = $region20
      $region19: #{encoder_forward.8} parent=11 // pred_region
        _
      $region20: #{encoder_forward.8} parent=11 // pred_fallthru
        _
      // Predicated region
      $region21: #{encoder_forward.8} parent=11 // pred_check
        %p239 = pneg %p119
      $region22: #{encoder_forward.8} parent=11 // pred_check_branch
        %241 = sbr.rel (%p239) target = $region24
      $region23: #{encoder_forward.8} parent=11 // pred_region
        %s242 = smul.u32 4, %s23
        %p243 = scmp.lt.s32.totalorder %s242, 3
        %s244 = scalar_select %p243, %s242, 3
        %s245 = smul.addr %s244, 8
        %s246 = scalar_lea.vmem %s3, %s245
        %s247 = smul.u32 4, %s23
      $region24: #{encoder_forward.8} parent=11 // pred_fallthru
        _
      // Predicated region
      $region25: #{encoder_forward.8} parent=11 // pred_check
        %p248 = pneg %p145
      $region26: #{encoder_forward.8} parent=11 // pred_check_branch
        %250 = sbr.rel (%p248) target = $region28
      $region27: #{encoder_forward.8} parent=11 // pred_region
        %s251 = smul.u32 4, %s23
        %p252 = scmp.lt.s32.totalorder %s251, 3
        %s253 = scalar_select %p252, %s251, 3
        %s254 = scalar_lea.vmem %s4, %s253
        %s255 = smul.u32 4, %s23
      $region28: #{encoder_forward.8} parent=11 // pred_fallthru
        _
      // Predicated region
      $region29: #{encoder_forward.8} parent=11 // pred_check
        %p256 = pneg %p171
      $region30: #{encoder_forward.8} parent=11 // pred_check_branch
        %258 = sbr.rel (%p256) target = $region32
      $region31: #{encoder_forward.8} parent=11 // pred_region
        %s259 = smul.u32 64, %s23
        %p260 = scmp.lt.s32.totalorder %s259, 63
        %s261 = scalar_select %p260, %s259, 63
        %s262 = smul.addr %s261, 8
        %s263 = scalar_lea.vmem %s5, %s262
        %s264 = smul.u32 64, %s23
      $region32: #{encoder_forward.8} parent=11 // pred_fallthru
        _
      // Predicated region
      $region33: #{encoder_forward.8} parent=11 // pred_check
        %p265 = pneg %p192
      $region34: #{encoder_forward.8} parent=11 // pred_check_branch
        %267 = sbr.rel (%p265) target = $region36
      $region35: #{encoder_forward.8} parent=11 // pred_region
        _
      $region36: #{encoder_forward.8} parent=11 // pred_fallthru
        _
    $region12: #{encoder_forward.8} parent=5 // pred_fallthru
      _
    %p268 = scmp.lt.s32.totalorder %s13, 2
    // Predicated region
    $region37: #{encoder_forward.8} parent=5 // pred_check
      %p269 = pneg %p268
    $region38: #{encoder_forward.8} parent=5 // pred_check_branch
      %271 = sbr.rel (%p269) target = $region40
    $region39: #{encoder_forward.8} parent=5 // pred_region
      // Predicated region
      $region41: #{encoder_forward.8} parent=39 // pred_check
        %p272 = pneg %p45
      $region42: #{encoder_forward.8} parent=39 // pred_check_branch
        %274 = sbr.rel (%p272) target = $region44
      $region43: #{encoder_forward.8} parent=39 // pred_region
        %p275 = scmp.lt.s32.totalorder %s20, 1
        %s276 = scalar_select %p275, %s20, 1
        %s277 = smul.addr %s276, 8
        %s278 = scalar_lea.vmem %s0, %s277
      $region44: #{encoder_forward.8} parent=39 // pred_fallthru
        _
    $region40: #{encoder_forward.8} parent=5 // pred_fallthru
      _
    %p279 = scmp.le.s32.totalorder 1, %s13
    %p280 = scmp.lt.s32.totalorder %s13, 3
    %p281 = pnand %p279, %p280
    %p282 = pneg %p281
    // Predicated region
    $region45: #{encoder_forward.8} parent=5 // pred_check
      _
    $region46: #{encoder_forward.8} parent=5 // pred_check_branch
      %284 = sbr.rel (%p281) target = $region48
    $region47: #{encoder_forward.8} parent=5 // pred_region
      %s285 = ssub.s32 %s13, 1
      %p286 = scmp.lt.s32.totalorder %s22, 1
      %s287 = scalar_select %p286, %s22, 1
      %s288 = smul.addr %s287, 8
      %s289 = scalar_lea.vmem %s0, %s288
      %p290 = pneg %p51
      %p291 = pneg %p48
      %p292 = pneg %p72
      %p293 = pneg %p69
      %p294 = pneg %p93
      %p295 = pneg %p90
      %s296 = smul.u32 4, %s23
      %p297 = scmp.lt.s32.totalorder %s296, 3
      %s298 = scalar_select %p297, %s296, 3
      %s299 = smul.addr %s298, 8
      %s300 = scalar_lea.vmem %s3, %s299
      %p301 = pneg %p119
      %p302 = pneg %p116
      %s303 = smul.u32 4, %s23
      %p304 = scmp.lt.s32.totalorder %s303, 3
      %s305 = scalar_select %p304, %s303, 3
      %s306 = scalar_lea.vmem %s4, %s305
      %p307 = pneg %p145
      %p308 = pneg %p142
      %s309 = smul.u32 64, %s23
      %p310 = scmp.lt.s32.totalorder %s309, 63
      %s311 = scalar_select %p310, %s309, 63
      %s312 = smul.addr %s311, 8
      %s313 = scalar_lea.vmem %s5, %s312
      %p314 = pneg %p171
      %p315 = pneg %p168
      %p316 = pneg %p192
      %p317 = pneg %p189
      %p318 = pneg %p218
      %p319 = pneg %p215
      %p320 = scmp.lt.s32.totalorder %s22, 1
      %s321 = scalar_select %p320, %s22, 1
      %s322 = smul.addr %s321, 8
      %s323 = scalar_lea.vmem %s7, %s322
      %p324 = scmp.lt.s32.totalorder %s22, 1
      %s325 = scalar_select %p324, %s22, 1
      %s326 = smul.addr %s325, 8
      %s327 = scalar_lea.vmem %s0, %s326
      %s328 = smul.u32 4, %s23
      %p329 = scmp.lt.s32.totalorder %s328, 3
      %s330 = scalar_select %p329, %s328, 3
      %s331 = smul.addr %s330, 8
      %s332 = scalar_lea.vmem %s3, %s331
      %s333 = smul.u32 4, %s23
      %s334 = smul.u32 4, %s23
      %p335 = scmp.lt.s32.totalorder %s334, 3
      %s336 = scalar_select %p335, %s334, 3
      %s337 = scalar_lea.vmem %s4, %s336
      %s338 = smul.u32 4, %s23
      %s339 = smul.u32 64, %s23
      %p340 = scmp.lt.s32.totalorder %s339, 63
      %s341 = scalar_select %p340, %s339, 63
      %s342 = smul.addr %s341, 8
      %s343 = scalar_lea.vmem %s5, %s342
      %s344 = smul.u32 64, %s23
      %p345 = scmp.lt.s32.totalorder %s22, 1
      %s346 = scalar_select %p345, %s22, 1
      %s347 = smul.addr %s346, 8
      %s348 = scalar_lea.vmem %s7, %s347
      %p349 = scmp.eq.s32.totalorder %s23, 0
      // Predicated region
      $region49: #{encoder_forward.8} parent=47 // pred_check
        %p350 = pneg %p349
      $region50: #{encoder_forward.8} parent=47 // pred_check_branch
        %352 = sbr.rel (%p350) target = $region52
      $region51: #{encoder_forward.8} parent=47 // pred_region
        %v353 = vld [vmem:[%s327] sm:$0xff]
        %v354 = vld [vmem:[%s1] sm:$0x1]
        %v355 = vld [vmem:[%s2] sm:$0x1]
        %356 = vadd.xlane.f32.xlu0 %v353
        %v357 = vpop.xlane.xlu0 %356
        %v358 = vrcp.pop 128.0
        %v359 = vmul.f32 128.0, %v358
        %v360 = vsub.f32 1.0, %v359
        %v361 = vmul.f32 %v358, %v360
        %v362 = vadd.f32 %v358, %v361
        %vm363 = vweird.f32 %v358
        %v364 = vsel %vm363, %v358, %v362
        %v365 = vmul.f32 %v357, %v364
        %v366 = vsub.f32 %v353, %v365
        %v367 = vmul.f32 %v366, %v366
        %368 = vadd.xlane.f32.xlu0 %v367
        %v369 = vpop.xlane.xlu0 %368
        %v370 = vmul.f32 %v369, 0.007874016
        %v371 = vrsqrt.pop %v370
        %v372 = vmul.f32 %v371, %v370
        %v373 = vmul.f32 %v372, %v371
        %v374 = vmul.f32 0.5, %v373
        %v375 = vsub.f32 1.5, %v374
        %v376 = vmul.f32 %v371, %v375
        %v377 = vmul.f32 %v370, %v376
        %vm378 = vcmp.eq.f32.partialorder %v370, inf
        %v379 = vsel %vm378, %v370, %v377
        %vm380 = vcmp.eq.f32.partialorder %v370, 0.0
        %v381 = vand.u32 %v370, 2147483648
        %v382 = vsel %vm380, %v381, %v379
        %v384 = vperm.slane %v354, 0
        %v386 = vmul.f32 %v384, %v366
        %v387 = vadd.f32 %v382, 1e-06
        %v388 = vrcp.pop %v387
        %v389 = vmul.f32 %v387, %v388
        %v390 = vsub.f32 1.0, %v389
        %v391 = vmul.f32 %v388, %v390
        %v392 = vadd.f32 %v388, %v391
        %vm393 = vweird.f32 %v387
        %vm394 = vweird.f32 %v388
        %vm395 = vmor %vm393, %vm394
        %v396 = vsel %vm395, %v388, %v392
        %v397 = vand.u32 2147483647, %v387
        %vm398 = vcmp.eq.f32.partialorder %v397, 8.507059e+37
        %v399 = vand.u32 %v387, 2147483648
        %v400 = vor.u32 1.1754944e-38, %v399
        %v401 = vsel %vm398, %v400, %v396
        %v402 = vmul.f32 %v386, %v401
        %v404 = vperm.slane %v355, 0
        %v406 = vadd.f32 %v402, %v404
        %407 = vst [vmem:[#allocation2] sm:$0xff] %v406
        %408 = vst [vmem:[#allocation3] sm:$0xff] 0.0
      $region52: #{encoder_forward.8} parent=47 // pred_fallthru
        _
      %v409 = vld [vmem:[%s332] sm:$0xff]
      %v410 = vld [vmem:[%s332 + $0x8] sm:$0xff]
      %v411 = vld [vmem:[%s332 + $0x10] sm:$0xff]
      %v412 = vld [vmem:[%s332 + $0x18] sm:$0xff]
      %v413 = vld [vmem:[%s332 + $0x20] sm:$0xff]
      %v414 = vld [vmem:[%s332 + $0x28] sm:$0xff]
      %v415 = vld [vmem:[%s332 + $0x30] sm:$0xff]
      %v416 = vld [vmem:[%s332 + $0x38] sm:$0xff]
      %v417 = vld [vmem:[%s332 + $0x40] sm:$0xff]
      %v418 = vld [vmem:[%s332 + $0x48] sm:$0xff]
      %v419 = vld [vmem:[%s332 + $0x50] sm:$0xff]
      %v420 = vld [vmem:[%s332 + $0x58] sm:$0xff]
      %v421 = vld [vmem:[%s332 + $0x60] sm:$0xff]
      %v422 = vld [vmem:[%s332 + $0x68] sm:$0xff]
      %v423 = vld [vmem:[%s332 + $0x70] sm:$0xff]
      %v424 = vld [vmem:[%s332 + $0x78] sm:$0xff]
      %v425 = vld [vmem:[%s332 + $0x80] sm:$0xff]
      %v426 = vld [vmem:[%s332 + $0x88] sm:$0xff]
      %v427 = vld [vmem:[%s332 + $0x90] sm:$0xff]
      %v428 = vld [vmem:[%s332 + $0x98] sm:$0xff]
      %v429 = vld [vmem:[%s332 + $0xa0] sm:$0xff]
      %v430 = vld [vmem:[%s332 + $0xa8] sm:$0xff]
      %v431 = vld [vmem:[%s332 + $0xb0] sm:$0xff]
      %v432 = vld [vmem:[%s332 + $0xb8] sm:$0xff]
      %v433 = vld [vmem:[%s332 + $0xc0] sm:$0xff]
      %v434 = vld [vmem:[%s332 + $0xc8] sm:$0xff]
      %v435 = vld [vmem:[%s332 + $0xd0] sm:$0xff]
      %v436 = vld [vmem:[%s332 + $0xd8] sm:$0xff]
      %v437 = vld [vmem:[%s332 + $0xe0] sm:$0xff]
      %v438 = vld [vmem:[%s332 + $0xe8] sm:$0xff]
      %v439 = vld [vmem:[%s332 + $0xf0] sm:$0xff]
      %v440 = vld [vmem:[%s332 + $0xf8] sm:$0xff]
      %v441 = vld [vmem:[%s332 + $0x100] sm:$0xff]
      %v442 = vld [vmem:[%s332 + $0x108] sm:$0xff]
      %v443 = vld [vmem:[%s332 + $0x110] sm:$0xff]
      %v444 = vld [vmem:[%s332 + $0x118] sm:$0xff]
      %v445 = vld [vmem:[%s332 + $0x120] sm:$0xff]
      %v446 = vld [vmem:[%s332 + $0x128] sm:$0xff]
      %v447 = vld [vmem:[%s332 + $0x130] sm:$0xff]
      %v448 = vld [vmem:[%s332 + $0x138] sm:$0xff]
      %v449 = vld [vmem:[%s332 + $0x140] sm:$0xff]
      %v450 = vld [vmem:[%s332 + $0x148] sm:$0xff]
      %v451 = vld [vmem:[%s332 + $0x150] sm:$0xff]
      %v452 = vld [vmem:[%s332 + $0x158] sm:$0xff]
      %v453 = vld [vmem:[%s332 + $0x160] sm:$0xff]
      %v454 = vld [vmem:[%s332 + $0x168] sm:$0xff]
      %v455 = vld [vmem:[%s332 + $0x170] sm:$0xff]
      %v456 = vld [vmem:[%s332 + $0x178] sm:$0xff]
      %v457 = vld [vmem:[%s332 + $0x180] sm:$0xff]
      %v458 = vld [vmem:[%s332 + $0x188] sm:$0xff]
      %v459 = vld [vmem:[%s332 + $0x190] sm:$0xff]
      %v460 = vld [vmem:[%s332 + $0x198] sm:$0xff]
      %v461 = vld [vmem:[%s332 + $0x1a0] sm:$0xff]
      %v462 = vld [vmem:[%s332 + $0x1a8] sm:$0xff]
      %v463 = vld [vmem:[%s332 + $0x1b0] sm:$0xff]
      %v464 = vld [vmem:[%s332 + $0x1b8] sm:$0xff]
      %v465 = vld [vmem:[%s332 + $0x1c0] sm:$0xff]
      %v466 = vld [vmem:[%s332 + $0x1c8] sm:$0xff]
      %v467 = vld [vmem:[%s332 + $0x1d0] sm:$0xff]
      %v468 = vld [vmem:[%s332 + $0x1d8] sm:$0xff]
      %v469 = vld [vmem:[%s332 + $0x1e0] sm:$0xff]
      %v470 = vld [vmem:[%s332 + $0x1e8] sm:$0xff]
      %v471 = vld [vmem:[%s332 + $0x1f0] sm:$0xff]
      %v472 = vld [vmem:[%s332 + $0x1f8] sm:$0xff]
      %v473 = vld [vmem:[#allocation2] sm:$0xff]
      %v474 = vld [vmem:[%s337] sm:$0xf]
      %v476 = vperm.slane %v474, 0
      %v477 = vperm.slane %v474, 1
      %v478 = vperm.slane %v474, 2
      %v479 = vperm.slane %v474, 3
      %484 = vmatpush.msra.mxu0 %v469
      %485 = vmatpush.msra.mxu0 %v465
      %486 = vmatpush.msra.mxu0 %v461
      %487 = vmatpush.msra.mxu0 %v457
      %488 = vmatpush.msra.mxu0 %v453
      %489 = vmatpush.msra.mxu0 %v449
      %490 = vmatpush.msra.mxu0 %v445
      %491 = vmatpush.msra.mxu0 %v441
      %492 = vmatpush.msra.mxu0 %v437
      %493 = vmatpush.msra.mxu0 %v433
      %494 = vmatpush.msra.mxu0 %v429
      %495 = vmatpush.msra.mxu0 %v425
      %496 = vmatpush.msra.mxu0 %v421
      %497 = vmatpush.msra.mxu0 %v417
      %498 = vmatpush.msra.mxu0 %v413
      %499 = vmatpush.msra.mxu0 %v409
      %500 = vmatmul.f32.gmra.mxu0 %v473
      %v501 = vpop.f32.mrf.mxu0
      %v502 = vadd.f32 %v476, %v501
      %503 = vdwg.mxu0
      %504 = vmatpush.msra.mxu0 %v470
      %505 = vmatpush.msra.mxu0 %v466
      %506 = vmatpush.msra.mxu0 %v462
      %507 = vmatpush.msra.mxu0 %v458
      %508 = vmatpush.msra.mxu0 %v454
      %509 = vmatpush.msra.mxu0 %v450
      %510 = vmatpush.msra.mxu0 %v446
      %511 = vmatpush.msra.mxu0 %v442
      %512 = vmatpush.msra.mxu0 %v438
      %513 = vmatpush.msra.mxu0 %v434
      %514 = vmatpush.msra.mxu0 %v430
      %515 = vmatpush.msra.mxu0 %v426
      %516 = vmatpush.msra.mxu0 %v422
      %517 = vmatpush.msra.mxu0 %v418
      %518 = vmatpush.msra.mxu0 %v414
      %519 = vmatpush.msra.mxu0 %v410
      %520 = vmatmul.f32.gmra.mxu0 %v473
      %v521 = vpop.f32.mrf.mxu0
      %v522 = vadd.f32 %v477, %v521
      %523 = vdwg.mxu0
      %524 = vmatpush.msra.mxu0 %v471
      %525 = vmatpush.msra.mxu0 %v467
      %526 = vmatpush.msra.mxu0 %v463
      %527 = vmatpush.msra.mxu0 %v459
      %528 = vmatpush.msra.mxu0 %v455
      %529 = vmatpush.msra.mxu0 %v451
      %530 = vmatpush.msra.mxu0 %v447
      %531 = vmatpush.msra.mxu0 %v443
      %532 = vmatpush.msra.mxu0 %v439
      %533 = vmatpush.msra.mxu0 %v435
      %534 = vmatpush.msra.mxu0 %v431
      %535 = vmatpush.msra.mxu0 %v427
      %536 = vmatpush.msra.mxu0 %v423
      %537 = vmatpush.msra.mxu0 %v419
      %538 = vmatpush.msra.mxu0 %v415
      %539 = vmatpush.msra.mxu0 %v411
      %540 = vmatmul.f32.gmra.mxu0 %v473
      %v541 = vpop.f32.mrf.mxu0
      %v542 = vadd.f32 %v478, %v541
      %543 = vdwg.mxu0
      %544 = vmatpush.msra.mxu0 %v472
      %545 = vmatpush.msra.mxu0 %v468
      %546 = vmatpush.msra.mxu0 %v464
      %547 = vmatpush.msra.mxu0 %v460
      %548 = vmatpush.msra.mxu0 %v456
      %549 = vmatpush.msra.mxu0 %v452
      %550 = vmatpush.msra.mxu0 %v448
      %551 = vmatpush.msra.mxu0 %v444
      %552 = vmatpush.msra.mxu0 %v440
      %553 = vmatpush.msra.mxu0 %v436
      %554 = vmatpush.msra.mxu0 %v432
      %555 = vmatpush.msra.mxu0 %v428
      %556 = vmatpush.msra.mxu0 %v424
      %557 = vmatpush.msra.mxu0 %v420
      %558 = vmatpush.msra.mxu0 %v416
      %559 = vmatpush.msra.mxu0 %v412
      %560 = vmatmul.f32.gmra.mxu0 %v473
      %v561 = vpop.f32.mrf.mxu0
      %v562 = vadd.f32 %v479, %v561
      %563 = vdwg.mxu0
      %v564 = vmax.f32 %v502, 0.0
      %v565 = vmax.f32 %v522, 0.0
      %v566 = vmax.f32 %v542, 0.0
      %v567 = vmax.f32 %v562, 0.0
      %v568 = vld [vmem:[%s343] sm:$0xff]
      %v569 = vld [vmem:[%s343 + $0x8] sm:$0xff]
      %v570 = vld [vmem:[%s343 + $0x10] sm:$0xff]
      %v571 = vld [vmem:[%s343 + $0x18] sm:$0xff]
      %v572 = vld [vmem:[%s343 + $0x20] sm:$0xff]
      %v573 = vld [vmem:[%s343 + $0x28] sm:$0xff]
      %v574 = vld [vmem:[%s343 + $0x30] sm:$0xff]
      %v575 = vld [vmem:[%s343 + $0x38] sm:$0xff]
      %v576 = vld [vmem:[%s343 + $0x40] sm:$0xff]
      %v577 = vld [vmem:[%s343 + $0x48] sm:$0xff]
      %v578 = vld [vmem:[%s343 + $0x50] sm:$0xff]
      %v579 = vld [vmem:[%s343 + $0x58] sm:$0xff]
      %v580 = vld [vmem:[%s343 + $0x60] sm:$0xff]
      %v581 = vld [vmem:[%s343 + $0x68] sm:$0xff]
      %v582 = vld [vmem:[%s343 + $0x70] sm:$0xff]
      %v583 = vld [vmem:[%s343 + $0x78] sm:$0xff]
      %v584 = vld [vmem:[%s343 + $0x80] sm:$0xff]
      %v585 = vld [vmem:[%s343 + $0x88] sm:$0xff]
      %v586 = vld [vmem:[%s343 + $0x90] sm:$0xff]
      %v587 = vld [vmem:[%s343 + $0x98] sm:$0xff]
      %v588 = vld [vmem:[%s343 + $0xa0] sm:$0xff]
      %v589 = vld [vmem:[%s343 + $0xa8] sm:$0xff]
      %v590 = vld [vmem:[%s343 + $0xb0] sm:$0xff]
      %v591 = vld [vmem:[%s343 + $0xb8] sm:$0xff]
      %v592 = vld [vmem:[%s343 + $0xc0] sm:$0xff]
      %v593 = vld [vmem:[%s343 + $0xc8] sm:$0xff]
      %v594 = vld [vmem:[%s343 + $0xd0] sm:$0xff]
      %v595 = vld [vmem:[%s343 + $0xd8] sm:$0xff]
      %v596 = vld [vmem:[%s343 + $0xe0] sm:$0xff]
      %v597 = vld [vmem:[%s343 + $0xe8] sm:$0xff]
      %v598 = vld [vmem:[%s343 + $0xf0] sm:$0xff]
      %v599 = vld [vmem:[%s343 + $0xf8] sm:$0xff]
      %v600 = vld [vmem:[%s343 + $0x100] sm:$0xff]
      %v601 = vld [vmem:[%s343 + $0x108] sm:$0xff]
      %v602 = vld [vmem:[%s343 + $0x110] sm:$0xff]
      %v603 = vld [vmem:[%s343 + $0x118] sm:$0xff]
      %v604 = vld [vmem:[%s343 + $0x120] sm:$0xff]
      %v605 = vld [vmem:[%s343 + $0x128] sm:$0xff]
      %v606 = vld [vmem:[%s343 + $0x130] sm:$0xff]
      %v607 = vld [vmem:[%s343 + $0x138] sm:$0xff]
      %v608 = vld [vmem:[%s343 + $0x140] sm:$0xff]
      %v609 = vld [vmem:[%s343 + $0x148] sm:$0xff]
      %v610 = vld [vmem:[%s343 + $0x150] sm:$0xff]
      %v611 = vld [vmem:[%s343 + $0x158] sm:$0xff]
      %v612 = vld [vmem:[%s343 + $0x160] sm:$0xff]
      %v613 = vld [vmem:[%s343 + $0x168] sm:$0xff]
      %v614 = vld [vmem:[%s343 + $0x170] sm:$0xff]
      %v615 = vld [vmem:[%s343 + $0x178] sm:$0xff]
      %v616 = vld [vmem:[%s343 + $0x180] sm:$0xff]
      %v617 = vld [vmem:[%s343 + $0x188] sm:$0xff]
      %v618 = vld [vmem:[%s343 + $0x190] sm:$0xff]
      %v619 = vld [vmem:[%s343 + $0x198] sm:$0xff]
      %v620 = vld [vmem:[%s343 + $0x1a0] sm:$0xff]
      %v621 = vld [vmem:[%s343 + $0x1a8] sm:$0xff]
      %v622 = vld [vmem:[%s343 + $0x1b0] sm:$0xff]
      %v623 = vld [vmem:[%s343 + $0x1b8] sm:$0xff]
      %v624 = vld [vmem:[%s343 + $0x1c0] sm:$0xff]
      %v625 = vld [vmem:[%s343 + $0x1c8] sm:$0xff]
      %v626 = vld [vmem:[%s343 + $0x1d0] sm:$0xff]
      %v627 = vld [vmem:[%s343 + $0x1d8] sm:$0xff]
      %v628 = vld [vmem:[%s343 + $0x1e0] sm:$0xff]
      %v629 = vld [vmem:[%s343 + $0x1e8] sm:$0xff]
      %v630 = vld [vmem:[%s343 + $0x1f0] sm:$0xff]
      %v631 = vld [vmem:[%s343 + $0x1f8] sm:$0xff]
      %v632 = vld [vmem:[#allocation3] sm:$0xff]
      %633 = vmatpush.msra.mxu0 %v583
      %634 = vmatpush.msra.mxu0 %v582
      %635 = vmatpush.msra.mxu0 %v581
      %636 = vmatpush.msra.mxu0 %v580
      %637 = vmatpush.msra.mxu0 %v579
      %638 = vmatpush.msra.mxu0 %v578
      %639 = vmatpush.msra.mxu0 %v577
      %640 = vmatpush.msra.mxu0 %v576
      %641 = vmatpush.msra.mxu0 %v575
      %642 = vmatpush.msra.mxu0 %v574
      %643 = vmatpush.msra.mxu0 %v573
      %644 = vmatpush.msra.mxu0 %v572
      %645 = vmatpush.msra.mxu0 %v571
      %646 = vmatpush.msra.mxu0 %v570
      %647 = vmatpush.msra.mxu0 %v569
      %648 = vmatpush.msra.mxu0 %v568
      %649 = vmatmul.f32.gmra.mxu0 %v564
      %v650 = vpop.f32.mrf.mxu0
      %v651 = vadd.f32 0.0, %v650
      %652 = vdwg.mxu0
      %653 = vmatpush.msra.mxu0 %v599
      %654 = vmatpush.msra.mxu0 %v598
      %655 = vmatpush.msra.mxu0 %v597
      %656 = vmatpush.msra.mxu0 %v596
      %657 = vmatpush.msra.mxu0 %v595
      %658 = vmatpush.msra.mxu0 %v594
      %659 = vmatpush.msra.mxu0 %v593
      %660 = vmatpush.msra.mxu0 %v592
      %661 = vmatpush.msra.mxu0 %v591
      %662 = vmatpush.msra.mxu0 %v590
      %663 = vmatpush.msra.mxu0 %v589
      %664 = vmatpush.msra.mxu0 %v588
      %665 = vmatpush.msra.mxu0 %v587
      %666 = vmatpush.msra.mxu0 %v586
      %667 = vmatpush.msra.mxu0 %v585
      %668 = vmatpush.msra.mxu0 %v584
      %669 = vmatmul.f32.gmra.mxu0 %v565
      %v670 = vpop.f32.mrf.mxu0
      %v671 = vadd.f32 %v651, %v670
      %672 = vdwg.mxu0
      %673 = vmatpush.msra.mxu0 %v615
      %674 = vmatpush.msra.mxu0 %v614
      %675 = vmatpush.msra.mxu0 %v613
      %676 = vmatpush.msra.mxu0 %v612
      %677 = vmatpush.msra.mxu0 %v611
      %678 = vmatpush.msra.mxu0 %v610
      %679 = vmatpush.msra.mxu0 %v609
      %680 = vmatpush.msra.mxu0 %v608
      %681 = vmatpush.msra.mxu0 %v607
      %682 = vmatpush.msra.mxu0 %v606
      %683 = vmatpush.msra.mxu0 %v605
      %684 = vmatpush.msra.mxu0 %v604
      %685 = vmatpush.msra.mxu0 %v603
      %686 = vmatpush.msra.mxu0 %v602
      %687 = vmatpush.msra.mxu0 %v601
      %688 = vmatpush.msra.mxu0 %v600
      %689 = vmatmul.f32.gmra.mxu0 %v566
      %v690 = vpop.f32.mrf.mxu0
      %v691 = vadd.f32 %v671, %v690
      %692 = vdwg.mxu0
      %693 = vmatpush.msra.mxu0 %v631
      %694 = vmatpush.msra.mxu0 %v630
      %695 = vmatpush.msra.mxu0 %v629
      %696 = vmatpush.msra.mxu0 %v628
      %697 = vmatpush.msra.mxu0 %v627
      %698 = vmatpush.msra.mxu0 %v626
      %699 = vmatpush.msra.mxu0 %v625
      %700 = vmatpush.msra.mxu0 %v624
      %701 = vmatpush.msra.mxu0 %v623
      %702 = vmatpush.msra.mxu0 %v622
      %703 = vmatpush.msra.mxu0 %v621
      %704 = vmatpush.msra.mxu0 %v620
      %705 = vmatpush.msra.mxu0 %v619
      %706 = vmatpush.msra.mxu0 %v618
      %707 = vmatpush.msra.mxu0 %v617
      %708 = vmatpush.msra.mxu0 %v616
      %709 = vmatmul.f32.gmra.mxu0 %v567
      %v710 = vpop.f32.mrf.mxu0
      %v711 = vadd.f32 %v691, %v710
      %712 = vdwg.mxu0
      %v713 = vadd.f32 %v632, %v711
      %714 = vst [vmem:[#allocation3] sm:$0xff] %v713
      // Predicated region
      $region53: #{encoder_forward.8} parent=47 // pred_check
        %p715 = pneg %p349
      $region54: #{encoder_forward.8} parent=47 // pred_check_branch
        %717 = sbr.rel (%p715) target = $region56
      $region55: #{encoder_forward.8} parent=47 // pred_region
        %v718 = vld [vmem:[#allocation3] sm:$0xff]
        %v719 = vld [vmem:[%s6] sm:$0x1]
        %v721 = vperm.slane %v719, 0
        %v723 = vadd.f32 %v718, %v721
        %v724 = vld [vmem:[%s327] sm:$0xff]
        %v725 = vadd.f32 %v723, %v724
        %726 = vst [vmem:[%s348] sm:$0xff] %v725
      $region56: #{encoder_forward.8} parent=47 // pred_fallthru
        _
      %p727 = scmp.lt.s32.totalorder %s22, 1
      %s728 = scalar_select %p727, %s22, 1
      %s729 = smul.addr %s728, 8
      %s730 = scalar_lea.vmem %s7, %s729
      // Predicated region
      $region57: #{encoder_forward.8} parent=47 // pred_check
        %p731 = pneg %p215
      $region58: #{encoder_forward.8} parent=47 // pred_check_branch
        %733 = sbr.rel (%p731) target = $region60
      $region59: #{encoder_forward.8} parent=47 // pred_region
        _
      $region60: #{encoder_forward.8} parent=47 // pred_fallthru
        _
    $region48: #{encoder_forward.8} parent=5 // pred_fallthru
      _
    %p734 = scmp.le.s32.totalorder 2, %s13
    // Predicated region
    $region61: #{encoder_forward.8} parent=5 // pred_check
      %p735 = pneg %p734
    $region62: #{encoder_forward.8} parent=5 // pred_check_branch
      %737 = sbr.rel (%p735) target = $region64
    $region63: #{encoder_forward.8} parent=5 // pred_region
      %s738 = ssub.s32 %s13, 2
      // Predicated region
      $region65: #{encoder_forward.8} parent=63 // pred_check
        %p739 = pneg %p221
      $region66: #{encoder_forward.8} parent=63 // pred_check_branch
        %741 = sbr.rel (%p739) target = $region68
      $region67: #{encoder_forward.8} parent=63 // pred_region
        %p742 = scmp.lt.s32.totalorder %s24, 1
        %s743 = scalar_select %p742, %s24, 1
        %s744 = smul.addr %s743, 8
        %s745 = scalar_lea.vmem %s7, %s744
      $region68: #{encoder_forward.8} parent=63 // pred_fallthru
        _
    $region64: #{encoder_forward.8} parent=5 // pred_fallthru
      _
  $region6: #{encoder_forward.8} parent=0 // loop_footer
    %s17 = sadd.s32 1, %s13
  $region7: #{encoder_forward.8} parent=0 // loop_footer_branch
    %12 = sbr.rel target = $region3
  $region8: #{encoder_forward.8} parent=0 // loop_exit
    _

// kernel: encoder_forward.7
$region0: #{encoder_forward.7}
  #allocation0 [shape = 'u32[]', space=smem, size = 0x4, offset = 0x4, fixed_abs, tag = 'smem constant byte address 0x4 - core index']
  #allocation1 [shape = 'u32[72,128]{1,0:T(1,128)}', space=vmem, size = 0x9000, scoped, tag = 'internal scratch']
  %s0 = inlined_call_operand.vmem [shape: f32[2,8,128], index: 0, kind: input, shape index: {}]
  %s1 = inlined_call_operand.vmem [shape: f32[1,128], index: 1, kind: input, shape index: {}]
  %s2 = inlined_call_operand.vmem [shape: f32[1,128], index: 2, kind: input, shape index: {}]
  %s3 = inlined_call_operand.vmem [shape: f32[128,384], index: 3, kind: input, shape index: {}]
  %s4 = inlined_call_operand.vmem [shape: f32[1,384], index: 4, kind: input, shape index: {}]
  %s5 = inlined_call_operand.vmem [shape: f32[128,128], index: 5, kind: input, shape index: {}]
  %s6 = inlined_call_operand.vmem [shape: f32[1,128], index: 6, kind: input, shape index: {}]
  %s7 = inlined_call_operand.vmem [shape: f32[2,8,128], index: 7, kind: output, shape index: {}]
  %s8 = sld [smem:[#allocation0]]
  $region61: #{encoder_forward.7} parent=0
    _
  %s10 = ssub.s32 1, %s8
  %s11 = scalar_select 0, %s10, %s8
  loop: start=0, step=1, limit=4
  $region2: #{encoder_forward.7} parent=0 // loop_pre_header
    _
  $region3: #{encoder_forward.7} parent=0 // loop_header
    %s13 = sphi 0, %s17
    %p14 = scmp.ge.s32.totalorder %s13, 4
    %s23 = sphi 0, %s25
    %s26 = sphi 0, %s23
    %s27 = sphi 0, %s26
    %s43 = sphi 0, %s27
    %s47 = sphi 0, %s47
    %s49 = sphi 0, %s47
    %s50 = sphi 0, %s49
    %s64 = sphi 0, %s50
    %s68 = sphi 0, %s68
    %s70 = sphi 0, %s68
    %s71 = sphi 0, %s70
    %s85 = sphi 0, %s71
    %s89 = sphi 0, %s89
    %s91 = sphi 0, %s89
    %s92 = sphi 0, %s91
    %s106 = sphi 0, %s92
    %s110 = sphi 0, %s110
    %s112 = sphi 0, %s110
    %s113 = sphi 0, %s112
    %s127 = sphi 0, %s113
    %s131 = sphi 0, %s131
    %s133 = sphi 0, %s131
    %s134 = sphi 0, %s133
    %s148 = sphi 0, %s134
    %s152 = sphi 0, %s152
    %s154 = sphi 0, %s152
    %s155 = sphi 0, %s154
    %s169 = sphi 0, %s155
    %s175 = sphi 0, %s177
    %s178 = sphi 0, %s175
    %s179 = sphi 0, %s178
    %s195 = sphi 0, %s179
  $region4: #{encoder_forward.7} parent=0 // loop_header_branch
    %16 = sbr.rel (%p14) target = $region8
  $region5: #{encoder_forward.7} parent=0 // loop_body
    %s18 = ssub.s32 %s13, 1
    %s19 = ssub.s32 %s13, 2
    %s20 = sadd.s32 %s13, 1
    %s21 = ssub.s32 %s13, %s20
    %p22 = scmp.eq.s32.totalorder %s21, 0
    %s24 = sadd.s32 %s23, 1
    %s25 = scalar_select %p22, %s23, %s24
    %p28 = pneg %p22
    %p29 = scmp.eq.s32.totalorder %s13, 1
    %p30 = por %p28, %p29
    %p31 = scmp.ne.s32.totalorder %s23, %s26
    %p32 = scmp.eq.s32.totalorder %s13, 0
    %p33 = por %p31, %p32
    %p34 = scmp.ne.s32.totalorder %s23, %s26
    %p35 = scmp.eq.s32.totalorder %s18, 1
    %p36 = por %p34, %p35
    %p37 = scmp.ne.s32.totalorder %s26, %s27
    %p38 = scmp.eq.s32.totalorder %s18, 0
    %p39 = por %p37, %p38
    %p40 = scmp.ne.s32.totalorder %s26, %s27
    %p41 = scmp.eq.s32.totalorder %s19, 1
    %p42 = por %p40, %p41
    %p44 = scmp.ne.s32.totalorder %s27, %s43
    %p45 = scmp.eq.s32.totalorder %s19, 0
    %p46 = por %p44, %p45
    %s48 = sadd.s32 %s47, 1
    %p51 = scmp.eq.s32.totalorder %s13, 1
    %p52 = scmp.ne.s32.totalorder %s47, %s49
    %p53 = scmp.eq.s32.totalorder %s13, 0
    %p54 = por %p52, %p53
    %p55 = scmp.ne.s32.totalorder %s47, %s49
    %p56 = scmp.eq.s32.totalorder %s18, 1
    %p57 = por %p55, %p56
    %p58 = scmp.ne.s32.totalorder %s49, %s50
    %p59 = scmp.eq.s32.totalorder %s18, 0
    %p60 = por %p58, %p59
    %p61 = scmp.ne.s32.totalorder %s49, %s50
    %p62 = scmp.eq.s32.totalorder %s19, 1
    %p63 = por %p61, %p62
    %p65 = scmp.ne.s32.totalorder %s50, %s64
    %p66 = scmp.eq.s32.totalorder %s19, 0
    %p67 = por %p65, %p66
    %s69 = sadd.s32 %s68, 1
    %p72 = scmp.eq.s32.totalorder %s13, 1
    %p73 = scmp.ne.s32.totalorder %s68, %s70
    %p74 = scmp.eq.s32.totalorder %s13, 0
    %p75 = por %p73, %p74
    %p76 = scmp.ne.s32.totalorder %s68, %s70
    %p77 = scmp.eq.s32.totalorder %s18, 1
    %p78 = por %p76, %p77
    %p79 = scmp.ne.s32.totalorder %s70, %s71
    %p80 = scmp.eq.s32.totalorder %s18, 0
    %p81 = por %p79, %p80
    %p82 = scmp.ne.s32.totalorder %s70, %s71
    %p83 = scmp.eq.s32.totalorder %s19, 1
    %p84 = por %p82, %p83
    %p86 = scmp.ne.s32.totalorder %s71, %s85
    %p87 = scmp.eq.s32.totalorder %s19, 0
    %p88 = por %p86, %p87
    %s90 = sadd.s32 %s89, 1
    %p93 = scmp.eq.s32.totalorder %s13, 1
    %p94 = scmp.ne.s32.totalorder %s89, %s91
    %p95 = scmp.eq.s32.totalorder %s13, 0
    %p96 = por %p94, %p95
    %p97 = scmp.ne.s32.totalorder %s89, %s91
    %p98 = scmp.eq.s32.totalorder %s18, 1
    %p99 = por %p97, %p98
    %p100 = scmp.ne.s32.totalorder %s91, %s92
    %p101 = scmp.eq.s32.totalorder %s18, 0
    %p102 = por %p100, %p101
    %p103 = scmp.ne.s32.totalorder %s91, %s92
    %p104 = scmp.eq.s32.totalorder %s19, 1
    %p105 = por %p103, %p104
    %p107 = scmp.ne.s32.totalorder %s92, %s106
    %p108 = scmp.eq.s32.totalorder %s19, 0
    %p109 = por %p107, %p108
    %s111 = sadd.s32 %s110, 1
    %p114 = scmp.eq.s32.totalorder %s13, 1
    %p115 = scmp.ne.s32.totalorder %s110, %s112
    %p116 = scmp.eq.s32.totalorder %s13, 0
    %p117 = por %p115, %p116
    %p118 = scmp.ne.s32.totalorder %s110, %s112
    %p119 = scmp.eq.s32.totalorder %s18, 1
    %p120 = por %p118, %p119
    %p121 = scmp.ne.s32.totalorder %s112, %s113
    %p122 = scmp.eq.s32.totalorder %s18, 0
    %p123 = por %p121, %p122
    %p124 = scmp.ne.s32.totalorder %s112, %s113
    %p125 = scmp.eq.s32.totalorder %s19, 1
    %p126 = por %p124, %p125
    %p128 = scmp.ne.s32.totalorder %s113, %s127
    %p129 = scmp.eq.s32.totalorder %s19, 0
    %p130 = por %p128, %p129
    %s132 = sadd.s32 %s131, 1
    %p135 = scmp.eq.s32.totalorder %s13, 1
    %p136 = scmp.ne.s32.totalorder %s131, %s133
    %p137 = scmp.eq.s32.totalorder %s13, 0
    %p138 = por %p136, %p137
    %p139 = scmp.ne.s32.totalorder %s131, %s133
    %p140 = scmp.eq.s32.totalorder %s18, 1
    %p141 = por %p139, %p140
    %p142 = scmp.ne.s32.totalorder %s133, %s134
    %p143 = scmp.eq.s32.totalorder %s18, 0
    %p144 = por %p142, %p143
    %p145 = scmp.ne.s32.totalorder %s133, %s134
    %p146 = scmp.eq.s32.totalorder %s19, 1
    %p147 = por %p145, %p146
    %p149 = scmp.ne.s32.totalorder %s134, %s148
    %p150 = scmp.eq.s32.totalorder %s19, 0
    %p151 = por %p149, %p150
    %s153 = sadd.s32 %s152, 1
    %p156 = scmp.eq.s32.totalorder %s13, 1
    %p157 = scmp.ne.s32.totalorder %s152, %s154
    %p158 = scmp.eq.s32.totalorder %s13, 0
    %p159 = por %p157, %p158
    %p160 = scmp.ne.s32.totalorder %s152, %s154
    %p161 = scmp.eq.s32.totalorder %s18, 1
    %p162 = por %p160, %p161
    %p163 = scmp.ne.s32.totalorder %s154, %s155
    %p164 = scmp.eq.s32.totalorder %s18, 0
    %p165 = por %p163, %p164
    %p166 = scmp.ne.s32.totalorder %s154, %s155
    %p167 = scmp.eq.s32.totalorder %s19, 1
    %p168 = por %p166, %p167
    %p170 = scmp.ne.s32.totalorder %s155, %s169
    %p171 = scmp.eq.s32.totalorder %s19, 0
    %p172 = por %p170, %p171
    %s173 = ssub.s32 %s13, %s20
    %p174 = scmp.eq.s32.totalorder %s173, 0
    %s176 = sadd.s32 %s175, 1
    %s177 = scalar_select %p174, %s175, %s176
    %p180 = pneg %p174
    %p181 = scmp.eq.s32.totalorder %s13, 1
    %p182 = por %p180, %p181
    %p183 = scmp.ne.s32.totalorder %s175, %s178
    %p184 = scmp.eq.s32.totalorder %s13, 0
    %p185 = por %p183, %p184
    %p186 = scmp.ne.s32.totalorder %s175, %s178
    %p187 = scmp.eq.s32.totalorder %s18, 1
    %p188 = por %p186, %p187
    %p189 = scmp.ne.s32.totalorder %s178, %s179
    %p190 = scmp.eq.s32.totalorder %s18, 0
    %p191 = por %p189, %p190
    %p192 = scmp.ne.s32.totalorder %s178, %s179
    %p193 = scmp.eq.s32.totalorder %s19, 1
    %p194 = por %p192, %p193
    %p196 = scmp.ne.s32.totalorder %s179, %s195
    %p197 = scmp.eq.s32.totalorder %s19, 0
    %p198 = por %p196, %p197
    %p199 = scmp.le.s32.totalorder 1, %s13
    %p200 = scmp.lt.s32.totalorder %s13, 3
    %p201 = pnand %p199, %p200
    %p202 = pneg %p201
    // Predicated region
    $region9: #{encoder_forward.7} parent=5 // pred_check
      _
    $region10: #{encoder_forward.7} parent=5 // pred_check_branch
      %204 = sbr.rel (%p201) target = $region12
    $region11: #{encoder_forward.7} parent=5 // pred_region
      %s205 = ssub.s32 %s13, 1
      // Predicated region
      $region13: #{encoder_forward.7} parent=11 // pred_check
        %p206 = pneg %p60
      $region14: #{encoder_forward.7} parent=11 // pred_check_branch
        %208 = sbr.rel (%p206) target = $region16
      $region15: #{encoder_forward.7} parent=11 // pred_region
        _
      $region16: #{encoder_forward.7} parent=11 // pred_fallthru
        _
      // Predicated region
      $region17: #{encoder_forward.7} parent=11 // pred_check
        %p209 = pneg %p81
      $region18: #{encoder_forward.7} parent=11 // pred_check_branch
        %211 = sbr.rel (%p209) target = $region20
      $region19: #{encoder_forward.7} parent=11 // pred_region
        _
      $region20: #{encoder_forward.7} parent=11 // pred_fallthru
        _
      // Predicated region
      $region21: #{encoder_forward.7} parent=11 // pred_check
        %p212 = pneg %p102
      $region22: #{encoder_forward.7} parent=11 // pred_check_branch
        %214 = sbr.rel (%p212) target = $region24
      $region23: #{encoder_forward.7} parent=11 // pred_region
        _
      $region24: #{encoder_forward.7} parent=11 // pred_fallthru
        _
      // Predicated region
      $region25: #{encoder_forward.7} parent=11 // pred_check
        %p215 = pneg %p123
      $region26: #{encoder_forward.7} parent=11 // pred_check_branch
        %217 = sbr.rel (%p215) target = $region28
      $region27: #{encoder_forward.7} parent=11 // pred_region
        _
      $region28: #{encoder_forward.7} parent=11 // pred_fallthru
        _
      // Predicated region
      $region29: #{encoder_forward.7} parent=11 // pred_check
        %p218 = pneg %p144
      $region30: #{encoder_forward.7} parent=11 // pred_check_branch
        %220 = sbr.rel (%p218) target = $region32
      $region31: #{encoder_forward.7} parent=11 // pred_region
        _
      $region32: #{encoder_forward.7} parent=11 // pred_fallthru
        _
      // Predicated region
      $region33: #{encoder_forward.7} parent=11 // pred_check
        %p221 = pneg %p165
      $region34: #{encoder_forward.7} parent=11 // pred_check_branch
        %223 = sbr.rel (%p221) target = $region36
      $region35: #{encoder_forward.7} parent=11 // pred_region
        _
      $region36: #{encoder_forward.7} parent=11 // pred_fallthru
        _
    $region12: #{encoder_forward.7} parent=5 // pred_fallthru
      _
    %p224 = scmp.lt.s32.totalorder %s13, 2
    // Predicated region
    $region37: #{encoder_forward.7} parent=5 // pred_check
      %p225 = pneg %p224
    $region38: #{encoder_forward.7} parent=5 // pred_check_branch
      %227 = sbr.rel (%p225) target = $region40
    $region39: #{encoder_forward.7} parent=5 // pred_region
      // Predicated region
      $region41: #{encoder_forward.7} parent=39 // pred_check
        %p228 = pneg %p33
      $region42: #{encoder_forward.7} parent=39 // pred_check_branch
        %230 = sbr.rel (%p228) target = $region44
      $region43: #{encoder_forward.7} parent=39 // pred_region
        %p231 = scmp.lt.s32.totalorder %s13, 1
        %s232 = scalar_select %p231, %s13, 1
        %s233 = smul.addr %s232, 8
        %s234 = scalar_lea.vmem %s0, %s233
      $region44: #{encoder_forward.7} parent=39 // pred_fallthru
        _
    $region40: #{encoder_forward.7} parent=5 // pred_fallthru
      _
    %p235 = scmp.le.s32.totalorder 1, %s13
    %p236 = scmp.lt.s32.totalorder %s13, 3
    %p237 = pnand %p235, %p236
    %p238 = pneg %p237
    // Predicated region
    $region45: #{encoder_forward.7} parent=5 // pred_check
      _
    $region46: #{encoder_forward.7} parent=5 // pred_check_branch
      %240 = sbr.rel (%p237) target = $region48
    $region47: #{encoder_forward.7} parent=5 // pred_region
      %s241 = ssub.s32 %s13, 1
      %p242 = scmp.lt.s32.totalorder %s18, 1
      %s243 = scalar_select %p242, %s18, 1
      %s244 = smul.addr %s243, 8
      %s245 = scalar_lea.vmem %s0, %s244
      %p246 = pneg %p39
      %p247 = pneg %p36
      %p248 = pneg %p60
      %p249 = pneg %p57
      %p250 = pneg %p81
      %p251 = pneg %p78
      %p252 = pneg %p102
      %p253 = pneg %p99
      %p254 = pneg %p123
      %p255 = pneg %p120
      %p256 = pneg %p144
      %p257 = pneg %p141
      %p258 = pneg %p165
      %p259 = pneg %p162
      %p260 = pneg %p191
      %p261 = pneg %p188
      %p262 = scmp.lt.s32.totalorder %s18, 1
      %s263 = scalar_select %p262, %s18, 1
      %s264 = smul.addr %s263, 8
      %s265 = scalar_lea.vmem %s7, %s264
      %p266 = scmp.lt.s32.totalorder %s18, 1
      %s267 = scalar_select %p266, %s18, 1
      %s268 = smul.addr %s267, 8
      %s269 = scalar_lea.vmem %s0, %s268
      %p270 = scmp.lt.s32.totalorder %s18, 1
      %s271 = scalar_select %p270, %s18, 1
      %s272 = smul.addr %s271, 8
      %s273 = scalar_lea.vmem %s7, %s272
      %v274 = vld [vmem:[%s269] sm:$0xff]
      %v275 = vld [vmem:[%s1] sm:$0x1]
      %v276 = vld [vmem:[%s2] sm:$0x1]
      %277 = vadd.xlane.f32.xlu0 %v274
      %v278 = vpop.xlane.xlu0 %277
      %v279 = vrcp.pop 128.0
      %v280 = vmul.f32 128.0, %v279
      %v281 = vsub.f32 1.0, %v280
      %v282 = vmul.f32 %v279, %v281
      %v283 = vadd.f32 %v279, %v282
      %vm284 = vweird.f32 %v279
      %v285 = vsel %vm284, %v279, %v283
      %v286 = vmul.f32 %v278, %v285
      %v287 = vsub.f32 %v274, %v286
      %v288 = vmul.f32 %v287, %v287
      %289 = vadd.xlane.f32.xlu0 %v288
      %v290 = vpop.xlane.xlu0 %289
      %v291 = vmul.f32 %v290, 0.007874016
      %v292 = vrsqrt.pop %v291
      %v293 = vmul.f32 %v292, %v291
      %v294 = vmul.f32 %v293, %v292
      %v295 = vmul.f32 0.5, %v294
      %v296 = vsub.f32 1.5, %v295
      %v297 = vmul.f32 %v292, %v296
      %v298 = vmul.f32 %v291, %v297
      %vm299 = vcmp.eq.f32.partialorder %v291, inf
      %v300 = vsel %vm299, %v291, %v298
      %vm301 = vcmp.eq.f32.partialorder %v291, 0.0
      %v302 = vand.u32 %v291, 2147483648
      %v303 = vsel %vm301, %v302, %v300
      %v305 = vperm.slane %v275, 0
      %v307 = vmul.f32 %v305, %v287
      %v308 = vadd.f32 %v303, 1e-06
      %v309 = vrcp.pop %v308
      %v310 = vmul.f32 %v308, %v309
      %v311 = vsub.f32 1.0, %v310
      %v312 = vmul.f32 %v309, %v311
      %v313 = vadd.f32 %v309, %v312
      %vm314 = vweird.f32 %v308
      %vm315 = vweird.f32 %v309
      %vm316 = vmor %vm314, %vm315
      %v317 = vsel %vm316, %v309, %v313
      %v318 = vand.u32 2147483647, %v308
      %vm319 = vcmp.eq.f32.partialorder %v318, 8.507059e+37
      %v320 = vand.u32 %v308, 2147483648
      %v321 = vor.u32 1.1754944e-38, %v320
      %v322 = vsel %vm319, %v321, %v317
      %v323 = vmul.f32 %v307, %v322
      %v325 = vperm.slane %v276, 0
      %v327 = vadd.f32 %v323, %v325
      %v328 = vld [vmem:[%s3] sm:$0xff]
      %v329 = vld [vmem:[%s3 + $0x8] sm:$0xff]
      %v330 = vld [vmem:[%s3 + $0x10] sm:$0xff]
      %v331 = vld [vmem:[%s3 + $0x18] sm:$0xff]
      %v332 = vld [vmem:[%s3 + $0x20] sm:$0xff]
      %v333 = vld [vmem:[%s3 + $0x28] sm:$0xff]
      %v334 = vld [vmem:[%s3 + $0x30] sm:$0xff]
      %v335 = vld [vmem:[%s3 + $0x38] sm:$0xff]
      %v336 = vld [vmem:[%s3 + $0x40] sm:$0xff]
      %v337 = vld [vmem:[%s3 + $0x48] sm:$0xff]
      %v338 = vld [vmem:[%s3 + $0x50] sm:$0xff]
      %v339 = vld [vmem:[%s3 + $0x58] sm:$0xff]
      %v340 = vld [vmem:[%s3 + $0x60] sm:$0xff]
      %v341 = vld [vmem:[%s3 + $0x68] sm:$0xff]
      %v342 = vld [vmem:[%s3 + $0x70] sm:$0xff]
      %v343 = vld [vmem:[%s3 + $0x78] sm:$0xff]
      %v344 = vld [vmem:[%s3 + $0x80] sm:$0xff]
      %v345 = vld [vmem:[%s3 + $0x88] sm:$0xff]
      %v346 = vld [vmem:[%s3 + $0x90] sm:$0xff]
      %v347 = vld [vmem:[%s3 + $0x98] sm:$0xff]
      %v348 = vld [vmem:[%s3 + $0xa0] sm:$0xff]
      %v349 = vld [vmem:[%s3 + $0xa8] sm:$0xff]
      %v350 = vld [vmem:[%s3 + $0xb0] sm:$0xff]
      %v351 = vld [vmem:[%s3 + $0xb8] sm:$0xff]
      %v352 = vld [vmem:[%s3 + $0xc0] sm:$0xff]
      %v353 = vld [vmem:[%s3 + $0xc8] sm:$0xff]
      %v354 = vld [vmem:[%s3 + $0xd0] sm:$0xff]
      %v355 = vld [vmem:[%s3 + $0xd8] sm:$0xff]
      %v356 = vld [vmem:[%s3 + $0xe0] sm:$0xff]
      %v357 = vld [vmem:[%s3 + $0xe8] sm:$0xff]
      %v358 = vld [vmem:[%s3 + $0xf0] sm:$0xff]
      %v359 = vld [vmem:[%s3 + $0xf8] sm:$0xff]
      %v360 = vld [vmem:[%s3 + $0x100] sm:$0xff]
      %v361 = vld [vmem:[%s3 + $0x108] sm:$0xff]
      %v362 = vld [vmem:[%s3 + $0x110] sm:$0xff]
      %v363 = vld [vmem:[%s3 + $0x118] sm:$0xff]
      %v364 = vld [vmem:[%s3 + $0x120] sm:$0xff]
      %v365 = vld [vmem:[%s3 + $0x128] sm:$0xff]
      %v366 = vld [vmem:[%s3 + $0x130] sm:$0xff]
      %v367 = vld [vmem:[%s3 + $0x138] sm:$0xff]
      %v368 = vld [vmem:[%s3 + $0x140] sm:$0xff]
      %v369 = vld [vmem:[%s3 + $0x148] sm:$0xff]
      %v370 = vld [vmem:[%s3 + $0x150] sm:$0xff]
      %v371 = vld [vmem:[%s3 + $0x158] sm:$0xff]
      %v372 = vld [vmem:[%s3 + $0x160] sm:$0xff]
      %v373 = vld [vmem:[%s3 + $0x168] sm:$0xff]
      %v374 = vld [vmem:[%s3 + $0x170] sm:$0xff]
      %v375 = vld [vmem:[%s3 + $0x178] sm:$0xff]
      %v376 = vld [vmem:[%s4] sm:$0x7]
      %v378 = vperm.slane %v376, 0
      %v379 = vperm.slane %v376, 1
      %v380 = vperm.slane %v376, 2
      %384 = vmatpush.msra.mxu0 %v373
      %385 = vmatpush.msra.mxu0 %v370
      %386 = vmatpush.msra.mxu0 %v367
      %387 = vmatpush.msra.mxu0 %v364
      %388 = vmatpush.msra.mxu0 %v361
      %389 = vmatpush.msra.mxu0 %v358
      %390 = vmatpush.msra.mxu0 %v355
      %391 = vmatpush.msra.mxu0 %v352
      %392 = vmatpush.msra.mxu0 %v349
      %393 = vmatpush.msra.mxu0 %v346
      %394 = vmatpush.msra.mxu0 %v343
      %395 = vmatpush.msra.mxu0 %v340
      %396 = vmatpush.msra.mxu0 %v337
      %397 = vmatpush.msra.mxu0 %v334
      %398 = vmatpush.msra.mxu0 %v331
      %399 = vmatpush.msra.mxu0 %v328
      %400 = vmatmul.f32.gmra.mxu0 %v327
      %v401 = vpop.f32.mrf.mxu0
      %v402 = vadd.f32 %v378, %v401
      %403 = vdwg.mxu0
      %404 = vmatpush.msra.mxu0 %v374
      %405 = vmatpush.msra.mxu0 %v371
      %406 = vmatpush.msra.mxu0 %v368
      %407 = vmatpush.msra.mxu0 %v365
      %408 = vmatpush.msra.mxu0 %v362
      %409 = vmatpush.msra.mxu0 %v359
      %410 = vmatpush.msra.mxu0 %v356
      %411 = vmatpush.msra.mxu0 %v353
      %412 = vmatpush.msra.mxu0 %v350
      %413 = vmatpush.msra.mxu0 %v347
      %414 = vmatpush.msra.mxu0 %v344
      %415 = vmatpush.msra.mxu0 %v341
      %416 = vmatpush.msra.mxu0 %v338
      %417 = vmatpush.msra.mxu0 %v335
      %418 = vmatpush.msra.mxu0 %v332
      %419 = vmatpush.msra.mxu0 %v329
      %420 = vmatmul.f32.gmra.mxu0 %v327
      %v421 = vpop.f32.mrf.mxu0
      %v422 = vadd.f32 %v379, %v421
      %423 = vdwg.mxu0
      %424 = vmatpush.msra.mxu0 %v375
      %425 = vmatpush.msra.mxu0 %v372
      %426 = vmatpush.msra.mxu0 %v369
      %427 = vmatpush.msra.mxu0 %v366
      %428 = vmatpush.msra.mxu0 %v363
      %429 = vmatpush.msra.mxu0 %v360
      %430 = vmatpush.msra.mxu0 %v357
      %431 = vmatpush.msra.mxu0 %v354
      %432 = vmatpush.msra.mxu0 %v351
      %433 = vmatpush.msra.mxu0 %v348
      %434 = vmatpush.msra.mxu0 %v345
      %435 = vmatpush.msra.mxu0 %v342
      %436 = vmatpush.msra.mxu0 %v339
      %437 = vmatpush.msra.mxu0 %v336
      %438 = vmatpush.msra.mxu0 %v333
      %439 = vmatpush.msra.mxu0 %v330
      %440 = vmatmul.f32.gmra.mxu0 %v327
      %v441 = vpop.f32.mrf.mxu0
      %v442 = vadd.f32 %v380, %v441
      %443 = vdwg.mxu0
      %v444 = vmul.f32 %v402, 0.17677669
      %vm445 = vcmask 261120
      %v447 = vsel %vm445, %v444, 0
      %v450 = vsel %vm445, %v422, 0
      %452 = vmatpush.xpose.msra.mxu0 0.0
      %453 = vmatpush.xpose.msra.mxu0 0.0
      %454 = vmatpush.xpose.msra.mxu0 0.0
      %455 = vmatpush.xpose.msra.mxu0 0.0
      %456 = vmatpush.xpose.msra.mxu0 0.0
      %457 = vmatpush.xpose.msra.mxu0 0.0
      %458 = vmatpush.xpose.msra.mxu0 0.0
      %459 = vmatpush.xpose.msra.mxu0 0.0
      %460 = vmatpush.xpose.msra.mxu0 0.0
      %461 = vmatpush.xpose.msra.mxu0 0.0
      %462 = vmatpush.xpose.msra.mxu0 0.0
      %463 = vmatpush.xpose.msra.mxu0 0.0
      %464 = vmatpush.xpose.msra.mxu0 0.0
      %465 = vmatpush.xpose.msra.mxu0 0.0
      %466 = vmatpush.xpose.msra.mxu0 0.0
      %467 = vmatpush.xpose.msra.mxu0 %v450
      %468 = vmatmul.f32.gmra.mxu0 %v447
      %v469 = vpop.f32.mrf.mxu0
      %v470 = vadd.f32 0.0, %v469
      %471 = vdwg.mxu0
      %vm472 = vcmask 64512
      %v473 = vsel %vm472, %v470, -inf
      %474 = vmax.xlane.f32.xlu0 %v473
      %v475 = vpop.xlane.xlu0 %474
      %v476 = vsub.f32 %v470, %v475
      %v477 = vmul.f32 %v476, 1.442695
      %v478 = vpow.pop %v477
      %v479 = vsel %vm472, %v478, 0.0
      %480 = vadd.xlane.f32.xlu0 %v479
      %v481 = vpop.xlane.xlu0 %480
      %v482 = vrcp.pop %v481
      %v483 = vmul.f32 %v478, %v482
      %v485 = vsel %vm472, %v483, 0
      %487 = vmatpush.msra.mxu0 0.0
      %488 = vmatpush.msra.mxu0 0.0
      %489 = vmatpush.msra.mxu0 0.0
      %490 = vmatpush.msra.mxu0 0.0
      %491 = vmatpush.msra.mxu0 0.0
      %492 = vmatpush.msra.mxu0 0.0
      %493 = vmatpush.msra.mxu0 0.0
      %494 = vmatpush.msra.mxu0 0.0
      %495 = vmatpush.msra.mxu0 0.0
      %496 = vmatpush.msra.mxu0 0.0
      %497 = vmatpush.msra.mxu0 0.0
      %498 = vmatpush.msra.mxu0 0.0
      %499 = vmatpush.msra.mxu0 0.0
      %500 = vmatpush.msra.mxu0 0.0
      %501 = vmatpush.msra.mxu0 0.0
      %502 = vmatpush.msra.mxu0 %v442
      %503 = vmatmul.f32.gmra.mxu0 %v485
      %v504 = vpop.f32.mrf.mxu0
      %v505 = vadd.f32 0.0, %v504
      %506 = vdwg.mxu0
      %507 = vrot.lane.b32.xlu0 %v444, 96
      %v508 = vpop.permute.xlu0 %507
      %509 = vrot.lane.b32.xlu0 %v422, 96
      %v510 = vpop.permute.xlu0 %509
      %v511 = vsel %vm445, %v508, 0
      %v513 = vsel %vm445, %v510, 0
      %515 = vmatpush.xpose.msra.mxu0 0.0
      %516 = vmatpush.xpose.msra.mxu0 0.0
      %517 = vmatpush.xpose.msra.mxu0 0.0
      %518 = vmatpush.xpose.msra.mxu0 0.0
      %519 = vmatpush.xpose.msra.mxu0 0.0
      %520 = vmatpush.xpose.msra.mxu0 0.0
      %521 = vmatpush.xpose.msra.mxu0 0.0
      %522 = vmatpush.xpose.msra.mxu0 0.0
      %523 = vmatpush.xpose.msra.mxu0 0.0
      %524 = vmatpush.xpose.msra.mxu0 0.0
      %525 = vmatpush.xpose.msra.mxu0 0.0
      %526 = vmatpush.xpose.msra.mxu0 0.0
      %527 = vmatpush.xpose.msra.mxu0 0.0
      %528 = vmatpush.xpose.msra.mxu0 0.0
      %529 = vmatpush.xpose.msra.mxu0 0.0
      %530 = vmatpush.xpose.msra.mxu0 %v513
      %531 = vmatmul.f32.gmra.mxu0 %v511
      %v532 = vpop.f32.mrf.mxu0
      %v533 = vadd.f32 0.0, %v532
      %534 = vdwg.mxu0
      %v535 = vsel %vm472, %v533, -inf
      %536 = vmax.xlane.f32.xlu0 %v535
      %v537 = vpop.xlane.xlu0 %536
      %v538 = vsub.f32 %v533, %v537
      %v539 = vmul.f32 %v538, 1.442695
      %v540 = vpow.pop %v539
      %v541 = vsel %vm472, %v540, 0.0
      %542 = vadd.xlane.f32.xlu0 %v541
      %v543 = vpop.xlane.xlu0 %542
      %v544 = vrcp.pop %v543
      %v545 = vmul.f32 %v540, %v544
      %547 = vrot.lane.b32.xlu0 %v442, 96
      %v548 = vpop.permute.xlu0 %547
      %v551 = vsel %vm472, %v545, 0
      %553 = vmatpush.msra.mxu0 0.0
      %554 = vmatpush.msra.mxu0 0.0
      %555 = vmatpush.msra.mxu0 0.0
      %556 = vmatpush.msra.mxu0 0.0
      %557 = vmatpush.msra.mxu0 0.0
      %558 = vmatpush.msra.mxu0 0.0
      %559 = vmatpush.msra.mxu0 0.0
      %560 = vmatpush.msra.mxu0 0.0
      %561 = vmatpush.msra.mxu0 0.0
      %562 = vmatpush.msra.mxu0 0.0
      %563 = vmatpush.msra.mxu0 0.0
      %564 = vmatpush.msra.mxu0 0.0
      %565 = vmatpush.msra.mxu0 0.0
      %566 = vmatpush.msra.mxu0 0.0
      %567 = vmatpush.msra.mxu0 0.0
      %568 = vmatpush.msra.mxu0 %v548
      %569 = vmatmul.f32.gmra.mxu0 %v551
      %v570 = vpop.f32.mrf.mxu0
      %v571 = vadd.f32 0.0, %v570
      %572 = vdwg.mxu0
      %573 = vrot.lane.b32.xlu0 %v444, 64
      %v574 = vpop.permute.xlu0 %573
      %575 = vrot.lane.b32.xlu0 %v422, 64
      %v576 = vpop.permute.xlu0 %575
      %v577 = vsel %vm445, %v574, 0
      %v579 = vsel %vm445, %v576, 0
      %581 = vmatpush.xpose.msra.mxu0 0.0
      %582 = vmatpush.xpose.msra.mxu0 0.0
      %583 = vmatpush.xpose.msra.mxu0 0.0
      %584 = vmatpush.xpose.msra.mxu0 0.0
      %585 = vmatpush.xpose.msra.mxu0 0.0
      %586 = vmatpush.xpose.msra.mxu0 0.0
      %587 = vmatpush.xpose.msra.mxu0 0.0
      %588 = vmatpush.xpose.msra.mxu0 0.0
      %589 = vmatpush.xpose.msra.mxu0 0.0
      %590 = vmatpush.xpose.msra.mxu0 0.0
      %591 = vmatpush.xpose.msra.mxu0 0.0
      %592 = vmatpush.xpose.msra.mxu0 0.0
      %593 = vmatpush.xpose.msra.mxu0 0.0
      %594 = vmatpush.xpose.msra.mxu0 0.0
      %595 = vmatpush.xpose.msra.mxu0 0.0
      %596 = vmatpush.xpose.msra.mxu0 %v579
      %597 = vmatmul.f32.gmra.mxu0 %v577
      %v598 = vpop.f32.mrf.mxu0
      %v599 = vadd.f32 0.0, %v598
      %600 = vdwg.mxu0
      %v601 = vsel %vm472, %v599, -inf
      %602 = vmax.xlane.f32.xlu0 %v601
      %v603 = vpop.xlane.xlu0 %602
      %v604 = vsub.f32 %v599, %v603
      %v605 = vmul.f32 %v604, 1.442695
      %v606 = vpow.pop %v605
      %v607 = vsel %vm472, %v606, 0.0
      %608 = vadd.xlane.f32.xlu0 %v607
      %v609 = vpop.xlane.xlu0 %608
      %v610 = vrcp.pop %v609
      %v611 = vmul.f32 %v606, %v610
      %612 = vrot.lane.b32.xlu0 %v442, 64
      %v613 = vpop.permute.xlu0 %612
      %v616 = vsel %vm472, %v611, 0
      %618 = vmatpush.msra.mxu0 0.0
      %619 = vmatpush.msra.mxu0 0.0
      %620 = vmatpush.msra.mxu0 0.0
      %621 = vmatpush.msra.mxu0 0.0
      %622 = vmatpush.msra.mxu0 0.0
      %623 = vmatpush.msra.mxu0 0.0
      %624 = vmatpush.msra.mxu0 0.0
      %625 = vmatpush.msra.mxu0 0.0
      %626 = vmatpush.msra.mxu0 0.0
      %627 = vmatpush.msra.mxu0 0.0
      %628 = vmatpush.msra.mxu0 0.0
      %629 = vmatpush.msra.mxu0 0.0
      %630 = vmatpush.msra.mxu0 0.0
      %631 = vmatpush.msra.mxu0 0.0
      %632 = vmatpush.msra.mxu0 0.0
      %633 = vmatpush.msra.mxu0 %v613
      %634 = vmatmul.f32.gmra.mxu0 %v616
      %v635 = vpop.f32.mrf.mxu0
      %v636 = vadd.f32 0.0, %v635
      %637 = vdwg.mxu0
      %638 = vrot.lane.b32.xlu0 %v444, 32
      %v639 = vpop.permute.xlu0 %638
      %640 = vrot.lane.b32.xlu0 %v422, 32
      %v641 = vpop.permute.xlu0 %640
      %v642 = vsel %vm445, %v639, 0
      %v644 = vsel %vm445, %v641, 0
      %646 = vmatpush.xpose.msra.mxu0 0.0
      %647 = vmatpush.xpose.msra.mxu0 0.0
      %648 = vmatpush.xpose.msra.mxu0 0.0
      %649 = vmatpush.xpose.msra.mxu0 0.0
      %650 = vmatpush.xpose.msra.mxu0 0.0
      %651 = vmatpush.xpose.msra.mxu0 0.0
      %652 = vmatpush.xpose.msra.mxu0 0.0
      %653 = vmatpush.xpose.msra.mxu0 0.0
      %654 = vmatpush.xpose.msra.mxu0 0.0
      %655 = vmatpush.xpose.msra.mxu0 0.0
      %656 = vmatpush.xpose.msra.mxu0 0.0
      %657 = vmatpush.xpose.msra.mxu0 0.0
      %658 = vmatpush.xpose.msra.mxu0 0.0
      %659 = vmatpush.xpose.msra.mxu0 0.0
      %660 = vmatpush.xpose.msra.mxu0 0.0
      %661 = vmatpush.xpose.msra.mxu0 %v644
      %662 = vmatmul.f32.gmra.mxu0 %v642
      %v663 = vpop.f32.mrf.mxu0
      %v664 = vadd.f32 0.0, %v663
      %665 = vdwg.mxu0
      %v666 = vsel %vm472, %v664, -inf
      %667 = vmax.xlane.f32.xlu0 %v666
      %v668 = vpop.xlane.xlu0 %667
      %v669 = vsub.f32 %v664, %v668
      %v670 = vmul.f32 %v669, 1.442695
      %v671 = vpow.pop %v670
      %v672 = vsel %vm472, %v671, 0.0
      %673 = vadd.xlane.f32.xlu0 %v672
      %v674 = vpop.xlane.xlu0 %673
      %v675 = vrcp.pop %v674
      %v676 = vmul.f32 %v671, %v675
      %677 = vrot.lane.b32.xlu0 %v442, 32
      %v678 = vpop.permute.xlu0 %677
      %v681 = vsel %vm472, %v676, 0
      %683 = vmatpush.msra.mxu0 0.0
      %684 = vmatpush.msra.mxu0 0.0
      %685 = vmatpush.msra.mxu0 0.0
      %686 = vmatpush.msra.mxu0 0.0
      %687 = vmatpush.msra.mxu0 0.0
      %688 = vmatpush.msra.mxu0 0.0
      %689 = vmatpush.msra.mxu0 0.0
      %690 = vmatpush.msra.mxu0 0.0
      %691 = vmatpush.msra.mxu0 0.0
      %692 = vmatpush.msra.mxu0 0.0
      %693 = vmatpush.msra.mxu0 0.0
      %694 = vmatpush.msra.mxu0 0.0
      %695 = vmatpush.msra.mxu0 0.0
      %696 = vmatpush.msra.mxu0 0.0
      %697 = vmatpush.msra.mxu0 0.0
      %698 = vmatpush.msra.mxu0 %v678
      %699 = vmatmul.f32.gmra.mxu0 %v681
      %v700 = vpop.f32.mrf.mxu0
      %v701 = vadd.f32 0.0, %v700
      %702 = vdwg.mxu0
      %704 = vrot.lane.b32.xlu0 %v571, 32
      %v705 = vpop.permute.xlu0 %704
      %708 = vrot.lane.b32.xlu0 %v636, 64
      %v709 = vpop.permute.xlu0 %708
      %712 = vrot.lane.b32.xlu0 %v701, 96
      %v713 = vpop.permute.xlu0 %712
      %v715 = vsel %vm445, %v505, %v705
      %vm716 = vcmask 523264
      %v717 = vsel %vm716, %v715, %v709
      %vm718 = vcmask 785408
      %v719 = vsel %vm718, %v717, %v713
      %v720 = vld [vmem:[%s5] sm:$0xff]
      %v721 = vld [vmem:[%s5 + $0x8] sm:$0xff]
      %v722 = vld [vmem:[%s5 + $0x10] sm:$0xff]
      %v723 = vld [vmem:[%s5 + $0x18] sm:$0xff]
      %v724 = vld [vmem:[%s5 + $0x20] sm:$0xff]
      %v725 = vld [vmem:[%s5 + $0x28] sm:$0xff]
      %v726 = vld [vmem:[%s5 + $0x30] sm:$0xff]
      %v727 = vld [vmem:[%s5 + $0x38] sm:$0xff]
      %v728 = vld [vmem:[%s5 + $0x40] sm:$0xff]
      %v729 = vld [vmem:[%s5 + $0x48] sm:$0xff]
      %v730 = vld [vmem:[%s5 + $0x50] sm:$0xff]
      %v731 = vld [vmem:[%s5 + $0x58] sm:$0xff]
      %v732 = vld [vmem:[%s5 + $0x60] sm:$0xff]
      %v733 = vld [vmem:[%s5 + $0x68] sm:$0xff]
      %v734 = vld [vmem:[%s5 + $0x70] sm:$0xff]
      %v735 = vld [vmem:[%s5 + $0x78] sm:$0xff]
      %v736 = vld [vmem:[%s6] sm:$0x1]
      %v738 = vperm.slane %v736, 0
      %740 = vmatpush.msra.mxu0 %v735
      %741 = vmatpush.msra.mxu0 %v734
      %742 = vmatpush.msra.mxu0 %v733
      %743 = vmatpush.msra.mxu0 %v732
      %744 = vmatpush.msra.mxu0 %v731
      %745 = vmatpush.msra.mxu0 %v730
      %746 = vmatpush.msra.mxu0 %v729
      %747 = vmatpush.msra.mxu0 %v728
      %748 = vmatpush.msra.mxu0 %v727
      %749 = vmatpush.msra.mxu0 %v726
      %750 = vmatpush.msra.mxu0 %v725
      %751 = vmatpush.msra.mxu0 %v724
      %752 = vmatpush.msra.mxu0 %v723
      %753 = vmatpush.msra.mxu0 %v722
      %754 = vmatpush.msra.mxu0 %v721
      %755 = vmatpush.msra.mxu0 %v720
      %756 = vmatmul.f32.gmra.mxu0 %v719
      %v757 = vpop.f32.mrf.mxu0
      %v758 = vadd.f32 %v738, %v757
      %759 = vdwg.mxu0
      %v760 = vadd.f32 %v758, %v274
      %761 = vst [vmem:[%s273] sm:$0xff] %v760
      %p762 = scmp.lt.s32.totalorder %s18, 1
      %s763 = scalar_select %p762, %s18, 1
      %s764 = smul.addr %s763, 8
      %s765 = scalar_lea.vmem %s7, %s764
      // Predicated region
      $region49: #{encoder_forward.7} parent=47 // pred_check
        %p766 = pneg %p188
      $region50: #{encoder_forward.7} parent=47 // pred_check_branch
        %768 = sbr.rel (%p766) target = $region52
      $region51: #{encoder_forward.7} parent=47 // pred_region
        _
      $region52: #{encoder_forward.7} parent=47 // pred_fallthru
        _
    $region48: #{encoder_forward.7} parent=5 // pred_fallthru
      _
    %p769 = scmp.le.s32.totalorder 2, %s13
    // Predicated region
    $region53: #{encoder_forward.7} parent=5 // pred_check
      %p770 = pneg %p769
    $region54: #{encoder_forward.7} parent=5 // pred_check_branch
      %772 = sbr.rel (%p770) target = $region56
    $region55: #{encoder_forward.7} parent=5 // pred_region
      %s773 = ssub.s32 %s13, 2
      // Predicated region
      $region57: #{encoder_forward.7} parent=55 // pred_check
        %p774 = pneg %p194
      $region58: #{encoder_forward.7} parent=55 // pred_check_branch
        %776 = sbr.rel (%p774) target = $region60
      $region59: #{encoder_forward.7} parent=55 // pred_region
        %p777 = scmp.lt.s32.totalorder %s19, 1
        %s778 = scalar_select %p777, %s19, 1
        %s779 = smul.addr %s778, 8
        %s780 = scalar_lea.vmem %s7, %s779
      $region60: #{encoder_forward.7} parent=55 // pred_fallthru
        _
    $region56: #{encoder_forward.7} parent=5 // pred_fallthru
      _
  $region6: #{encoder_forward.7} parent=0 // loop_footer
    %s17 = sadd.s32 1, %s13
  $region7: #{encoder_forward.7} parent=0 // loop_footer_branch
    %12 = sbr.rel target = $region3
  $region8: #{encoder_forward.7} parent=0 // loop_exit
    _

// kernel: encoder_forward.9
$region0: #{encoder_forward.9}
  #allocation0 [shape = 'u32[]', space=smem, size = 0x4, offset = 0x4, fixed_abs, tag = 'smem constant byte address 0x4 - core index']
  #allocation1 [shape = 'u32[72,128]{1,0:T(1,128)}', space=vmem, size = 0x9000, scoped, tag = 'internal scratch']
  %s0 = inlined_call_operand.vmem [shape: f32[16,128], index: 0, kind: input, shape index: {}]
  %s1 = inlined_call_operand.vmem [shape: f32[1,128], index: 1, kind: input, shape index: {}]
  %s2 = inlined_call_operand.vmem [shape: f32[1,128], index: 2, kind: input, shape index: {}]
  %s3 = inlined_call_operand.hbm [shape: f32[16,128], index: 3, kind: output, shape index: {}]
  %s4 = sld [smem:[#allocation0]]
  $region45: #{encoder_forward.9} parent=0
    _
  %s6 = ssub.s32 1, %s4
  %s7 = scalar_select 0, %s6, %s4
  $region1: #{encoder_forward.9} parent=0
    #allocation2 [shape = 'u8[8192]{0}', space=vmem, size = 0x2000, scoped, tag = 'output window, operand 0']
    #allocation3 [shape = 's32[2]{0}', space=sflag, size = 0x8, scoped, tag = 'scoped memory for encoder_forward.9']
    %8 = vsyncpa [#allocation3], 0
    %s9 = scalar_lea.sflag [#allocation3], 1
    %10 = vsyncpa %s9, 0
    loop: start=0, step=1, limit=4
    $region2: #{encoder_forward.9} parent=1 // loop_pre_header
      _
    $region3: #{encoder_forward.9} parent=1 // loop_header
      %s12 = sphi 0, %s16
      %p13 = scmp.ge.s32.totalorder %s12, 4
      %s22 = sphi 0, %s24
      %s25 = sphi 0, %s22
      %s26 = sphi 0, %s25
      %s42 = sphi 0, %s26
      %s46 = sphi 0, %s46
      %s48 = sphi 0, %s46
      %s49 = sphi 0, %s48
      %s63 = sphi 0, %s49
      %s67 = sphi 0, %s67
      %s69 = sphi 0, %s67
      %s70 = sphi 0, %s69
      %s84 = sphi 0, %s70
      %s90 = sphi 0, %s92
      %s93 = sphi 0, %s90
      %s94 = sphi 0, %s93
      %s110 = sphi 0, %s94
    $region4: #{encoder_forward.9} parent=1 // loop_header_branch
      %15 = sbr.rel (%p13) target = $region8
    $region5: #{encoder_forward.9} parent=1 // loop_body
      %s17 = ssub.s32 %s12, 1
      %s18 = ssub.s32 %s12, 2
      %s19 = sadd.s32 %s12, 1
      %s20 = ssub.s32 %s12, %s19
      %p21 = scmp.eq.s32.totalorder %s20, 0
      %s23 = sadd.s32 %s22, 1
      %s24 = scalar_select %p21, %s22, %s23
      %p27 = pneg %p21
      %p28 = scmp.eq.s32.totalorder %s12, 1
      %p29 = por %p27, %p28
      %p30 = scmp.ne.s32.totalorder %s22, %s25
      %p31 = scmp.eq.s32.totalorder %s12, 0
      %p32 = por %p30, %p31
      %p33 = scmp.ne.s32.totalorder %s22, %s25
      %p34 = scmp.eq.s32.totalorder %s17, 1
      %p35 = por %p33, %p34
      %p36 = scmp.ne.s32.totalorder %s25, %s26
      %p37 = scmp.eq.s32.totalorder %s17, 0
      %p38 = por %p36, %p37
      %p39 = scmp.ne.s32.totalorder %s25, %s26
      %p40 = scmp.eq.s32.totalorder %s18, 1
      %p41 = por %p39, %p40
      %p43 = scmp.ne.s32.totalorder %s26, %s42
      %p44 = scmp.eq.s32.totalorder %s18, 0
      %p45 = por %p43, %p44
      %s47 = sadd.s32 %s46, 1
      %p50 = scmp.eq.s32.totalorder %s12, 1
      %p51 = scmp.ne.s32.totalorder %s46, %s48
      %p52 = scmp.eq.s32.totalorder %s12, 0
      %p53 = por %p51, %p52
      %p54 = scmp.ne.s32.totalorder %s46, %s48
      %p55 = scmp.eq.s32.totalorder %s17, 1
      %p56 = por %p54, %p55
      %p57 = scmp.ne.s32.totalorder %s48, %s49
      %p58 = scmp.eq.s32.totalorder %s17, 0
      %p59 = por %p57, %p58
      %p60 = scmp.ne.s32.totalorder %s48, %s49
      %p61 = scmp.eq.s32.totalorder %s18, 1
      %p62 = por %p60, %p61
      %p64 = scmp.ne.s32.totalorder %s49, %s63
      %p65 = scmp.eq.s32.totalorder %s18, 0
      %p66 = por %p64, %p65
      %s68 = sadd.s32 %s67, 1
      %p71 = scmp.eq.s32.totalorder %s12, 1
      %p72 = scmp.ne.s32.totalorder %s67, %s69
      %p73 = scmp.eq.s32.totalorder %s12, 0
      %p74 = por %p72, %p73
      %p75 = scmp.ne.s32.totalorder %s67, %s69
      %p76 = scmp.eq.s32.totalorder %s17, 1
      %p77 = por %p75, %p76
      %p78 = scmp.ne.s32.totalorder %s69, %s70
      %p79 = scmp.eq.s32.totalorder %s17, 0
      %p80 = por %p78, %p79
      %p81 = scmp.ne.s32.totalorder %s69, %s70
      %p82 = scmp.eq.s32.totalorder %s18, 1
      %p83 = por %p81, %p82
      %p85 = scmp.ne.s32.totalorder %s70, %s84
      %p86 = scmp.eq.s32.totalorder %s18, 0
      %p87 = por %p85, %p86
      %s88 = ssub.s32 %s12, %s19
      %p89 = scmp.eq.s32.totalorder %s88, 0
      %s91 = sadd.s32 %s90, 1
      %s92 = scalar_select %p89, %s90, %s91
      %p95 = pneg %p89
      %p96 = scmp.eq.s32.totalorder %s12, 1
      %p97 = por %p95, %p96
      %p98 = scmp.ne.s32.totalorder %s90, %s93
      %p99 = scmp.eq.s32.totalorder %s12, 0
      %p100 = por %p98, %p99
      %p101 = scmp.ne.s32.totalorder %s90, %s93
      %p102 = scmp.eq.s32.totalorder %s17, 1
      %p103 = por %p101, %p102
      %p104 = scmp.ne.s32.totalorder %s93, %s94
      %p105 = scmp.eq.s32.totalorder %s17, 0
      %p106 = por %p104, %p105
      %p107 = scmp.ne.s32.totalorder %s93, %s94
      %p108 = scmp.eq.s32.totalorder %s18, 1
      %p109 = por %p107, %p108
      %p111 = scmp.ne.s32.totalorder %s94, %s110
      %p112 = scmp.eq.s32.totalorder %s18, 0
      %p113 = por %p111, %p112
      %p114 = scmp.le.s32.totalorder 1, %s12
      %p115 = scmp.lt.s32.totalorder %s12, 3
      %p116 = pnand %p114, %p115
      %p117 = pneg %p116
      // Predicated region
      $region9: #{encoder_forward.9} parent=5 // pred_check
        _
      $region10: #{encoder_forward.9} parent=5 // pred_check_branch
        %119 = sbr.rel (%p116) target = $region12
      $region11: #{encoder_forward.9} parent=5 // pred_region
        %s120 = ssub.s32 %s12, 1
        // Predicated region
        $region13: #{encoder_forward.9} parent=11 // pred_check
          %p121 = pneg %p59
        $region14: #{encoder_forward.9} parent=11 // pred_check_branch
          %123 = sbr.rel (%p121) target = $region16
        $region15: #{encoder_forward.9} parent=11 // pred_region
          _
        $region16: #{encoder_forward.9} parent=11 // pred_fallthru
          _
        // Predicated region
        $region17: #{encoder_forward.9} parent=11 // pred_check
          %p124 = pneg %p80
        $region18: #{encoder_forward.9} parent=11 // pred_check_branch
          %126 = sbr.rel (%p124) target = $region20
        $region19: #{encoder_forward.9} parent=11 // pred_region
          _
        $region20: #{encoder_forward.9} parent=11 // pred_fallthru
          _
      $region12: #{encoder_forward.9} parent=5 // pred_fallthru
        _
      %p127 = scmp.lt.s32.totalorder %s12, 2
      // Predicated region
      $region21: #{encoder_forward.9} parent=5 // pred_check
        %p128 = pneg %p127
      $region22: #{encoder_forward.9} parent=5 // pred_check_branch
        %130 = sbr.rel (%p128) target = $region24
      $region23: #{encoder_forward.9} parent=5 // pred_region
        // Predicated region
        $region25: #{encoder_forward.9} parent=23 // pred_check
          %p131 = pneg %p32
        $region26: #{encoder_forward.9} parent=23 // pred_check_branch
          %133 = sbr.rel (%p131) target = $region28
        $region27: #{encoder_forward.9} parent=23 // pred_region
          %p134 = scmp.lt.s32.totalorder %s12, 1
          %s135 = scalar_select %p134, %s12, 1
          %s136 = smul.addr %s135, 8
          %s137 = scalar_lea.vmem %s0, %s136
        $region28: #{encoder_forward.9} parent=23 // pred_fallthru
          _
      $region24: #{encoder_forward.9} parent=5 // pred_fallthru
        _
      %p138 = scmp.le.s32.totalorder 1, %s12
      %p139 = scmp.lt.s32.totalorder %s12, 3
      %p140 = pnand %p138, %p139
      %p141 = pneg %p140
      // Predicated region
      $region29: #{encoder_forward.9} parent=5 // pred_check
        _
      $region30: #{encoder_forward.9} parent=5 // pred_check_branch
        %143 = sbr.rel (%p140) target = $region32
      $region31: #{encoder_forward.9} parent=5 // pred_region
        %s144 = ssub.s32 %s12, 1
        %p145 = scmp.lt.s32.totalorder %s17, 1
        %s146 = scalar_select %p145, %s17, 1
        %s147 = smul.addr %s146, 8
        %s148 = scalar_lea.vmem %s0, %s147
        %p149 = pneg %p38
        %p150 = pneg %p35
        %p151 = pneg %p59
        %p152 = pneg %p56
        %p153 = pneg %p80
        %p154 = pneg %p77
        %p155 = pneg %p106
        %p156 = pneg %p103
        %s157 = sand.u32 %s93, 1
        %s158 = scalar_lea.sflag [#allocation3], %s157
        %s159 = sand.u32 %s93, 1
        %s160 = smul.addr %s159, 8
        %s161 = scalar_lea.vmem [#allocation2], %s160
        %p162 = scmp.lt.s32.totalorder %s17, 1
        %s163 = scalar_select %p162, %s17, 1
        %s164 = smul.addr %s163, 8
        %s165 = scalar_lea.vmem %s0, %s164
        %v166 = vld [vmem:[%s165] sm:$0xff]
        %v167 = vld [vmem:[%s1] sm:$0x1]
        %v168 = vld [vmem:[%s2] sm:$0x1]
        %169 = vadd.xlane.f32.xlu0 %v166
        %v170 = vpop.xlane.xlu0 %169
        %v171 = vrcp.pop 128.0
        %v172 = vmul.f32 128.0, %v171
        %v173 = vsub.f32 1.0, %v172
        %v174 = vmul.f32 %v171, %v173
        %v175 = vadd.f32 %v171, %v174
        %vm176 = vweird.f32 %v171
        %v177 = vsel %vm176, %v171, %v175
        %v178 = vmul.f32 %v170, %v177
        %v179 = vsub.f32 %v166, %v178
        %v180 = vmul.f32 %v179, %v179
        %181 = vadd.xlane.f32.xlu0 %v180
        %v182 = vpop.xlane.xlu0 %181
        %v183 = vmul.f32 %v182, 0.007874016
        %v184 = vrsqrt.pop %v183
        %v185 = vmul.f32 %v184, %v183
        %v186 = vmul.f32 %v185, %v184
        %v187 = vmul.f32 0.5, %v186
        %v188 = vsub.f32 1.5, %v187
        %v189 = vmul.f32 %v184, %v188
        %v190 = vmul.f32 %v183, %v189
        %vm191 = vcmp.eq.f32.partialorder %v183, inf
        %v192 = vsel %vm191, %v183, %v190
        %vm193 = vcmp.eq.f32.partialorder %v183, 0.0
        %v194 = vand.u32 %v183, 2147483648
        %v195 = vsel %vm193, %v194, %v192
        %v197 = vperm.slane %v167, 0
        %v199 = vmul.f32 %v197, %v179
        %v200 = vadd.f32 %v195, 1e-06
        %v201 = vrcp.pop %v200
        %v202 = vmul.f32 %v200, %v201
        %v203 = vsub.f32 1.0, %v202
        %v204 = vmul.f32 %v201, %v203
        %v205 = vadd.f32 %v201, %v204
        %vm206 = vweird.f32 %v200
        %vm207 = vweird.f32 %v201
        %vm208 = vmor %vm206, %vm207
        %v209 = vsel %vm208, %v201, %v205
        %v210 = vand.u32 2147483647, %v200
        %vm211 = vcmp.eq.f32.partialorder %v210, 8.507059e+37
        %v212 = vand.u32 %v200, 2147483648
        %v213 = vor.u32 1.1754944e-38, %v212
        %v214 = vsel %vm211, %v213, %v209
        %v215 = vmul.f32 %v199, %v214
        %v217 = vperm.slane %v168, 0
        %v219 = vadd.f32 %v215, %v217
        %220 = vst [vmem:[%s161] sm:$0xff] %v219
        %s221 = sand.u32 %s93, 1
        %s222 = scalar_lea.sflag [#allocation3], %s221
        %s223 = sand.u32 %s93, 1
        %s224 = smul.addr %s223, 8
        %s225 = scalar_lea.vmem [#allocation2], %s224
        // Predicated region
        $region33: #{encoder_forward.9} parent=31 // pred_check
          %p226 = pneg %p103
        $region34: #{encoder_forward.9} parent=31 // pred_check_branch
          %228 = sbr.rel (%p226) target = $region36
        $region35: #{encoder_forward.9} parent=31 // pred_region
          %230 = vsyncadd %s222, 0
          %s231 = smul.addr %s17, 8
          %s232 = scalar_lea.hbm %s3, %s231
          %s234 = sshll.u32 %s225, 4
          %s235 = int_to_ptr.vmem [resolvable:$true] %s234
          %s236 = sshll.u32 %s232, 4
          %s237 = int_to_ptr.hbm [resolvable:$true] %s236
          %239 = dma.vmem_to_hbm [thread:$0]  %s235, 128, %s237, %s222
        $region36: #{encoder_forward.9} parent=31 // pred_fallthru
          _
      $region32: #{encoder_forward.9} parent=5 // pred_fallthru
        _
      %p240 = scmp.le.s32.totalorder 2, %s12
      // Predicated region
      $region37: #{encoder_forward.9} parent=5 // pred_check
        %p241 = pneg %p240
      $region38: #{encoder_forward.9} parent=5 // pred_check_branch
        %243 = sbr.rel (%p241) target = $region40
      $region39: #{encoder_forward.9} parent=5 // pred_region
        %s244 = ssub.s32 %s12, 2
        // Predicated region
        $region41: #{encoder_forward.9} parent=39 // pred_check
          %p245 = pneg %p109
        $region42: #{encoder_forward.9} parent=39 // pred_check_branch
          %247 = sbr.rel (%p245) target = $region44
        $region43: #{encoder_forward.9} parent=39 // pred_region
          %s248 = sand.u32 %s94, 1
          %s249 = scalar_lea.sflag [#allocation3], %s248
          %s250 = sand.u32 %s94, 1
          %s251 = smul.addr %s250, 8
          %s252 = scalar_lea.vmem [#allocation2], %s251
          %254 = dma.done %s249, 128
        $region44: #{encoder_forward.9} parent=39 // pred_fallthru
          _
      $region40: #{encoder_forward.9} parent=5 // pred_fallthru
        _
    $region6: #{encoder_forward.9} parent=1 // loop_footer
      %s16 = sadd.s32 1, %s12
    $region7: #{encoder_forward.9} parent=1 // loop_footer_branch
      %11 = sbr.rel target = $region3
    $region8: #{encoder_forward.9} parent=1 // loop_exit
      _
    %255 = vsyncpa [#allocation3], 1
    %s256 = scalar_lea.sflag [#allocation3], 1
    %257 = vsyncpa %s256, 1

</llo_original>
